<compile_context>
chip_gen: v7x
topology: tpu7x:2x2x1
jax: 0.10.0
libtpu: 0.0.40
codegen_flags: <defaults>
</compile_context>

<pallas_src>
import jax
import jax.numpy as jnp
from jax.experimental import pallas as pl
from jax.experimental.pallas import tpu as pltpu

NUM_HEADING_BIN = 12
NUM_SIZE_CLUSTER = 8
OUT_DIM = 3 + NUM_HEADING_BIN * 2 + NUM_SIZE_CLUSTER * 4  # 59
OUT_PAD = 128              # lane-dense padded output width (sliced back to 59)
N_CLASSES = 2
BN_EPS = 1e-5
FEAT_DIM = 512             # global feature width (conv4 output)


# ----------------------------------------------------------------------------
# Kernel
# ----------------------------------------------------------------------------
def _box_kernel(
    pts_ref, oh_ref,
    w1, b1, w2, b2, w3, b3, w4, b4,
    w5g, w5h, b5, w6, b6, w7, b7,
    out_ref, gf_ref,
):
    n_idx = pl.program_id(1)
    tb, tn, _ = pts_ref.shape

    # fresh per-batch running max at the first point-tile
    @pl.when(n_idx == 0)
    def _():
        gf_ref[...] = jnp.full(gf_ref.shape, -jnp.inf, dtype=gf_ref.dtype)

    # ---- shared point MLP on this tile, merged over (batch, point) = M ----
    x = pts_ref[...].reshape(tb * tn, 3)                       # (M, 3) f32

    # layer 1: K=3 -> MXU nearly idle anyway, keep f32 for fidelity
    h = jnp.dot(x, w1[...], preferred_element_type=jnp.float32) + b1[...]
    h = jnp.maximum(h, 0.0)                                    # (M, 128)

    def blayer(h, w_ref, b_ref):
        # bf16 MXU operands, f32 accumulation; BN already folded into w/b
        y = jnp.dot(h.astype(jnp.bfloat16), w_ref[...],
                    preferred_element_type=jnp.float32) + b_ref[...]
        return jnp.maximum(y, 0.0)

    h = blayer(h, w2, b2)                                      # (M, 128)
    h = blayer(h, w3, b3)                                      # (M, 256)
    h = blayer(h, w4, b4)                                      # (M, 512)

    # per-batch running max over the points of this tile
    h = h.reshape(tb, tn, FEAT_DIM)
    gf_ref[...] = jnp.maximum(gf_ref[...], jnp.max(h, axis=1))

    # ---- FC head, once the max over all points is complete ----
    @pl.when(n_idx == pl.num_programs(1) - 1)
    def _():
        gf = gf_ref[...]                                       # (TB, 512) f32
        oh = oh_ref[...].reshape(tb, oh_ref.shape[-1])         # (TB, n_classes)
        z = (jnp.dot(gf, w5g[...], preferred_element_type=jnp.float32)
             + jnp.dot(oh, w5h[...], preferred_element_type=jnp.float32)
             + b5[...])
        z = jnp.maximum(z, 0.0)                                # fc1 + fcbn1 + relu
        z = jnp.dot(z, w6[...], preferred_element_type=jnp.float32) + b6[...]
        z = jnp.maximum(z, 0.0)                                # fc2 + fcbn2 + relu
        y = jnp.dot(z, w7[...], preferred_element_type=jnp.float32) + b7[...]
        out_ref[...] = y.reshape(tb, 1, OUT_PAD)               # fc3 (padded)


# ----------------------------------------------------------------------------
# Wrapper
# ----------------------------------------------------------------------------
def _pick_point_tile(n_pts):
    for cand in (512, 256, 128, 64, 32, 16, 8):
        if n_pts % cand == 0:
            return cand
    return n_pts  # whole axis (block dim == full dim is always legal)


def _const_spec(arr):
    nd = arr.ndim
    return pl.BlockSpec(arr.shape, lambda b, n, _nd=nd: (0,) * _nd)


def pointnet_box_estimation(pts, one_hot_vec, params, *, point_tile=None):
    """pts: (B, 3, N) f32, one_hot_vec: (B, n_classes) f32 -> (B, 59) f32."""
    bs, _, n_pts = pts.shape
    n_cls = one_hot_vec.shape[1]
    tn = point_tile or _pick_point_tile(n_pts)
    assert n_pts % tn == 0, "point tile must divide N"
    tb = 1  # one batch element per grid block (parallel axis across TCs)

    # channel-last, point-major layout so every 1x1 conv is one big matmul
    # TODO(synk): the (B,3,N)->(B,N,3) transpose is still a wrapper-side XLA op.
    pts_t = jnp.transpose(pts, (0, 2, 1))          # (B, N, 3)
    oh = one_hot_vec.reshape(bs, 1, n_cls)         # (B, 1, n_classes)

    weights = [
        params["w1"], params["b1"], params["w2"], params["b2"],
        params["w3"], params["b3"], params["w4"], params["b4"],
        params["w5g"], params["w5h"], params["b5"],
        params["w6"], params["b6"], params["w7"], params["b7"],
    ]

    in_specs = [
        pl.BlockSpec((tb, tn, 3), lambda b, n: (b, n, 0)),      # points tile
        pl.BlockSpec((tb, 1, n_cls), lambda b, n: (b, 0, 0)),   # one-hot
    ] + [_const_spec(w) for w in weights]                       # resident weights

    out = pl.pallas_call(
        _box_kernel,
        out_shape=jax.ShapeDtypeStruct((bs, 1, OUT_PAD), jnp.float32),
        grid_spec=pltpu.PrefetchScalarGridSpec(
            num_scalar_prefetch=0,
            grid=(bs // tb, n_pts // tn),
            in_specs=in_specs,
            out_specs=pl.BlockSpec((tb, 1, OUT_PAD), lambda b, n: (b, 0, 0)),
            scratch_shapes=[pltpu.VMEM((tb, FEAT_DIM), jnp.float32)],
        ),
        compiler_params=pltpu.CompilerParams(
            dimension_semantics=("parallel", "arbitrary"),
            vmem_limit_bytes=40 * 1024 * 1024,
        ),
    )(pts_t, oh, *weights)

    return out[:, 0, :OUT_DIM]


# ----------------------------------------------------------------------------
# Parameter construction (deterministic) + eval-mode BN folding
# ----------------------------------------------------------------------------
def _bn_stats(key, c):
    kg, kb, km, kv = jax.random.split(key, 4)
    gamma = 1.0 + 0.05 * jax.random.normal(kg, (c,), jnp.float32)
    beta = 0.05 * jax.random.normal(kb, (c,), jnp.float32)
    mean = 0.05 * jax.random.normal(km, (c,), jnp.float32)
    var = 1.0 + 0.05 * jax.random.uniform(kv, (c,), jnp.float32)
    return gamma, beta, mean, var


def init_raw_params(key):
    ks = jax.random.split(key, 20)

    def lin(k, cin, cout, std=0.05):
        # stored as (in, out) so the kernel does x @ W directly
        return std * jax.random.normal(k, (cin, cout), jnp.float32)

    def bias(k, c):
        return 0.01 * jax.random.normal(k, (c,), jnp.float32)

    raw = {}
    raw["w1"], raw["b1"] = lin(ks[0], 3, 128), bias(ks[1], 128)
    raw["w2"], raw["b2"] = lin(ks[2], 128, 128), bias(ks[3], 128)
    raw["w3"], raw["b3"] = lin(ks[4], 128, 256), bias(ks[5], 256)
    raw["w4"], raw["b4"] = lin(ks[6], 256, 512), bias(ks[7], 512)
    raw["bn1"] = _bn_stats(ks[8], 128)
    raw["bn2"] = _bn_stats(ks[9], 128)
    raw["bn3"] = _bn_stats(ks[10], 256)
    raw["bn4"] = _bn_stats(ks[11], 512)

    raw["w5"], raw["b5"] = lin(ks[12], 512 + N_CLASSES, 512), bias(ks[13], 512)
    raw["bn5"] = _bn_stats(ks[14], 512)
    raw["w6"], raw["b6"] = lin(ks[15], 512, 256), bias(ks[16], 256)
    raw["bn6"] = _bn_stats(ks[17], 256)

    raw["w7"], raw["b7"] = lin(ks[18], 256, OUT_DIM), bias(ks[19], OUT_DIM)
    return raw


def fold_params(raw):
    """Fold eval-mode BatchNorm into the preceding weights/bias, split fc1,
    pad fc3 to 128 lanes, and cast inner point-MLP weights to bf16."""

    def fold(w, b, bn):
        gamma, beta, mean, var = bn
        s = gamma * jax.lax.rsqrt(var + BN_EPS)
        return w * s[None, :], ((b - mean) * s + beta)[None, :]

    p = {}
    w1, p["b1"] = fold(raw["w1"], raw["b1"], raw["bn1"])
    w2, p["b2"] = fold(raw["w2"], raw["b2"], raw["bn2"])
    w3, p["b3"] = fold(raw["w3"], raw["b3"], raw["bn3"])
    w4, p["b4"] = fold(raw["w4"], raw["b4"], raw["bn4"])
    p["w1"] = w1                           # K=3 layer stays f32
    p["w2"] = w2.astype(jnp.bfloat16)      # bf16 MXU operands, f32 accumulation
    p["w3"] = w3.astype(jnp.bfloat16)
    p["w4"] = w4.astype(jnp.bfloat16)

    w5, p["b5"] = fold(raw["w5"], raw["b5"], raw["bn5"])
    p["w5g"], p["w5h"] = w5[:512, :], w5[512:, :]
    p["w6"], p["b6"] = fold(raw["w6"], raw["b6"], raw["bn6"])

    # pad fc3 to a lane-dense 128-wide output; zero columns are sliced off
    p["w7"] = jnp.zeros((256, OUT_PAD), jnp.float32).at[:, :OUT_DIM].set(raw["w7"])
    p["b7"] = jnp.zeros((1, OUT_PAD), jnp.float32).at[0, :OUT_DIM].set(raw["b7"])
    return p


# ----------------------------------------------------------------------------
# Pure-JAX f32 reference (same folded math) for a tolerance check
# ----------------------------------------------------------------------------
def reference_forward(pts, one_hot_vec, p):
    x = jnp.transpose(pts, (0, 2, 1))  # (B, N, 3)

    def layer(h, w, b):
        return jnp.maximum(
            jnp.einsum("bnc,cd->bnd", h, w.astype(jnp.float32)) + b, 0.0)

    h = layer(x, p["w1"], p["b1"])
    h = layer(h, p["w2"], p["b2"])
    h = layer(h, p["w3"], p["b3"])
    h = layer(h, p["w4"], p["b4"])
    gf = jnp.max(h, axis=1)                                   # (B, 512)
    z = jnp.maximum(gf @ p["w5g"] + one_hot_vec @ p["w5h"] + p["b5"], 0.0)
    z = jnp.maximum(z @ p["w6"] + p["b6"], 0.0)
    y = z @ p["w7"] + p["b7"]
    return y[:, :OUT_DIM]


if __name__ == "__main__":
    key = jax.random.PRNGKey(0)
    k_pts, k_oh, k_params = jax.random.split(key, 3)

    bs, n_pts = 2, 64
    pts = jax.random.normal(k_pts, (bs, 3, n_pts), jnp.float32)       # (B, 3, N)
    one_hot = jax.nn.one_hot(
        jax.random.randint(k_oh, (bs,), 0, N_CLASSES), N_CLASSES
    ).astype(jnp.float32)                                             # (B, n_classes)

    params = fold_params(init_raw_params(k_params))

    box_pred = pointnet_box_estimation(pts, one_hot, params)
    jax.block_until_ready(box_pred)
    assert box_pred.shape == (bs, OUT_DIM) and box_pred.dtype == jnp.float32

    ref = reference_forward(pts, one_hot, params)
    max_err = float(jnp.max(jnp.abs(box_pred - ref)))
    assert jnp.allclose(box_pred, ref, rtol=3e-2, atol=3e-3), max_err
    print("KERNEL_OK")
</pallas_src>

<mosaic_0001>
module attributes {stable_mosaic.version = 11 : i64} {
  func.func @_box_kernel(%arg0: i32, %arg1: i32, %arg2: memref<1x64x3xf32, #tpu.memory_space<vmem>>, %arg3: memref<1x1x2xf32, #tpu.memory_space<vmem>>, %arg4: memref<3x128xf32, #tpu.memory_space<vmem>>, %arg5: memref<1x128xf32, #tpu.memory_space<vmem>>, %arg6: memref<128x128xbf16, #tpu.memory_space<vmem>>, %arg7: memref<1x128xf32, #tpu.memory_space<vmem>>, %arg8: memref<128x256xbf16, #tpu.memory_space<vmem>>, %arg9: memref<1x256xf32, #tpu.memory_space<vmem>>, %arg10: memref<256x512xbf16, #tpu.memory_space<vmem>>, %arg11: memref<1x512xf32, #tpu.memory_space<vmem>>, %arg12: memref<512x512xf32, #tpu.memory_space<vmem>>, %arg13: memref<2x512xf32, #tpu.memory_space<vmem>>, %arg14: memref<1x512xf32, #tpu.memory_space<vmem>>, %arg15: memref<512x256xf32, #tpu.memory_space<vmem>>, %arg16: memref<1x256xf32, #tpu.memory_space<vmem>>, %arg17: memref<256x128xf32, #tpu.memory_space<vmem>>, %arg18: memref<1x128xf32, #tpu.memory_space<vmem>>, %arg19: memref<1x1x128xf32, #tpu.memory_space<vmem>>, %arg20: memref<1x512xf32, #tpu.memory_space<vmem>>) attributes {dimension_semantics = [#tpu.dimension_semantics<parallel>, #tpu.dimension_semantics<arbitrary>], iteration_bounds = array<i64: 2, 1>, scalar_prefetch = 0 : i64, scratch_operands = 1 : i64, tpu.core_type = #tpu.core_type<tc>, window_params = [{transform_indices = @transform_0, window_bounds = array<i64: 1, 64, 3>}, {transform_indices = @transform_1, window_bounds = array<i64: 1, 1, 2>}, {pipeline_mode = #tpu.pipeline_mode<synchronous>, transform_indices = @transform_2, window_bounds = array<i64: 3, 128>}, {pipeline_mode = #tpu.pipeline_mode<synchronous>, transform_indices = @transform_3, window_bounds = array<i64: 1, 128>}, {pipeline_mode = #tpu.pipeline_mode<synchronous>, transform_indices = @transform_4, window_bounds = array<i64: 128, 128>}, {pipeline_mode = #tpu.pipeline_mode<synchronous>, transform_indices = @transform_5, window_bounds = array<i64: 1, 128>}, {pipeline_mode = #tpu.pipeline_mode<synchronous>, transform_indices = @transform_6, window_bounds = array<i64: 128, 256>}, {pipeline_mode = #tpu.pipeline_mode<synchronous>, transform_indices = @transform_7, window_bounds = array<i64: 1, 256>}, {pipeline_mode = #tpu.pipeline_mode<synchronous>, transform_indices = @transform_8, window_bounds = array<i64: 256, 512>}, {pipeline_mode = #tpu.pipeline_mode<synchronous>, transform_indices = @transform_9, window_bounds = array<i64: 1, 512>}, {pipeline_mode = #tpu.pipeline_mode<synchronous>, transform_indices = @transform_10, window_bounds = array<i64: 512, 512>}, {pipeline_mode = #tpu.pipeline_mode<synchronous>, transform_indices = @transform_11, window_bounds = array<i64: 2, 512>}, {pipeline_mode = #tpu.pipeline_mode<synchronous>, transform_indices = @transform_12, window_bounds = array<i64: 1, 512>}, {pipeline_mode = #tpu.pipeline_mode<synchronous>, transform_indices = @transform_13, window_bounds = array<i64: 512, 256>}, {pipeline_mode = #tpu.pipeline_mode<synchronous>, transform_indices = @transform_14, window_bounds = array<i64: 1, 256>}, {pipeline_mode = #tpu.pipeline_mode<synchronous>, transform_indices = @transform_15, window_bounds = array<i64: 256, 128>}, {pipeline_mode = #tpu.pipeline_mode<synchronous>, transform_indices = @transform_16, window_bounds = array<i64: 1, 128>}, {transform_indices = @transform_17, window_bounds = array<i64: 1, 1, 128>}]} {
    %c0_i32 = arith.constant 0 : i32
    %0 = arith.cmpi eq, %arg1, %c0_i32 : i32
    %1 = arith.extui %0 : i1 to i32
    %c0_i32_0 = arith.constant 0 : i32
    %2 = arith.cmpi ne, %1, %c0_i32_0 : i32
    scf.if %2 {
      %cst_33 = arith.constant 0xFF800000 : f32
      %44 = vector.broadcast %cst_33 : f32 to vector<1x512xf32>
      %c0_34 = arith.constant 0 : index
      %c0_35 = arith.constant 0 : index
      %45 = vector.load %arg20[%c0_34, %c0_35] : memref<1x512xf32, #tpu.memory_space<vmem>>, vector<1x512xf32>
      tpu.vector_store %arg20[%c0_34, %c0_35], %44 {strides = array<i32>} : memref<1x512xf32, #tpu.memory_space<vmem>>, vector<1x512xf32>,
    } else {
    }
    %c0 = arith.constant 0 : index
    %c0_1 = arith.constant 0 : index
    %c0_2 = arith.constant 0 : index
    %3 = vector.load %arg2[%c0, %c0_1, %c0_2] : memref<1x64x3xf32, #tpu.memory_space<vmem>>, vector<1x64x3xf32>
    %4 = vector.shape_cast %3 : vector<1x64x3xf32> to vector<64x3xf32>
    %c0_3 = arith.constant 0 : index
    %c0_4 = arith.constant 0 : index
    %5 = vector.load %arg4[%c0_3, %c0_4] : memref<3x128xf32, #tpu.memory_space<vmem>>, vector<3x128xf32>
    %cst = arith.constant dense<0.000000e+00> : vector<64x128xf32>
    %6 = tpu.matmul %4, %5, %cst {dimension_numbers = #tpu.dot_dimension_numbers<[1], [0], [0], [1], [0, 0, 1, 1], [], []>} : vector<64x3xf32>, vector<3x128xf32>, vector<64x128xf32> -> vector<64x128xf32>
    %c0_5 = arith.constant 0 : index
    %c0_6 = arith.constant 0 : index
    %7 = vector.load %arg5[%c0_5, %c0_6] : memref<1x128xf32, #tpu.memory_space<vmem>>, vector<1x128xf32>
    %8 = vector.broadcast %7 : vector<1x128xf32> to vector<64x128xf32>
    %9 = arith.addf %6, %8 : vector<64x128xf32>
    %cst_7 = arith.constant 0.000000e+00 : f32
    %10 = vector.broadcast %cst_7 : f32 to vector<64x128xf32>
    %11 = arith.maximumf %9, %10 : vector<64x128xf32>
    %12 = arith.truncf %11 : vector<64x128xf32> to vector<64x128xbf16>
    %c0_8 = arith.constant 0 : index
    %c0_9 = arith.constant 0 : index
    %13 = vector.load %arg6[%c0_8, %c0_9] : memref<128x128xbf16, #tpu.memory_space<vmem>>, vector<128x128xbf16>
    %cst_10 = arith.constant dense<0.000000e+00> : vector<64x128xf32>
    %14 = tpu.matmul %12, %13, %cst_10 {dimension_numbers = #tpu.dot_dimension_numbers<[1], [0], [0], [1], [0, 0, 1, 1], [], []>} : vector<64x128xbf16>, vector<128x128xbf16>, vector<64x128xf32> -> vector<64x128xf32>
    %c0_11 = arith.constant 0 : index
    %c0_12 = arith.constant 0 : index
    %15 = vector.load %arg7[%c0_11, %c0_12] : memref<1x128xf32, #tpu.memory_space<vmem>>, vector<1x128xf32>
    %16 = vector.broadcast %15 : vector<1x128xf32> to vector<64x128xf32>
    %17 = arith.addf %14, %16 : vector<64x128xf32>
    %cst_13 = arith.constant 0.000000e+00 : f32
    %18 = vector.broadcast %cst_13 : f32 to vector<64x128xf32>
    %19 = arith.maximumf %17, %18 : vector<64x128xf32>
    %20 = arith.truncf %19 : vector<64x128xf32> to vector<64x128xbf16>
    %c0_14 = arith.constant 0 : index
    %c0_15 = arith.constant 0 : index
    %21 = vector.load %arg8[%c0_14, %c0_15] : memref<128x256xbf16, #tpu.memory_space<vmem>>, vector<128x256xbf16>
    %cst_16 = arith.constant dense<0.000000e+00> : vector<64x256xf32>
    %22 = tpu.matmul %20, %21, %cst_16 {dimension_numbers = #tpu.dot_dimension_numbers<[1], [0], [0], [1], [0, 0, 1, 1], [], []>} : vector<64x128xbf16>, vector<128x256xbf16>, vector<64x256xf32> -> vector<64x256xf32>
    %c0_17 = arith.constant 0 : index
    %c0_18 = arith.constant 0 : index
    %23 = vector.load %arg9[%c0_17, %c0_18] : memref<1x256xf32, #tpu.memory_space<vmem>>, vector<1x256xf32>
    %24 = vector.broadcast %23 : vector<1x256xf32> to vector<64x256xf32>
    %25 = arith.addf %22, %24 : vector<64x256xf32>
    %cst_19 = arith.constant 0.000000e+00 : f32
    %26 = vector.broadcast %cst_19 : f32 to vector<64x256xf32>
    %27 = arith.maximumf %25, %26 : vector<64x256xf32>
    %28 = arith.truncf %27 : vector<64x256xf32> to vector<64x256xbf16>
    %c0_20 = arith.constant 0 : index
    %c0_21 = arith.constant 0 : index
    %29 = vector.load %arg10[%c0_20, %c0_21] : memref<256x512xbf16, #tpu.memory_space<vmem>>, vector<256x512xbf16>
    %cst_22 = arith.constant dense<0.000000e+00> : vector<64x512xf32>
    %30 = tpu.matmul %28, %29, %cst_22 {dimension_numbers = #tpu.dot_dimension_numbers<[1], [0], [0], [1], [0, 0, 1, 1], [], []>} : vector<64x256xbf16>, vector<256x512xbf16>, vector<64x512xf32> -> vector<64x512xf32>
    %c0_23 = arith.constant 0 : index
    %c0_24 = arith.constant 0 : index
    %31 = vector.load %arg11[%c0_23, %c0_24] : memref<1x512xf32, #tpu.memory_space<vmem>>, vector<1x512xf32>
    %32 = vector.broadcast %31 : vector<1x512xf32> to vector<64x512xf32>
    %33 = arith.addf %30, %32 : vector<64x512xf32>
    %cst_25 = arith.constant 0.000000e+00 : f32
    %34 = vector.broadcast %cst_25 : f32 to vector<64x512xf32>
    %35 = arith.maximumf %33, %34 : vector<64x512xf32>
    %36 = vector.shape_cast %35 : vector<64x512xf32> to vector<1x64x512xf32>
    %c0_26 = arith.constant 0 : index
    %c0_27 = arith.constant 0 : index
    %37 = vector.load %arg20[%c0_26, %c0_27] : memref<1x512xf32, #tpu.memory_space<vmem>>, vector<1x512xf32>
    %cst_28 = arith.constant dense<0xFF800000> : vector<1x512xf32>
    %38 = vector.multi_reduction <maximumf>, %36, %cst_28 [1] : vector<1x64x512xf32> to vector<1x512xf32>
    %39 = arith.maximumf %37, %38 : vector<1x512xf32>
    %c0_29 = arith.constant 0 : index
    %c0_30 = arith.constant 0 : index
    %40 = vector.load %arg20[%c0_29, %c0_30] : memref<1x512xf32, #tpu.memory_space<vmem>>, vector<1x512xf32>
    tpu.vector_store %arg20[%c0_29, %c0_30], %39 {strides = array<i32>} : memref<1x512xf32, #tpu.memory_space<vmem>>, vector<1x512xf32>,
    %c0_i32_31 = arith.constant 0 : i32
    %41 = arith.cmpi eq, %arg1, %c0_i32_31 : i32
    %42 = arith.extui %41 : i1 to i32
    %c0_i32_32 = arith.constant 0 : i32
    %43 = arith.cmpi ne, %42, %c0_i32_32 : i32
    scf.if %43 {
      %c0_33 = arith.constant 0 : index
      %c0_34 = arith.constant 0 : index
      %44 = vector.load %arg20[%c0_33, %c0_34] : memref<1x512xf32, #tpu.memory_space<vmem>>, vector<1x512xf32>
      %c0_35 = arith.constant 0 : index
      %c0_36 = arith.constant 0 : index
      %c0_37 = arith.constant 0 : index
      %45 = vector.load %arg3[%c0_35, %c0_36, %c0_37] : memref<1x1x2xf32, #tpu.memory_space<vmem>>, vector<1x1x2xf32>
      %46 = vector.shape_cast %45 : vector<1x1x2xf32> to vector<1x2xf32>
      %c0_38 = arith.constant 0 : index
      %c0_39 = arith.constant 0 : index
      %47 = vector.load %arg12[%c0_38, %c0_39] : memref<512x512xf32, #tpu.memory_space<vmem>>, vector<512x512xf32>
      %cst_40 = arith.constant dense<0.000000e+00> : vector<1x512xf32>
      %48 = tpu.matmul %44, %47, %cst_40 {dimension_numbers = #tpu.dot_dimension_numbers<[1], [0], [0], [1], [0, 0, 1, 1], [], []>} : vector<1x512xf32>, vector<512x512xf32>, vector<1x512xf32> -> vector<1x512xf32>
      %c0_41 = arith.constant 0 : index
      %c0_42 = arith.constant 0 : index
      %49 = vector.load %arg13[%c0_41, %c0_42] : memref<2x512xf32, #tpu.memory_space<vmem>>, vector<2x512xf32>
      %cst_43 = arith.constant dense<0.000000e+00> : vector<1x512xf32>
      %50 = tpu.matmul %46, %49, %cst_43 {dimension_numbers = #tpu.dot_dimension_numbers<[1], [0], [0], [1], [0, 0, 1, 1], [], []>} : vector<1x2xf32>, vector<2x512xf32>, vector<1x512xf32> -> vector<1x512xf32>
      %51 = arith.addf %48, %50 : vector<1x512xf32>
      %c0_44 = arith.constant 0 : index
      %c0_45 = arith.constant 0 : index
      %52 = vector.load %arg14[%c0_44, %c0_45] : memref<1x512xf32, #tpu.memory_space<vmem>>, vector<1x512xf32>
      %53 = arith.addf %51, %52 : vector<1x512xf32>
      %cst_46 = arith.constant 0.000000e+00 : f32
      %54 = vector.broadcast %cst_46 : f32 to vector<1x512xf32>
      %55 = arith.maximumf %53, %54 : vector<1x512xf32>
      %c0_47 = arith.constant 0 : index
      %c0_48 = arith.constant 0 : index
      %56 = vector.load %arg15[%c0_47, %c0_48] : memref<512x256xf32, #tpu.memory_space<vmem>>, vector<512x256xf32>
      %cst_49 = arith.constant dense<0.000000e+00> : vector<1x256xf32>
      %57 = tpu.matmul %55, %56, %cst_49 {dimension_numbers = #tpu.dot_dimension_numbers<[1], [0], [0], [1], [0, 0, 1, 1], [], []>} : vector<1x512xf32>, vector<512x256xf32>, vector<1x256xf32> -> vector<1x256xf32>
      %c0_50 = arith.constant 0 : index
      %c0_51 = arith.constant 0 : index
      %58 = vector.load %arg16[%c0_50, %c0_51] : memref<1x256xf32, #tpu.memory_space<vmem>>, vector<1x256xf32>
      %59 = arith.addf %57, %58 : vector<1x256xf32>
      %cst_52 = arith.constant 0.000000e+00 : f32
      %60 = vector.broadcast %cst_52 : f32 to vector<1x256xf32>
      %61 = arith.maximumf %59, %60 : vector<1x256xf32>
      %c0_53 = arith.constant 0 : index
      %c0_54 = arith.constant 0 : index
      %62 = vector.load %arg17[%c0_53, %c0_54] : memref<256x128xf32, #tpu.memory_space<vmem>>, vector<256x128xf32>
      %cst_55 = arith.constant dense<0.000000e+00> : vector<1x128xf32>
      %63 = tpu.matmul %61, %62, %cst_55 {dimension_numbers = #tpu.dot_dimension_numbers<[1], [0], [0], [1], [0, 0, 1, 1], [], []>} : vector<1x256xf32>, vector<256x128xf32>, vector<1x128xf32> -> vector<1x128xf32>
      %c0_56 = arith.constant 0 : index
      %c0_57 = arith.constant 0 : index
      %64 = vector.load %arg18[%c0_56, %c0_57] : memref<1x128xf32, #tpu.memory_space<vmem>>, vector<1x128xf32>
      %65 = arith.addf %63, %64 : vector<1x128xf32>
      %66 = vector.shape_cast %65 : vector<1x128xf32> to vector<1x1x128xf32>
      %c0_58 = arith.constant 0 : index
      %c0_59 = arith.constant 0 : index
      %c0_60 = arith.constant 0 : index
      %67 = vector.load %arg19[%c0_58, %c0_59, %c0_60] : memref<1x1x128xf32, #tpu.memory_space<vmem>>, vector<1x1x128xf32>
      tpu.vector_store %arg19[%c0_58, %c0_59, %c0_60], %66 {strides = array<i32>} : memref<1x1x128xf32, #tpu.memory_space<vmem>>, vector<1x1x128xf32>,
    } else {
    }
    return
  }
  func.func @transform_0(%arg0: i32, %arg1: i32) -> (i32, i32, i32) {
    %c0_i32 = arith.constant 0 : i32
    %c0_i32_0 = arith.constant 0 : i32
    return %arg0, %arg1, %c0_i32 : i32, i32, i32
  }
  func.func @transform_1(%arg0: i32, %arg1: i32) -> (i32, i32, i32) {
    %c0_i32 = arith.constant 0 : i32
    %c0_i32_0 = arith.constant 0 : i32
    %c0_i32_1 = arith.constant 0 : i32
    return %arg0, %c0_i32, %c0_i32_0 : i32, i32, i32
  }
  func.func @transform_2(%arg0: i32, %arg1: i32) -> (i32, i32) {
    %c0_i32 = arith.constant 0 : i32
    %c0_i32_0 = arith.constant 0 : i32
    %c0_i32_1 = arith.constant 0 : i32
    return %c0_i32, %c0_i32_0 : i32, i32
  }
  func.func @transform_3(%arg0: i32, %arg1: i32) -> (i32, i32) {
    %c0_i32 = arith.constant 0 : i32
    %c0_i32_0 = arith.constant 0 : i32
    %c0_i32_1 = arith.constant 0 : i32
    return %c0_i32, %c0_i32_0 : i32, i32
  }
  func.func @transform_4(%arg0: i32, %arg1: i32) -> (i32, i32) {
    %c0_i32 = arith.constant 0 : i32
    %c0_i32_0 = arith.constant 0 : i32
    %c0_i32_1 = arith.constant 0 : i32
    return %c0_i32, %c0_i32_0 : i32, i32
  }
  func.func @transform_5(%arg0: i32, %arg1: i32) -> (i32, i32) {
    %c0_i32 = arith.constant 0 : i32
    %c0_i32_0 = arith.constant 0 : i32
    %c0_i32_1 = arith.constant 0 : i32
    return %c0_i32, %c0_i32_0 : i32, i32
  }
  func.func @transform_6(%arg0: i32, %arg1: i32) -> (i32, i32) {
    %c0_i32 = arith.constant 0 : i32
    %c0_i32_0 = arith.constant 0 : i32
    %c0_i32_1 = arith.constant 0 : i32
    return %c0_i32, %c0_i32_0 : i32, i32
  }
  func.func @transform_7(%arg0: i32, %arg1: i32) -> (i32, i32) {
    %c0_i32 = arith.constant 0 : i32
    %c0_i32_0 = arith.constant 0 : i32
    %c0_i32_1 = arith.constant 0 : i32
    return %c0_i32, %c0_i32_0 : i32, i32
  }
  func.func @transform_8(%arg0: i32, %arg1: i32) -> (i32, i32) {
    %c0_i32 = arith.constant 0 : i32
    %c0_i32_0 = arith.constant 0 : i32
    %c0_i32_1 = arith.constant 0 : i32
    return %c0_i32, %c0_i32_0 : i32, i32
  }
  func.func @transform_9(%arg0: i32, %arg1: i32) -> (i32, i32) {
    %c0_i32 = arith.constant 0 : i32
    %c0_i32_0 = arith.constant 0 : i32
    %c0_i32_1 = arith.constant 0 : i32
    return %c0_i32, %c0_i32_0 : i32, i32
  }
  func.func @transform_10(%arg0: i32, %arg1: i32) -> (i32, i32) {
    %c0_i32 = arith.constant 0 : i32
    %c0_i32_0 = arith.constant 0 : i32
    %c0_i32_1 = arith.constant 0 : i32
    return %c0_i32, %c0_i32_0 : i32, i32
  }
  func.func @transform_11(%arg0: i32, %arg1: i32) -> (i32, i32) {
    %c0_i32 = arith.constant 0 : i32
    %c0_i32_0 = arith.constant 0 : i32
    %c0_i32_1 = arith.constant 0 : i32
    return %c0_i32, %c0_i32_0 : i32, i32
  }
  func.func @transform_12(%arg0: i32, %arg1: i32) -> (i32, i32) {
    %c0_i32 = arith.constant 0 : i32
    %c0_i32_0 = arith.constant 0 : i32
    %c0_i32_1 = arith.constant 0 : i32
    return %c0_i32, %c0_i32_0 : i32, i32
  }
  func.func @transform_13(%arg0: i32, %arg1: i32) -> (i32, i32) {
    %c0_i32 = arith.constant 0 : i32
    %c0_i32_0 = arith.constant 0 : i32
    %c0_i32_1 = arith.constant 0 : i32
    return %c0_i32, %c0_i32_0 : i32, i32
  }
  func.func @transform_14(%arg0: i32, %arg1: i32) -> (i32, i32) {
    %c0_i32 = arith.constant 0 : i32
    %c0_i32_0 = arith.constant 0 : i32
    %c0_i32_1 = arith.constant 0 : i32
    return %c0_i32, %c0_i32_0 : i32, i32
  }
  func.func @transform_15(%arg0: i32, %arg1: i32) -> (i32, i32) {
    %c0_i32 = arith.constant 0 : i32
    %c0_i32_0 = arith.constant 0 : i32
    %c0_i32_1 = arith.constant 0 : i32
    return %c0_i32, %c0_i32_0 : i32, i32
  }
  func.func @transform_16(%arg0: i32, %arg1: i32) -> (i32, i32) {
    %c0_i32 = arith.constant 0 : i32
    %c0_i32_0 = arith.constant 0 : i32
    %c0_i32_1 = arith.constant 0 : i32
    return %c0_i32, %c0_i32_0 : i32, i32
  }
  func.func @transform_17(%arg0: i32, %arg1: i32) -> (i32, i32, i32) {
    %c0_i32 = arith.constant 0 : i32
    %c0_i32_0 = arith.constant 0 : i32
    %c0_i32_1 = arith.constant 0 : i32
    return %arg0, %c0_i32, %c0_i32_0 : i32, i32, i32
  }
}

</mosaic_0001>

<llo_original>
// kernel: tpu_custom_call.1
$region0: #{tpu_custom_call.1}
  #allocation0 [shape = 'u32[]', space=smem, size = 0x4, offset = 0x4, fixed_abs, tag = 'smem constant byte address 0x4 - core index']
  #allocation1 [shape = 'u32[144,128]{1,0:T(1,128)}', space=vmem, size = 0x12000, scoped, tag = 'internal scratch']
  #allocation2 [shape = 'f32[1,512]{1,0:T(1,128)}', space=vmem, size = 0x800, scoped, tag = 'scratch operand']
  %s0 = inlined_call_operand.vmem [shape: f32[2,64,3], index: 0, kind: input, shape index: {}]
  %s1 = inlined_call_operand.vmem [shape: f32[2,1,2], index: 1, kind: input, shape index: {}]
  %s2 = inlined_call_operand.vmem [shape: f32[3,128], index: 2, kind: input, shape index: {}]
  %s3 = inlined_call_operand.vmem [shape: f32[1,128], index: 3, kind: input, shape index: {}]
  %s4 = inlined_call_operand.hbm [shape: bf16[128,128], index: 4, kind: input, shape index: {}]
  %s5 = inlined_call_operand.vmem [shape: f32[1,128], index: 5, kind: input, shape index: {}]
  %s6 = inlined_call_operand.vmem [shape: bf16[128,256], index: 6, kind: input, shape index: {}]
  %s7 = inlined_call_operand.vmem [shape: f32[1,256], index: 7, kind: input, shape index: {}]
  %s8 = inlined_call_operand.hbm [shape: bf16[256,512], index: 8, kind: input, shape index: {}]
  %s9 = inlined_call_operand.vmem [shape: f32[1,512], index: 9, kind: input, shape index: {}]
  %s10 = inlined_call_operand.hbm [shape: f32[512,512], index: 10, kind: input, shape index: {}]
  %s11 = inlined_call_operand.vmem [shape: f32[2,512], index: 11, kind: input, shape index: {}]
  %s12 = inlined_call_operand.vmem [shape: f32[1,512], index: 12, kind: input, shape index: {}]
  %s13 = inlined_call_operand.hbm [shape: f32[512,256], index: 13, kind: input, shape index: {}]
  %s14 = inlined_call_operand.vmem [shape: f32[1,256], index: 14, kind: input, shape index: {}]
  %s15 = inlined_call_operand.hbm [shape: f32[256,128], index: 15, kind: input, shape index: {}]
  %s16 = inlined_call_operand.vmem [shape: f32[1,128], index: 16, kind: input, shape index: {}]
  %s17 = inlined_call_operand.hbm [shape: f32[2,1,128], index: 17, kind: output, shape index: {}]
  %s18 = sld [smem:[#allocation0]]
  $region129: #{tpu_custom_call.1} parent=0
    _
  %s20 = ssub.s32 1, %s18
  %s21 = scalar_select 0, %s20, %s18
  $region1: #{tpu_custom_call.1} parent=0
    #allocation3 [shape = 'u8[32768]{0}', space=vmem, size = 0x8000, scoped, tag = 'input window, operand 4, single buffered']
    #allocation4 [shape = 's32[2]{0}', space=sflag, size = 0x8, scoped, tag = 'scoped memory for tpu_custom_call.1']
    #allocation5 [shape = 's32[2]{0}', space=sflag, size = 0x8, scoped, tag = 'scoped memory for tpu_custom_call.1']
    #allocation6 [shape = 'u8[262144]{0}', space=vmem, size = 0x40000, scoped, tag = 'input window, operand 8, single buffered']
    #allocation7 [shape = 's32[1]{0}', space=sflag, size = 0x4, scoped, tag = 'scoped memory for tpu_custom_call.1']
    #allocation8 [shape = 'u8[1048576]{0}', space=vmem, size = 0x100000, scoped, tag = 'input window, operand 10, single buffered']
    #allocation9 [shape = 'u8[524288]{0}', space=vmem, size = 0x80000, scoped, tag = 'input window, operand 13, single buffered']
    #allocation10 [shape = 's32[1]{0}', space=sflag, size = 0x4, scoped, tag = 'scoped memory for tpu_custom_call.1']
    #allocation11 [shape = 'u8[131072]{0}', space=vmem, size = 0x20000, scoped, tag = 'input window, operand 15, single buffered']
    #allocation12 [shape = 'u8[1024]{0}', space=vmem, size = 0x400, scoped, tag = 'output window, operand 0']
    %22 = vsyncpa [#allocation4], 0
    %23 = vsyncpa [#allocation7], 0
    %24 = vsyncpa [#allocation10], 0
    %25 = vsyncpa [#allocation5], 0
    %s26 = scalar_lea.sflag [#allocation5], 1
    %27 = vsyncpa %s26, 0
    loop: start=0, step=1, limit=4
    $region2: #{tpu_custom_call.1} parent=1 // loop_pre_header
      _
    $region3: #{tpu_custom_call.1} parent=1 // loop_header
      %s29 = sphi 0, %s33
      %p30 = scmp.ge.s32.totalorder %s29, 4
      %s36 = sphi 0, %s48
      %s37 = sphi 0, %s44
      %s38 = sphi 0, %s36
      %s39 = sphi 0, %s37
      %s40 = sphi 0, %s38
      %s41 = sphi 0, %s39
      %s53 = sphi 0, %s55
      %s56 = sphi 0, %s53
      %s57 = sphi 0, %s56
      %s73 = sphi 0, %s57
      %s79 = sphi 0, %s81
      %s82 = sphi 0, %s79
      %s83 = sphi 0, %s82
      %s99 = sphi 0, %s83
      %s103 = sphi 0, %s103
      %s105 = sphi 0, %s103
      %s106 = sphi 0, %s105
      %s120 = sphi 0, %s106
      %s124 = sphi 0, %s124
      %s126 = sphi 0, %s124
      %s127 = sphi 0, %s126
      %s141 = sphi 0, %s127
      %s145 = sphi 0, %s145
      %s147 = sphi 0, %s145
      %s148 = sphi 0, %s147
      %s162 = sphi 0, %s148
      %s166 = sphi 0, %s166
      %s168 = sphi 0, %s166
      %s169 = sphi 0, %s168
      %s183 = sphi 0, %s169
      %s187 = sphi 0, %s187
      %s189 = sphi 0, %s187
      %s190 = sphi 0, %s189
      %s204 = sphi 0, %s190
      %s208 = sphi 0, %s208
      %s210 = sphi 0, %s208
      %s211 = sphi 0, %s210
      %s225 = sphi 0, %s211
      %s229 = sphi 0, %s229
      %s231 = sphi 0, %s229
      %s232 = sphi 0, %s231
      %s246 = sphi 0, %s232
      %s250 = sphi 0, %s250
      %s252 = sphi 0, %s250
      %s253 = sphi 0, %s252
      %s267 = sphi 0, %s253
      %s271 = sphi 0, %s271
      %s273 = sphi 0, %s271
      %s274 = sphi 0, %s273
      %s288 = sphi 0, %s274
      %s292 = sphi 0, %s292
      %s294 = sphi 0, %s292
      %s295 = sphi 0, %s294
      %s309 = sphi 0, %s295
      %s313 = sphi 0, %s313
      %s315 = sphi 0, %s313
      %s316 = sphi 0, %s315
      %s330 = sphi 0, %s316
      %s334 = sphi 0, %s334
      %s336 = sphi 0, %s334
      %s337 = sphi 0, %s336
      %s351 = sphi 0, %s337
      %s355 = sphi 0, %s355
      %s357 = sphi 0, %s355
      %s358 = sphi 0, %s357
      %s372 = sphi 0, %s358
      %s376 = sphi 0, %s376
      %s378 = sphi 0, %s376
      %s379 = sphi 0, %s378
      %s393 = sphi 0, %s379
      %s397 = sphi 0, %s397
      %s399 = sphi 0, %s397
      %s400 = sphi 0, %s399
      %s414 = sphi 0, %s400
      %s420 = sphi 0, %s422
      %s423 = sphi 0, %s420
      %s424 = sphi 0, %s423
      %s440 = sphi 0, %s424
    $region4: #{tpu_custom_call.1} parent=1 // loop_header_branch
      %32 = sbr.rel (%p30) target = $region8
    $region5: #{tpu_custom_call.1} parent=1 // loop_body
      %s34 = ssub.s32 %s29, 1
      %s35 = ssub.s32 %s29, 2
      %s42 = sadd.s32 1, %s37
      %p43 = scmp.ge.s32.totalorder %s42, 1
      %s44 = scalar_select %p43, 0, %s42
      %s45 = sadd.s32 1, %s36
      %s46 = scalar_select %p43, %s45, %s36
      %p47 = scmp.ge.s32.totalorder %s46, 2
      %s48 = scalar_select %p47, 0, %s46
      %s49 = ssub.s32 %s36, %s48
      %s50 = ssub.s32 %s37, %s44
      %s51 = sor.u32 %s49, %s50
      %p52 = scmp.eq.s32.totalorder %s51, 0
      %s54 = sadd.s32 %s53, 1
      %s55 = scalar_select %p52, %s53, %s54
      %p58 = pneg %p52
      %p59 = scmp.eq.s32.totalorder %s29, 1
      %p60 = por %p58, %p59
      %p61 = scmp.ne.s32.totalorder %s53, %s56
      %p62 = scmp.eq.s32.totalorder %s29, 0
      %p63 = por %p61, %p62
      %p64 = scmp.ne.s32.totalorder %s53, %s56
      %p65 = scmp.eq.s32.totalorder %s34, 1
      %p66 = por %p64, %p65
      %p67 = scmp.ne.s32.totalorder %s56, %s57
      %p68 = scmp.eq.s32.totalorder %s34, 0
      %p69 = por %p67, %p68
      %p70 = scmp.ne.s32.totalorder %s56, %s57
      %p71 = scmp.eq.s32.totalorder %s35, 1
      %p72 = por %p70, %p71
      %p74 = scmp.ne.s32.totalorder %s57, %s73
      %p75 = scmp.eq.s32.totalorder %s35, 0
      %p76 = por %p74, %p75
      %s77 = ssub.s32 %s36, %s48
      %p78 = scmp.eq.s32.totalorder %s77, 0
      %s80 = sadd.s32 %s79, 1
      %s81 = scalar_select %p78, %s79, %s80
      %p84 = pneg %p78
      %p85 = scmp.eq.s32.totalorder %s29, 1
      %p86 = por %p84, %p85
      %p87 = scmp.ne.s32.totalorder %s79, %s82
      %p88 = scmp.eq.s32.totalorder %s29, 0
      %p89 = por %p87, %p88
      %p90 = scmp.ne.s32.totalorder %s79, %s82
      %p91 = scmp.eq.s32.totalorder %s34, 1
      %p92 = por %p90, %p91
      %p93 = scmp.ne.s32.totalorder %s82, %s83
      %p94 = scmp.eq.s32.totalorder %s34, 0
      %p95 = por %p93, %p94
      %p96 = scmp.ne.s32.totalorder %s82, %s83
      %p97 = scmp.eq.s32.totalorder %s35, 1
      %p98 = por %p96, %p97
      %p100 = scmp.ne.s32.totalorder %s83, %s99
      %p101 = scmp.eq.s32.totalorder %s35, 0
      %p102 = por %p100, %p101
      %s104 = sadd.s32 %s103, 1
      %p107 = scmp.eq.s32.totalorder %s29, 1
      %p108 = scmp.ne.s32.totalorder %s103, %s105
      %p109 = scmp.eq.s32.totalorder %s29, 0
      %p110 = por %p108, %p109
      %p111 = scmp.ne.s32.totalorder %s103, %s105
      %p112 = scmp.eq.s32.totalorder %s34, 1
      %p113 = por %p111, %p112
      %p114 = scmp.ne.s32.totalorder %s105, %s106
      %p115 = scmp.eq.s32.totalorder %s34, 0
      %p116 = por %p114, %p115
      %p117 = scmp.ne.s32.totalorder %s105, %s106
      %p118 = scmp.eq.s32.totalorder %s35, 1
      %p119 = por %p117, %p118
      %p121 = scmp.ne.s32.totalorder %s106, %s120
      %p122 = scmp.eq.s32.totalorder %s35, 0
      %p123 = por %p121, %p122
      %s125 = sadd.s32 %s124, 1
      %p128 = scmp.eq.s32.totalorder %s29, 1
      %p129 = scmp.ne.s32.totalorder %s124, %s126
      %p130 = scmp.eq.s32.totalorder %s29, 0
      %p131 = por %p129, %p130
      %p132 = scmp.ne.s32.totalorder %s124, %s126
      %p133 = scmp.eq.s32.totalorder %s34, 1
      %p134 = por %p132, %p133
      %p135 = scmp.ne.s32.totalorder %s126, %s127
      %p136 = scmp.eq.s32.totalorder %s34, 0
      %p137 = por %p135, %p136
      %p138 = scmp.ne.s32.totalorder %s126, %s127
      %p139 = scmp.eq.s32.totalorder %s35, 1
      %p140 = por %p138, %p139
      %p142 = scmp.ne.s32.totalorder %s127, %s141
      %p143 = scmp.eq.s32.totalorder %s35, 0
      %p144 = por %p142, %p143
      %s146 = sadd.s32 %s145, 1
      %p149 = scmp.eq.s32.totalorder %s29, 1
      %p150 = scmp.ne.s32.totalorder %s145, %s147
      %p151 = scmp.eq.s32.totalorder %s29, 0
      %p152 = por %p150, %p151
      %p153 = scmp.ne.s32.totalorder %s145, %s147
      %p154 = scmp.eq.s32.totalorder %s34, 1
      %p155 = por %p153, %p154
      %p156 = scmp.ne.s32.totalorder %s147, %s148
      %p157 = scmp.eq.s32.totalorder %s34, 0
      %p158 = por %p156, %p157
      %p159 = scmp.ne.s32.totalorder %s147, %s148
      %p160 = scmp.eq.s32.totalorder %s35, 1
      %p161 = por %p159, %p160
      %p163 = scmp.ne.s32.totalorder %s148, %s162
      %p164 = scmp.eq.s32.totalorder %s35, 0
      %p165 = por %p163, %p164
      %s167 = sadd.s32 %s166, 1
      %p170 = scmp.eq.s32.totalorder %s29, 1
      %p171 = scmp.ne.s32.totalorder %s166, %s168
      %p172 = scmp.eq.s32.totalorder %s29, 0
      %p173 = por %p171, %p172
      %p174 = scmp.ne.s32.totalorder %s166, %s168
      %p175 = scmp.eq.s32.totalorder %s34, 1
      %p176 = por %p174, %p175
      %p177 = scmp.ne.s32.totalorder %s168, %s169
      %p178 = scmp.eq.s32.totalorder %s34, 0
      %p179 = por %p177, %p178
      %p180 = scmp.ne.s32.totalorder %s168, %s169
      %p181 = scmp.eq.s32.totalorder %s35, 1
      %p182 = por %p180, %p181
      %p184 = scmp.ne.s32.totalorder %s169, %s183
      %p185 = scmp.eq.s32.totalorder %s35, 0
      %p186 = por %p184, %p185
      %s188 = sadd.s32 %s187, 1
      %p191 = scmp.eq.s32.totalorder %s29, 1
      %p192 = scmp.ne.s32.totalorder %s187, %s189
      %p193 = scmp.eq.s32.totalorder %s29, 0
      %p194 = por %p192, %p193
      %p195 = scmp.ne.s32.totalorder %s187, %s189
      %p196 = scmp.eq.s32.totalorder %s34, 1
      %p197 = por %p195, %p196
      %p198 = scmp.ne.s32.totalorder %s189, %s190
      %p199 = scmp.eq.s32.totalorder %s34, 0
      %p200 = por %p198, %p199
      %p201 = scmp.ne.s32.totalorder %s189, %s190
      %p202 = scmp.eq.s32.totalorder %s35, 1
      %p203 = por %p201, %p202
      %p205 = scmp.ne.s32.totalorder %s190, %s204
      %p206 = scmp.eq.s32.totalorder %s35, 0
      %p207 = por %p205, %p206
      %s209 = sadd.s32 %s208, 1
      %p212 = scmp.eq.s32.totalorder %s29, 1
      %p213 = scmp.ne.s32.totalorder %s208, %s210
      %p214 = scmp.eq.s32.totalorder %s29, 0
      %p215 = por %p213, %p214
      %p216 = scmp.ne.s32.totalorder %s208, %s210
      %p217 = scmp.eq.s32.totalorder %s34, 1
      %p218 = por %p216, %p217
      %p219 = scmp.ne.s32.totalorder %s210, %s211
      %p220 = scmp.eq.s32.totalorder %s34, 0
      %p221 = por %p219, %p220
      %p222 = scmp.ne.s32.totalorder %s210, %s211
      %p223 = scmp.eq.s32.totalorder %s35, 1
      %p224 = por %p222, %p223
      %p226 = scmp.ne.s32.totalorder %s211, %s225
      %p227 = scmp.eq.s32.totalorder %s35, 0
      %p228 = por %p226, %p227
      %s230 = sadd.s32 %s229, 1
      %p233 = scmp.eq.s32.totalorder %s29, 1
      %p234 = scmp.ne.s32.totalorder %s229, %s231
      %p235 = scmp.eq.s32.totalorder %s29, 0
      %p236 = por %p234, %p235
      %p237 = scmp.ne.s32.totalorder %s229, %s231
      %p238 = scmp.eq.s32.totalorder %s34, 1
      %p239 = por %p237, %p238
      %p240 = scmp.ne.s32.totalorder %s231, %s232
      %p241 = scmp.eq.s32.totalorder %s34, 0
      %p242 = por %p240, %p241
      %p243 = scmp.ne.s32.totalorder %s231, %s232
      %p244 = scmp.eq.s32.totalorder %s35, 1
      %p245 = por %p243, %p244
      %p247 = scmp.ne.s32.totalorder %s232, %s246
      %p248 = scmp.eq.s32.totalorder %s35, 0
      %p249 = por %p247, %p248
      %s251 = sadd.s32 %s250, 1
      %p254 = scmp.eq.s32.totalorder %s29, 1
      %p255 = scmp.ne.s32.totalorder %s250, %s252
      %p256 = scmp.eq.s32.totalorder %s29, 0
      %p257 = por %p255, %p256
      %p258 = scmp.ne.s32.totalorder %s250, %s252
      %p259 = scmp.eq.s32.totalorder %s34, 1
      %p260 = por %p258, %p259
      %p261 = scmp.ne.s32.totalorder %s252, %s253
      %p262 = scmp.eq.s32.totalorder %s34, 0
      %p263 = por %p261, %p262
      %p264 = scmp.ne.s32.totalorder %s252, %s253
      %p265 = scmp.eq.s32.totalorder %s35, 1
      %p266 = por %p264, %p265
      %p268 = scmp.ne.s32.totalorder %s253, %s267
      %p269 = scmp.eq.s32.totalorder %s35, 0
      %p270 = por %p268, %p269
      %s272 = sadd.s32 %s271, 1
      %p275 = scmp.eq.s32.totalorder %s29, 1
      %p276 = scmp.ne.s32.totalorder %s271, %s273
      %p277 = scmp.eq.s32.totalorder %s29, 0
      %p278 = por %p276, %p277
      %p279 = scmp.ne.s32.totalorder %s271, %s273
      %p280 = scmp.eq.s32.totalorder %s34, 1
      %p281 = por %p279, %p280
      %p282 = scmp.ne.s32.totalorder %s273, %s274
      %p283 = scmp.eq.s32.totalorder %s34, 0
      %p284 = por %p282, %p283
      %p285 = scmp.ne.s32.totalorder %s273, %s274
      %p286 = scmp.eq.s32.totalorder %s35, 1
      %p287 = por %p285, %p286
      %p289 = scmp.ne.s32.totalorder %s274, %s288
      %p290 = scmp.eq.s32.totalorder %s35, 0
      %p291 = por %p289, %p290
      %s293 = sadd.s32 %s292, 1
      %p296 = scmp.eq.s32.totalorder %s29, 1
      %p297 = scmp.ne.s32.totalorder %s292, %s294
      %p298 = scmp.eq.s32.totalorder %s29, 0
      %p299 = por %p297, %p298
      %p300 = scmp.ne.s32.totalorder %s292, %s294
      %p301 = scmp.eq.s32.totalorder %s34, 1
      %p302 = por %p300, %p301
      %p303 = scmp.ne.s32.totalorder %s294, %s295
      %p304 = scmp.eq.s32.totalorder %s34, 0
      %p305 = por %p303, %p304
      %p306 = scmp.ne.s32.totalorder %s294, %s295
      %p307 = scmp.eq.s32.totalorder %s35, 1
      %p308 = por %p306, %p307
      %p310 = scmp.ne.s32.totalorder %s295, %s309
      %p311 = scmp.eq.s32.totalorder %s35, 0
      %p312 = por %p310, %p311
      %s314 = sadd.s32 %s313, 1
      %p317 = scmp.eq.s32.totalorder %s29, 1
      %p318 = scmp.ne.s32.totalorder %s313, %s315
      %p319 = scmp.eq.s32.totalorder %s29, 0
      %p320 = por %p318, %p319
      %p321 = scmp.ne.s32.totalorder %s313, %s315
      %p322 = scmp.eq.s32.totalorder %s34, 1
      %p323 = por %p321, %p322
      %p324 = scmp.ne.s32.totalorder %s315, %s316
      %p325 = scmp.eq.s32.totalorder %s34, 0
      %p326 = por %p324, %p325
      %p327 = scmp.ne.s32.totalorder %s315, %s316
      %p328 = scmp.eq.s32.totalorder %s35, 1
      %p329 = por %p327, %p328
      %p331 = scmp.ne.s32.totalorder %s316, %s330
      %p332 = scmp.eq.s32.totalorder %s35, 0
      %p333 = por %p331, %p332
      %s335 = sadd.s32 %s334, 1
      %p338 = scmp.eq.s32.totalorder %s29, 1
      %p339 = scmp.ne.s32.totalorder %s334, %s336
      %p340 = scmp.eq.s32.totalorder %s29, 0
      %p341 = por %p339, %p340
      %p342 = scmp.ne.s32.totalorder %s334, %s336
      %p343 = scmp.eq.s32.totalorder %s34, 1
      %p344 = por %p342, %p343
      %p345 = scmp.ne.s32.totalorder %s336, %s337
      %p346 = scmp.eq.s32.totalorder %s34, 0
      %p347 = por %p345, %p346
      %p348 = scmp.ne.s32.totalorder %s336, %s337
      %p349 = scmp.eq.s32.totalorder %s35, 1
      %p350 = por %p348, %p349
      %p352 = scmp.ne.s32.totalorder %s337, %s351
      %p353 = scmp.eq.s32.totalorder %s35, 0
      %p354 = por %p352, %p353
      %s356 = sadd.s32 %s355, 1
      %p359 = scmp.eq.s32.totalorder %s29, 1
      %p360 = scmp.ne.s32.totalorder %s355, %s357
      %p361 = scmp.eq.s32.totalorder %s29, 0
      %p362 = por %p360, %p361
      %p363 = scmp.ne.s32.totalorder %s355, %s357
      %p364 = scmp.eq.s32.totalorder %s34, 1
      %p365 = por %p363, %p364
      %p366 = scmp.ne.s32.totalorder %s357, %s358
      %p367 = scmp.eq.s32.totalorder %s34, 0
      %p368 = por %p366, %p367
      %p369 = scmp.ne.s32.totalorder %s357, %s358
      %p370 = scmp.eq.s32.totalorder %s35, 1
      %p371 = por %p369, %p370
      %p373 = scmp.ne.s32.totalorder %s358, %s372
      %p374 = scmp.eq.s32.totalorder %s35, 0
      %p375 = por %p373, %p374
      %s377 = sadd.s32 %s376, 1
      %p380 = scmp.eq.s32.totalorder %s29, 1
      %p381 = scmp.ne.s32.totalorder %s376, %s378
      %p382 = scmp.eq.s32.totalorder %s29, 0
      %p383 = por %p381, %p382
      %p384 = scmp.ne.s32.totalorder %s376, %s378
      %p385 = scmp.eq.s32.totalorder %s34, 1
      %p386 = por %p384, %p385
      %p387 = scmp.ne.s32.totalorder %s378, %s379
      %p388 = scmp.eq.s32.totalorder %s34, 0
      %p389 = por %p387, %p388
      %p390 = scmp.ne.s32.totalorder %s378, %s379
      %p391 = scmp.eq.s32.totalorder %s35, 1
      %p392 = por %p390, %p391
      %p394 = scmp.ne.s32.totalorder %s379, %s393
      %p395 = scmp.eq.s32.totalorder %s35, 0
      %p396 = por %p394, %p395
      %s398 = sadd.s32 %s397, 1
      %p401 = scmp.eq.s32.totalorder %s29, 1
      %p402 = scmp.ne.s32.totalorder %s397, %s399
      %p403 = scmp.eq.s32.totalorder %s29, 0
      %p404 = por %p402, %p403
      %p405 = scmp.ne.s32.totalorder %s397, %s399
      %p406 = scmp.eq.s32.totalorder %s34, 1
      %p407 = por %p405, %p406
      %p408 = scmp.ne.s32.totalorder %s399, %s400
      %p409 = scmp.eq.s32.totalorder %s34, 0
      %p410 = por %p408, %p409
      %p411 = scmp.ne.s32.totalorder %s399, %s400
      %p412 = scmp.eq.s32.totalorder %s35, 1
      %p413 = por %p411, %p412
      %p415 = scmp.ne.s32.totalorder %s400, %s414
      %p416 = scmp.eq.s32.totalorder %s35, 0
      %p417 = por %p415, %p416
      %s418 = ssub.s32 %s36, %s48
      %p419 = scmp.eq.s32.totalorder %s418, 0
      %s421 = sadd.s32 %s420, 1
      %s422 = scalar_select %p419, %s420, %s421
      %p425 = pneg %p419
      %p426 = scmp.eq.s32.totalorder %s29, 1
      %p427 = por %p425, %p426
      %p428 = scmp.ne.s32.totalorder %s420, %s423
      %p429 = scmp.eq.s32.totalorder %s29, 0
      %p430 = por %p428, %p429
      %p431 = scmp.ne.s32.totalorder %s420, %s423
      %p432 = scmp.eq.s32.totalorder %s34, 1
      %p433 = por %p431, %p432
      %p434 = scmp.ne.s32.totalorder %s423, %s424
      %p435 = scmp.eq.s32.totalorder %s34, 0
      %p436 = por %p434, %p435
      %p437 = scmp.ne.s32.totalorder %s423, %s424
      %p438 = scmp.eq.s32.totalorder %s35, 1
      %p439 = por %p437, %p438
      %p441 = scmp.ne.s32.totalorder %s424, %s440
      %p442 = scmp.eq.s32.totalorder %s35, 0
      %p443 = por %p441, %p442
      %p444 = scmp.le.s32.totalorder 1, %s29
      %p445 = scmp.lt.s32.totalorder %s29, 3
      %p446 = pnand %p444, %p445
      %p447 = pneg %p446
      // Predicated region
      $region9: #{tpu_custom_call.1} parent=5 // pred_check
        _
      $region10: #{tpu_custom_call.1} parent=5 // pred_check_branch
        %449 = sbr.rel (%p446) target = $region12
      $region11: #{tpu_custom_call.1} parent=5 // pred_region
        %s450 = ssub.s32 %s29, 1
        // Predicated region
        $region13: #{tpu_custom_call.1} parent=11 // pred_check
          %p451 = pneg %p116
        $region14: #{tpu_custom_call.1} parent=11 // pred_check_branch
          %453 = sbr.rel (%p451) target = $region16
        $region15: #{tpu_custom_call.1} parent=11 // pred_region
          _
        $region16: #{tpu_custom_call.1} parent=11 // pred_fallthru
          _
        // Predicated region
        $region17: #{tpu_custom_call.1} parent=11 // pred_check
          %p454 = pneg %p137
        $region18: #{tpu_custom_call.1} parent=11 // pred_check_branch
          %456 = sbr.rel (%p454) target = $region20
        $region19: #{tpu_custom_call.1} parent=11 // pred_region
          _
        $region20: #{tpu_custom_call.1} parent=11 // pred_fallthru
          _
        // Predicated region
        $region21: #{tpu_custom_call.1} parent=11 // pred_check
          %p457 = pneg %p158
        $region22: #{tpu_custom_call.1} parent=11 // pred_check_branch
          %459 = sbr.rel (%p457) target = $region24
        $region23: #{tpu_custom_call.1} parent=11 // pred_region
          %s461 = ssub.s32 1024, 1024
          %462 = vsyncadd [#allocation4], %s461
          %s463 = sshll.u32 [#allocation3], 4
          %s464 = int_to_ptr.vmem [resolvable:$true] %s463
          %469 = dma.hbm_to_vmem [thread:$0]  %s4, 1024, %s464, [#allocation4], 64, 64, 4
        $region24: #{tpu_custom_call.1} parent=11 // pred_fallthru
          _
        // Predicated region
        $region25: #{tpu_custom_call.1} parent=11 // pred_check
          %p470 = pneg %p179
        $region26: #{tpu_custom_call.1} parent=11 // pred_check_branch
          %472 = sbr.rel (%p470) target = $region28
        $region27: #{tpu_custom_call.1} parent=11 // pred_region
          _
        $region28: #{tpu_custom_call.1} parent=11 // pred_fallthru
          _
        // Predicated region
        $region29: #{tpu_custom_call.1} parent=11 // pred_check
          %p473 = pneg %p200
        $region30: #{tpu_custom_call.1} parent=11 // pred_check_branch
          %475 = sbr.rel (%p473) target = $region32
        $region31: #{tpu_custom_call.1} parent=11 // pred_region
          _
        $region32: #{tpu_custom_call.1} parent=11 // pred_fallthru
          _
        // Predicated region
        $region33: #{tpu_custom_call.1} parent=11 // pred_check
          %p476 = pneg %p221
        $region34: #{tpu_custom_call.1} parent=11 // pred_check_branch
          %478 = sbr.rel (%p476) target = $region36
        $region35: #{tpu_custom_call.1} parent=11 // pred_region
          _
        $region36: #{tpu_custom_call.1} parent=11 // pred_fallthru
          _
        // Predicated region
        $region37: #{tpu_custom_call.1} parent=11 // pred_check
          %p479 = pneg %p242
        $region38: #{tpu_custom_call.1} parent=11 // pred_check_branch
          %481 = sbr.rel (%p479) target = $region40
        $region39: #{tpu_custom_call.1} parent=11 // pred_region
          %s483 = ssub.s32 8192, 8192
          %484 = vsyncadd [#allocation7], %s483
          %s485 = sshll.u32 [#allocation6], 4
          %s486 = int_to_ptr.vmem [resolvable:$true] %s485
          %491 = dma.hbm_to_vmem [thread:$0]  %s8, 8192, %s486, [#allocation7], 256, 256, 16
        $region40: #{tpu_custom_call.1} parent=11 // pred_fallthru
          _
        // Predicated region
        $region41: #{tpu_custom_call.1} parent=11 // pred_check
          %p492 = pneg %p263
        $region42: #{tpu_custom_call.1} parent=11 // pred_check_branch
          %494 = sbr.rel (%p492) target = $region44
        $region43: #{tpu_custom_call.1} parent=11 // pred_region
          _
        $region44: #{tpu_custom_call.1} parent=11 // pred_fallthru
          _
        // Predicated region
        $region45: #{tpu_custom_call.1} parent=11 // pred_check
          %p495 = pneg %p284
        $region46: #{tpu_custom_call.1} parent=11 // pred_check_branch
          %497 = sbr.rel (%p495) target = $region48
        $region47: #{tpu_custom_call.1} parent=11 // pred_region
          %s499 = ssub.s32 32768, 32768
          %500 = vsyncadd [#allocation7], %s499
          %s501 = sshll.u32 [#allocation8], 4
          %s502 = int_to_ptr.vmem [resolvable:$true] %s501
          %507 = dma.hbm_to_vmem [thread:$0]  %s10, 32768, %s502, [#allocation7], 512, 512, 32
        $region48: #{tpu_custom_call.1} parent=11 // pred_fallthru
          _
        // Predicated region
        $region49: #{tpu_custom_call.1} parent=11 // pred_check
          %p508 = pneg %p305
        $region50: #{tpu_custom_call.1} parent=11 // pred_check_branch
          %510 = sbr.rel (%p508) target = $region52
        $region51: #{tpu_custom_call.1} parent=11 // pred_region
          _
        $region52: #{tpu_custom_call.1} parent=11 // pred_fallthru
          _
        // Predicated region
        $region53: #{tpu_custom_call.1} parent=11 // pred_check
          %p511 = pneg %p326
        $region54: #{tpu_custom_call.1} parent=11 // pred_check_branch
          %513 = sbr.rel (%p511) target = $region56
        $region55: #{tpu_custom_call.1} parent=11 // pred_region
          _
        $region56: #{tpu_custom_call.1} parent=11 // pred_fallthru
          _
        // Predicated region
        $region57: #{tpu_custom_call.1} parent=11 // pred_check
          %p514 = pneg %p347
        $region58: #{tpu_custom_call.1} parent=11 // pred_check_branch
          %516 = sbr.rel (%p514) target = $region60
        $region59: #{tpu_custom_call.1} parent=11 // pred_region
          %s518 = ssub.s32 16384, 16384
          %519 = vsyncadd [#allocation10], %s518
          %s520 = sshll.u32 [#allocation9], 4
          %s521 = int_to_ptr.vmem [resolvable:$true] %s520
          %526 = dma.hbm_to_vmem [thread:$0]  %s13, 16384, %s521, [#allocation10], 256, 256, 16
        $region60: #{tpu_custom_call.1} parent=11 // pred_fallthru
          _
        // Predicated region
        $region61: #{tpu_custom_call.1} parent=11 // pred_check
          %p527 = pneg %p368
        $region62: #{tpu_custom_call.1} parent=11 // pred_check_branch
          %529 = sbr.rel (%p527) target = $region64
        $region63: #{tpu_custom_call.1} parent=11 // pred_region
          _
        $region64: #{tpu_custom_call.1} parent=11 // pred_fallthru
          _
        // Predicated region
        $region65: #{tpu_custom_call.1} parent=11 // pred_check
          %p530 = pneg %p389
        $region66: #{tpu_custom_call.1} parent=11 // pred_check_branch
          %532 = sbr.rel (%p530) target = $region68
        $region67: #{tpu_custom_call.1} parent=11 // pred_region
          %s534 = ssub.s32 4096, 4096
          %535 = vsyncadd [#allocation10], %s534
          %s536 = sshll.u32 [#allocation11], 4
          %s537 = int_to_ptr.vmem [resolvable:$true] %s536
          %542 = dma.hbm_to_vmem [thread:$0]  %s15, 4096, %s537, [#allocation10], 128, 128, 8
        $region68: #{tpu_custom_call.1} parent=11 // pred_fallthru
          _
        // Predicated region
        $region69: #{tpu_custom_call.1} parent=11 // pred_check
          %p543 = pneg %p410
        $region70: #{tpu_custom_call.1} parent=11 // pred_check_branch
          %545 = sbr.rel (%p543) target = $region72
        $region71: #{tpu_custom_call.1} parent=11 // pred_region
          _
        $region72: #{tpu_custom_call.1} parent=11 // pred_fallthru
          _
      $region12: #{tpu_custom_call.1} parent=5 // pred_fallthru
        _
      %p546 = scmp.lt.s32.totalorder %s29, 2
      // Predicated region
      $region73: #{tpu_custom_call.1} parent=5 // pred_check
        %p547 = pneg %p546
      $region74: #{tpu_custom_call.1} parent=5 // pred_check_branch
        %549 = sbr.rel (%p547) target = $region76
      $region75: #{tpu_custom_call.1} parent=5 // pred_region
        // Predicated region
        $region77: #{tpu_custom_call.1} parent=75 // pred_check
          %p550 = pneg %p63
        $region78: #{tpu_custom_call.1} parent=75 // pred_check_branch
          %552 = sbr.rel (%p550) target = $region80
        $region79: #{tpu_custom_call.1} parent=75 // pred_region
          %s553 = smul.u32 8, %s37
          %p554 = scmp.lt.s32.totalorder %s36, 1
          %s555 = scalar_select %p554, %s36, 1
          %p556 = scmp.lt.s32.totalorder %s553, 7
          %s557 = scalar_select %p556, %s553, 7
          %s558 = smul.addr %s555, 8
          %s559 = sadd.s32 %s557, %s558
          %s560 = smul.addr %s559, 8
          %s561 = scalar_lea.vmem %s0, %s560
          %s562 = smul.u32 8, %s37
        $region80: #{tpu_custom_call.1} parent=75 // pred_fallthru
          _
        // Predicated region
        $region81: #{tpu_custom_call.1} parent=75 // pred_check
          %p563 = pneg %p89
        $region82: #{tpu_custom_call.1} parent=75 // pred_check_branch
          %565 = sbr.rel (%p563) target = $region84
        $region83: #{tpu_custom_call.1} parent=75 // pred_region
          %p566 = scmp.lt.s32.totalorder %s36, 1
          %s567 = scalar_select %p566, %s36, 1
          %s568 = scalar_lea.vmem %s1, %s567
        $region84: #{tpu_custom_call.1} parent=75 // pred_fallthru
          _
      $region76: #{tpu_custom_call.1} parent=5 // pred_fallthru
        _
      %p569 = scmp.le.s32.totalorder 1, %s29
      %p570 = scmp.lt.s32.totalorder %s29, 3
      %p571 = pnand %p569, %p570
      %p572 = pneg %p571
      // Predicated region
      $region85: #{tpu_custom_call.1} parent=5 // pred_check
        _
      $region86: #{tpu_custom_call.1} parent=5 // pred_check_branch
        %574 = sbr.rel (%p571) target = $region88
      $region87: #{tpu_custom_call.1} parent=5 // pred_region
        %s575 = ssub.s32 %s29, 1
        // Predicated region
        $region89: #{tpu_custom_call.1} parent=87 // pred_check
          %p576 = pneg %p158
        $region90: #{tpu_custom_call.1} parent=87 // pred_check_branch
          %578 = sbr.rel (%p576) target = $region92
        $region91: #{tpu_custom_call.1} parent=87 // pred_region
          %579 = dma.done [#allocation4], 1024
        $region92: #{tpu_custom_call.1} parent=87 // pred_fallthru
          _
        // Predicated region
        $region93: #{tpu_custom_call.1} parent=87 // pred_check
          %p580 = pneg %p242
        $region94: #{tpu_custom_call.1} parent=87 // pred_check_branch
          %582 = sbr.rel (%p580) target = $region96
        $region95: #{tpu_custom_call.1} parent=87 // pred_region
          %583 = dma.done [#allocation7], 8192
        $region96: #{tpu_custom_call.1} parent=87 // pred_fallthru
          _
        // Predicated region
        $region97: #{tpu_custom_call.1} parent=87 // pred_check
          %p584 = pneg %p284
        $region98: #{tpu_custom_call.1} parent=87 // pred_check_branch
          %586 = sbr.rel (%p584) target = $region100
        $region99: #{tpu_custom_call.1} parent=87 // pred_region
          %587 = dma.done [#allocation7], 32768
        $region100: #{tpu_custom_call.1} parent=87 // pred_fallthru
          _
        // Predicated region
        $region101: #{tpu_custom_call.1} parent=87 // pred_check
          %p588 = pneg %p347
        $region102: #{tpu_custom_call.1} parent=87 // pred_check_branch
          %590 = sbr.rel (%p588) target = $region104
        $region103: #{tpu_custom_call.1} parent=87 // pred_region
          %591 = dma.done [#allocation10], 16384
        $region104: #{tpu_custom_call.1} parent=87 // pred_fallthru
          _
        // Predicated region
        $region105: #{tpu_custom_call.1} parent=87 // pred_check
          %p592 = pneg %p389
        $region106: #{tpu_custom_call.1} parent=87 // pred_check_branch
          %594 = sbr.rel (%p592) target = $region108
        $region107: #{tpu_custom_call.1} parent=87 // pred_region
          %595 = dma.done [#allocation10], 4096
        $region108: #{tpu_custom_call.1} parent=87 // pred_fallthru
          _
        %s596 = smul.u32 8, %s39
        %p597 = scmp.lt.s32.totalorder %s38, 1
        %s598 = scalar_select %p597, %s38, 1
        %p599 = scmp.lt.s32.totalorder %s596, 7
        %s600 = scalar_select %p599, %s596, 7
        %s601 = smul.addr %s598, 8
        %s602 = sadd.s32 %s600, %s601
        %s603 = smul.addr %s602, 8
        %s604 = scalar_lea.vmem %s0, %s603
        %p605 = pneg %p69
        %p606 = pneg %p66
        %p607 = scmp.lt.s32.totalorder %s38, 1
        %s608 = scalar_select %p607, %s38, 1
        %s609 = scalar_lea.vmem %s1, %s608
        %p610 = pneg %p95
        %p611 = pneg %p92
        %p612 = pneg %p116
        %p613 = pneg %p113
        %p614 = pneg %p137
        %p615 = pneg %p134
        %p616 = pneg %p158
        %p617 = pneg %p155
        %p618 = pneg %p179
        %p619 = pneg %p176
        %p620 = pneg %p200
        %p621 = pneg %p197
        %p622 = pneg %p221
        %p623 = pneg %p218
        %p624 = pneg %p242
        %p625 = pneg %p239
        %p626 = pneg %p263
        %p627 = pneg %p260
        %p628 = pneg %p284
        %p629 = pneg %p281
        %p630 = pneg %p305
        %p631 = pneg %p302
        %p632 = pneg %p326
        %p633 = pneg %p323
        %p634 = pneg %p347
        %p635 = pneg %p344
        %p636 = pneg %p368
        %p637 = pneg %p365
        %p638 = pneg %p389
        %p639 = pneg %p386
        %p640 = pneg %p410
        %p641 = pneg %p407
        %p642 = pneg %p436
        %p643 = pneg %p433
        %s644 = sand.u32 %s423, 1
        %s645 = scalar_lea.sflag [#allocation5], %s644
        %s646 = sand.u32 %s423, 1
        %s647 = scalar_lea.vmem [#allocation12], %s646
        %s648 = smul.u32 8, %s39
        %p649 = scmp.lt.s32.totalorder %s38, 1
        %s650 = scalar_select %p649, %s38, 1
        %p651 = scmp.lt.s32.totalorder %s648, 7
        %s652 = scalar_select %p651, %s648, 7
        %s653 = smul.addr %s650, 8
        %s654 = sadd.s32 %s652, %s653
        %s655 = smul.addr %s654, 8
        %s656 = scalar_lea.vmem %s0, %s655
        %s657 = smul.u32 8, %s39
        %p658 = scmp.lt.s32.totalorder %s38, 1
        %s659 = scalar_select %p658, %s38, 1
        %s660 = scalar_lea.vmem %s1, %s659
        %p662 = scmp.eq.s32.totalorder %s39, 0
        // Predicated region
        $region109: #{tpu_custom_call.1} parent=87 // pred_check
          %p663 = pneg %p662
        $region110: #{tpu_custom_call.1} parent=87 // pred_check_branch
          %665 = sbr.rel (%p663) target = $region112
        $region111: #{tpu_custom_call.1} parent=87 // pred_region
          %v666 = vlaneseq
          %vm667 = vcmp.ge.s32.totalorder %v666, 0
          %vm668 = vcmp.lt.s32.totalorder %v666, 512
          %vm669 = vmand %vm667, %vm668
          %670 = vst.msk [vmem:[#allocation2] sm:$0xf] %vm669, -inf
        $region112: #{tpu_custom_call.1} parent=87 // pred_fallthru
          _
        %v671 = vld [vmem:[%s656] sm:$0xff]
        %v672 = vld [vmem:[%s656 + $0x8] sm:$0xff]
        %v673 = vld [vmem:[%s656 + $0x10] sm:$0xff]
        %v674 = vld [vmem:[%s656 + $0x18] sm:$0xff]
        %v675 = vld [vmem:[%s656 + $0x20] sm:$0xff]
        %v676 = vld [vmem:[%s656 + $0x28] sm:$0xff]
        %v677 = vld [vmem:[%s656 + $0x30] sm:$0xff]
        %v678 = vld [vmem:[%s656 + $0x38] sm:$0xff]
        %v679 = vld [vmem:[%s2] sm:$0x7]
        %v680 = vld [vmem:[%s3] sm:$0x1]
        %v682 = vlaneseq
        %v683 = vshrl.u32 %v682, 7
        %v684 = vsub.s32 0, %v683
        %v685 = vrot.slane %v680, %v684
        %vm687 = vcmask 23552
        %v689 = vsel %vm687, %v671, 0
        %v692 = vsel %vm687, %v672, 0
        %v695 = vsel %vm687, %v673, 0
        %v698 = vsel %vm687, %v674, 0
        %v701 = vsel %vm687, %v675, 0
        %v704 = vsel %vm687, %v676, 0
        %v707 = vsel %vm687, %v677, 0
        %v710 = vsel %vm687, %v678, 0
        %vm712 = vcmask 1042432
        %v714 = vsel %vm712, %v679, 0
        %716 = vmatprep.subr.mxu0 0.0
        %717 = vmatpush1.msra.mxu0 %v714
        %718 = vmatprep.subr.mxu0 0.0
        %719 = vmatpush1.msra.mxu0 0.0
        %720 = vmatprep.subr.mxu0 0.0
        %721 = vmatpush1.msra.mxu0 0.0
        %722 = vmatprep.subr.mxu0 0.0
        %723 = vmatpush1.msra.mxu0 0.0
        %724 = vmatprep.subr.mxu0 0.0
        %725 = vmatpush1.msra.mxu0 0.0
        %726 = vmatprep.subr.mxu0 0.0
        %727 = vmatpush1.msra.mxu0 0.0
        %728 = vmatprep.subr.mxu0 0.0
        %729 = vmatpush1.msra.mxu0 0.0
        %730 = vmatprep.subr.mxu0 0.0
        %731 = vmatpush1.msra.mxu0 0.0
        %732 = vmatprep.subr.mxu0 0.0
        %733 = vmatpush1.msra.mxu0 0.0
        %734 = vmatprep.subr.mxu0 0.0
        %735 = vmatpush1.msra.mxu0 0.0
        %736 = vmatprep.subr.mxu0 0.0
        %737 = vmatpush1.msra.mxu0 0.0
        %738 = vmatprep.subr.mxu0 0.0
        %739 = vmatpush1.msra.mxu0 0.0
        %740 = vmatprep.subr.mxu0 0.0
        %741 = vmatpush1.msra.mxu0 0.0
        %742 = vmatprep.subr.mxu0 0.0
        %743 = vmatpush1.msra.mxu0 0.0
        %744 = vmatprep.subr.mxu0 0.0
        %745 = vmatpush1.msra.mxu0 0.0
        %746 = vmatprep.subr.mxu0 0.0
        %747 = vmatpush1.msra.mxu0 0.0
        %748 = vmatprep.subr.mxu0 0.0
        %749 = vmatpush1.msra.mxu0 0.0
        %750 = vmatprep.subr.mxu0 0.0
        %751 = vmatpush1.msra.mxu0 0.0
        %752 = vmatprep.subr.mxu0 0.0
        %753 = vmatpush1.msra.mxu0 0.0
        %754 = vmatprep.subr.mxu0 0.0
        %755 = vmatpush1.msra.mxu0 0.0
        %756 = vmatprep.subr.mxu0 0.0
        %757 = vmatpush1.msra.mxu0 0.0
        %758 = vmatprep.subr.mxu0 0.0
        %759 = vmatpush1.msra.mxu0 0.0
        %760 = vmatprep.subr.mxu0 0.0
        %761 = vmatpush1.msra.mxu0 0.0
        %762 = vmatprep.subr.mxu0 0.0
        %763 = vmatpush1.msra.mxu0 0.0
        %764 = vmatprep.subr.mxu0 0.0
        %765 = vmatpush1.msra.mxu0 0.0
        %766 = vmatprep.subr.mxu0 0.0
        %767 = vmatpush1.msra.mxu0 0.0
        %768 = vmatprep.subr.mxu0 0.0
        %769 = vmatpush1.msra.mxu0 0.0
        %770 = vmatprep.subr.mxu0 0.0
        %771 = vmatpush1.msra.mxu0 0.0
        %772 = vmatprep.subr.mxu0 0.0
        %773 = vmatpush1.msra.mxu0 0.0
        %774 = vmatprep.subr.mxu0 0.0
        %775 = vmatpush1.msra.mxu0 0.0
        %776 = vmatprep.subr.mxu0 0.0
        %777 = vmatpush1.msra.mxu0 0.0
        %778 = vmatprep.subr.mxu0 0.0
        %779 = vmatpush1.msra.mxu0 0.0
        %780 = vmatprep.mubr.f32.mxu0 0.0
        %781 = vmatmul.mubr.f32.gmra.mrb[0].mxu0 %v689
        %v782 = vpop.f32.mrb[0].mxu0
        %v783 = vadd.f32 %v685, %v782
        %v784 = vpop.f32.mrb[0].mxu0
        %785 = vmatprep.mubr.f32.mxu0 0.0
        %786 = vmatmul.mubr.f32.gmra.mrb[0].mxu0 %v692
        %v787 = vpop.f32.mrb[0].mxu0
        %v788 = vadd.f32 %v685, %v787
        %v789 = vpop.f32.mrb[0].mxu0
        %790 = vmatprep.mubr.f32.mxu0 0.0
        %791 = vmatmul.mubr.f32.gmra.mrb[0].mxu0 %v695
        %v792 = vpop.f32.mrb[0].mxu0
        %v793 = vadd.f32 %v685, %v792
        %v794 = vpop.f32.mrb[0].mxu0
        %795 = vmatprep.mubr.f32.mxu0 0.0
        %796 = vmatmul.mubr.f32.gmra.mrb[0].mxu0 %v698
        %v797 = vpop.f32.mrb[0].mxu0
        %v798 = vadd.f32 %v685, %v797
        %v799 = vpop.f32.mrb[0].mxu0
        %800 = vmatprep.mubr.f32.mxu0 0.0
        %801 = vmatmul.mubr.f32.gmra.mrb[0].mxu0 %v701
        %v802 = vpop.f32.mrb[0].mxu0
        %v803 = vadd.f32 %v685, %v802
        %v804 = vpop.f32.mrb[0].mxu0
        %805 = vmatprep.mubr.f32.mxu0 0.0
        %806 = vmatmul.mubr.f32.gmra.mrb[0].mxu0 %v704
        %v807 = vpop.f32.mrb[0].mxu0
        %v808 = vadd.f32 %v685, %v807
        %v809 = vpop.f32.mrb[0].mxu0
        %810 = vmatprep.mubr.f32.mxu0 0.0
        %811 = vmatmul.mubr.f32.gmra.mrb[0].mxu0 %v707
        %v812 = vpop.f32.mrb[0].mxu0
        %v813 = vadd.f32 %v685, %v812
        %v814 = vpop.f32.mrb[0].mxu0
        %815 = vmatprep.mubr.f32.mxu0 0.0
        %816 = vmatmul.mubr.f32.gmra.mrb[0].mxu0 %v710
        %v817 = vpop.f32.mrb[0].mxu0
        %v818 = vadd.f32 %v685, %v817
        %v819 = vpop.f32.mrb[0].mxu0
        %820 = vdwg.mxu0
        %v821 = vmax.f32 %v783, 0.0
        %v822 = vmax.f32 %v788, 0.0
        %v823 = vmax.f32 %v793, 0.0
        %v824 = vmax.f32 %v798, 0.0
        %v825 = vmax.f32 %v803, 0.0
        %v826 = vmax.f32 %v808, 0.0
        %v827 = vmax.f32 %v813, 0.0
        %v828 = vmax.f32 %v818, 0.0
        %v829 = vpack.c.bf16 %v822, %v821
        %v830 = vpack.c.bf16 %v824, %v823
        %v831 = vpack.c.bf16 %v826, %v825
        %v832 = vpack.c.bf16 %v828, %v827
        %v833 = vld [vmem:[#allocation3] sm:$0xf]
        %v834 = vld [vmem:[#allocation3 + $0x4] sm:$0xf]
        %v835 = vld [vmem:[#allocation3 + $0x8] sm:$0xf]
        %v836 = vld [vmem:[#allocation3 + $0xc] sm:$0xf]
        %v837 = vld [vmem:[#allocation3 + $0x10] sm:$0xf]
        %v838 = vld [vmem:[#allocation3 + $0x14] sm:$0xf]
        %v839 = vld [vmem:[#allocation3 + $0x18] sm:$0xf]
        %v840 = vld [vmem:[#allocation3 + $0x1c] sm:$0xf]
        %v841 = vld [vmem:[#allocation3 + $0x20] sm:$0xf]
        %v842 = vld [vmem:[#allocation3 + $0x24] sm:$0xf]
        %v843 = vld [vmem:[#allocation3 + $0x28] sm:$0xf]
        %v844 = vld [vmem:[#allocation3 + $0x2c] sm:$0xf]
        %v845 = vld [vmem:[#allocation3 + $0x30] sm:$0xf]
        %v846 = vld [vmem:[#allocation3 + $0x34] sm:$0xf]
        %v847 = vld [vmem:[#allocation3 + $0x38] sm:$0xf]
        %v848 = vld [vmem:[#allocation3 + $0x3c] sm:$0xf]
        %v849 = vld [vmem:[%s5] sm:$0x1]
        %v851 = vlaneseq
        %v852 = vshrl.u32 %v851, 7
        %v853 = vsub.s32 0, %v852
        %v854 = vrot.slane %v849, %v853
        %v872 = vunpack.c.l.b16 %v833
        %v873 = vunpack.c.l.b16 %v834
        %v874 = vunpack.c.l.b16 %v835
        %v875 = vunpack.c.l.b16 %v836
        %v876 = vunpack.c.l.b16 %v837
        %v877 = vunpack.c.l.b16 %v838
        %v878 = vunpack.c.l.b16 %v839
        %v879 = vunpack.c.l.b16 %v840
        %v880 = vunpack.c.l.b16 %v841
        %v881 = vunpack.c.l.b16 %v842
        %v882 = vunpack.c.l.b16 %v843
        %v883 = vunpack.c.l.b16 %v844
        %v884 = vunpack.c.l.b16 %v845
        %v885 = vunpack.c.l.b16 %v846
        %v886 = vunpack.c.l.b16 %v847
        %v887 = vunpack.c.l.b16 %v848
        %v888 = vpack.c.b16 %v873, %v872
        %v889 = vpack.c.b16 %v875, %v874
        %v890 = vpack.c.b16 %v877, %v876
        %v891 = vpack.c.b16 %v879, %v878
        %v892 = vpack.c.b16 %v881, %v880
        %v893 = vpack.c.b16 %v883, %v882
        %v894 = vpack.c.b16 %v885, %v884
        %v895 = vpack.c.b16 %v887, %v886
        %904 = vmatprep.subr.bf16.mxu0 0
        %905 = vmatpush1.bf16.msra.mxu0 %v888
        %906 = vmatprep.subr.bf16.mxu0 0
        %907 = vmatpush1.bf16.msra.mxu0 %v889
        %908 = vmatprep.subr.bf16.mxu0 0
        %909 = vmatpush1.bf16.msra.mxu0 %v890
        %910 = vmatprep.subr.bf16.mxu0 0
        %911 = vmatpush1.bf16.msra.mxu0 %v891
        %912 = vmatprep.subr.bf16.mxu0 0
        %913 = vmatpush1.bf16.msra.mxu0 %v892
        %914 = vmatprep.subr.bf16.mxu0 0
        %915 = vmatpush1.bf16.msra.mxu0 %v893
        %916 = vmatprep.subr.bf16.mxu0 0
        %917 = vmatpush1.bf16.msra.mxu0 %v894
        %918 = vmatprep.subr.bf16.mxu0 0
        %919 = vmatpush1.bf16.msra.mxu0 %v895
        %920 = vmatprep.subr.bf16.mxu0 0
        %921 = vmatpush1.bf16.msra.mxu0 0
        %922 = vmatprep.subr.bf16.mxu0 0
        %923 = vmatpush1.bf16.msra.mxu0 0
        %924 = vmatprep.subr.bf16.mxu0 0
        %925 = vmatpush1.bf16.msra.mxu0 0
        %926 = vmatprep.subr.bf16.mxu0 0
        %927 = vmatpush1.bf16.msra.mxu0 0
        %928 = vmatprep.subr.bf16.mxu0 0
        %929 = vmatpush1.bf16.msra.mxu0 0
        %930 = vmatprep.subr.bf16.mxu0 0
        %931 = vmatpush1.bf16.msra.mxu0 0
        %932 = vmatprep.subr.bf16.mxu0 0
        %933 = vmatpush1.bf16.msra.mxu0 0
        %934 = vmatprep.subr.bf16.mxu0 0
        %935 = vmatpush1.bf16.msra.mxu0 0
        %936 = vmatprep.mubr.bf16.mxu0 0
        %937 = vmatmul.mubr.bf16.gmra.mrb[0].mxu0 %v829
        %v938 = vpop.f32.mrb[0].mxu0
        %v939 = vadd.f32 %v854, %v938
        %v940 = vpop.f32.mrb[0].mxu0
        %v941 = vpop.f32.mrb[0].mxu0
        %v942 = vadd.f32 %v854, %v941
        %v943 = vpop.f32.mrb[0].mxu0
        %944 = vmatprep.mubr.bf16.mxu0 0
        %945 = vmatmul.mubr.bf16.gmra.mrb[0].mxu0 %v830
        %v946 = vpop.f32.mrb[0].mxu0
        %v947 = vadd.f32 %v854, %v946
        %v948 = vpop.f32.mrb[0].mxu0
        %v949 = vpop.f32.mrb[0].mxu0
        %v950 = vadd.f32 %v854, %v949
        %v951 = vpop.f32.mrb[0].mxu0
        %952 = vmatprep.mubr.bf16.mxu0 0
        %953 = vmatmul.mubr.bf16.gmra.mrb[0].mxu0 %v831
        %v954 = vpop.f32.mrb[0].mxu0
        %v955 = vadd.f32 %v854, %v954
        %v956 = vpop.f32.mrb[0].mxu0
        %v957 = vpop.f32.mrb[0].mxu0
        %v958 = vadd.f32 %v854, %v957
        %v959 = vpop.f32.mrb[0].mxu0
        %960 = vmatprep.mubr.bf16.mxu0 0
        %961 = vmatmul.mubr.bf16.gmra.mrb[0].mxu0 %v832
        %v962 = vpop.f32.mrb[0].mxu0
        %v963 = vadd.f32 %v854, %v962
        %v964 = vpop.f32.mrb[0].mxu0
        %v965 = vpop.f32.mrb[0].mxu0
        %v966 = vadd.f32 %v854, %v965
        %v967 = vpop.f32.mrb[0].mxu0
        %968 = vdwg.mxu0
        %v969 = vmax.f32 %v939, 0.0
        %v970 = vmax.f32 %v942, 0.0
        %v971 = vmax.f32 %v947, 0.0
        %v972 = vmax.f32 %v950, 0.0
        %v973 = vmax.f32 %v955, 0.0
        %v974 = vmax.f32 %v958, 0.0
        %v975 = vmax.f32 %v963, 0.0
        %v976 = vmax.f32 %v966, 0.0
        %v977 = vpack.c.bf16 %v970, %v969
        %v978 = vpack.c.bf16 %v972, %v971
        %v979 = vpack.c.bf16 %v974, %v973
        %v980 = vpack.c.bf16 %v976, %v975
        %v981 = vld [vmem:[%s6] sm:$0xff]
        %v982 = vld [vmem:[%s6 + $0x8] sm:$0xff]
        %v983 = vld [vmem:[%s6 + $0x10] sm:$0xff]
        %v984 = vld [vmem:[%s6 + $0x18] sm:$0xff]
        %v985 = vld [vmem:[%s6 + $0x20] sm:$0xff]
        %v986 = vld [vmem:[%s6 + $0x28] sm:$0xff]
        %v987 = vld [vmem:[%s6 + $0x30] sm:$0xff]
        %v988 = vld [vmem:[%s6 + $0x38] sm:$0xff]
        %v989 = vld [vmem:[%s6 + $0x40] sm:$0xff]
        %v990 = vld [vmem:[%s6 + $0x48] sm:$0xff]
        %v991 = vld [vmem:[%s6 + $0x50] sm:$0xff]
        %v992 = vld [vmem:[%s6 + $0x58] sm:$0xff]
        %v993 = vld [vmem:[%s6 + $0x60] sm:$0xff]
        %v994 = vld [vmem:[%s6 + $0x68] sm:$0xff]
        %v995 = vld [vmem:[%s6 + $0x70] sm:$0xff]
        %v996 = vld [vmem:[%s6 + $0x78] sm:$0xff]
        %v997 = vld [vmem:[%s7] sm:$0x3]
        %v999 = vlaneseq
        %v1000 = vshrl.u32 %v999, 7
        %v1001 = vsub.s32 0, %v1000
        %v1002 = vrot.slane %v997, %v1001
        %v1003 = vlaneseq
        %v1004 = vshrl.u32 %v1003, 7
        %v1005 = vsub.s32 1, %v1004
        %v1006 = vrot.slane %v997, %v1005
        %v1025 = vunpack.c.l.b16 %v981
        %v1026 = vunpack.c.h.b16 %v981
        %v1027 = vunpack.c.l.b16 %v982
        %v1028 = vunpack.c.h.b16 %v982
        %v1029 = vunpack.c.l.b16 %v983
        %v1030 = vunpack.c.h.b16 %v983
        %v1031 = vunpack.c.l.b16 %v984
        %v1032 = vunpack.c.h.b16 %v984
        %v1033 = vunpack.c.l.b16 %v985
        %v1034 = vunpack.c.h.b16 %v985
        %v1035 = vunpack.c.l.b16 %v986
        %v1036 = vunpack.c.h.b16 %v986
        %v1037 = vunpack.c.l.b16 %v987
        %v1038 = vunpack.c.h.b16 %v987
        %v1039 = vunpack.c.l.b16 %v988
        %v1040 = vunpack.c.h.b16 %v988
        %v1041 = vunpack.c.l.b16 %v989
        %v1042 = vunpack.c.h.b16 %v989
        %v1043 = vunpack.c.l.b16 %v990
        %v1044 = vunpack.c.h.b16 %v990
        %v1045 = vunpack.c.l.b16 %v991
        %v1046 = vunpack.c.h.b16 %v991
        %v1047 = vunpack.c.l.b16 %v992
        %v1048 = vunpack.c.h.b16 %v992
        %v1049 = vunpack.c.l.b16 %v993
        %v1050 = vunpack.c.h.b16 %v993
        %v1051 = vunpack.c.l.b16 %v994
        %v1052 = vunpack.c.h.b16 %v994
        %v1053 = vunpack.c.l.b16 %v995
        %v1054 = vunpack.c.h.b16 %v995
        %v1055 = vunpack.c.l.b16 %v996
        %v1056 = vunpack.c.h.b16 %v996
        %v1057 = vpack.c.b16 %v1027, %v1025
        %v1058 = vpack.c.b16 %v1028, %v1026
        %v1059 = vpack.c.b16 %v1031, %v1029
        %v1060 = vpack.c.b16 %v1032, %v1030
        %v1061 = vpack.c.b16 %v1035, %v1033
        %v1062 = vpack.c.b16 %v1036, %v1034
        %v1063 = vpack.c.b16 %v1039, %v1037
        %v1064 = vpack.c.b16 %v1040, %v1038
        %v1065 = vpack.c.b16 %v1043, %v1041
        %v1066 = vpack.c.b16 %v1044, %v1042
        %v1067 = vpack.c.b16 %v1047, %v1045
        %v1068 = vpack.c.b16 %v1048, %v1046
        %v1069 = vpack.c.b16 %v1051, %v1049
        %v1070 = vpack.c.b16 %v1052, %v1050
        %v1071 = vpack.c.b16 %v1055, %v1053
        %v1072 = vpack.c.b16 %v1056, %v1054
        %1089 = vmatprep.subr.bf16.mxu0 %v1058
        %1090 = vmatpush1.bf16.msra.mxu0 %v1057
        %1091 = vmatprep.subr.bf16.mxu0 %v1060
        %1092 = vmatpush1.bf16.msra.mxu0 %v1059
        %1093 = vmatprep.subr.bf16.mxu0 %v1062
        %1094 = vmatpush1.bf16.msra.mxu0 %v1061
        %1095 = vmatprep.subr.bf16.mxu0 %v1064
        %1096 = vmatpush1.bf16.msra.mxu0 %v1063
        %1097 = vmatprep.subr.bf16.mxu0 %v1066
        %1098 = vmatpush1.bf16.msra.mxu0 %v1065
        %1099 = vmatprep.subr.bf16.mxu0 %v1068
        %1100 = vmatpush1.bf16.msra.mxu0 %v1067
        %1101 = vmatprep.subr.bf16.mxu0 %v1070
        %1102 = vmatpush1.bf16.msra.mxu0 %v1069
        %1103 = vmatprep.subr.bf16.mxu0 %v1072
        %1104 = vmatpush1.bf16.msra.mxu0 %v1071
        %1105 = vmatprep.subr.bf16.mxu0 0
        %1106 = vmatpush1.bf16.msra.mxu0 0
        %1107 = vmatprep.subr.bf16.mxu0 0
        %1108 = vmatpush1.bf16.msra.mxu0 0
        %1109 = vmatprep.subr.bf16.mxu0 0
        %1110 = vmatpush1.bf16.msra.mxu0 0
        %1111 = vmatprep.subr.bf16.mxu0 0
        %1112 = vmatpush1.bf16.msra.mxu0 0
        %1113 = vmatprep.subr.bf16.mxu0 0
        %1114 = vmatpush1.bf16.msra.mxu0 0
        %1115 = vmatprep.subr.bf16.mxu0 0
        %1116 = vmatpush1.bf16.msra.mxu0 0
        %1117 = vmatprep.subr.bf16.mxu0 0
        %1118 = vmatpush1.bf16.msra.mxu0 0
        %1119 = vmatprep.subr.bf16.mxu0 0
        %1120 = vmatpush1.bf16.msra.mxu0 0
        %1121 = vmatprep.mubr.bf16.mxu0 0
        %1122 = vmatmul.mubr.bf16.gmra.mrb[0].mxu0 %v977
        %v1123 = vpop.f32.mrb[0].mxu0
        %v1124 = vadd.f32 %v1002, %v1123
        %v1125 = vpop.f32.mrb[0].mxu0
        %v1126 = vadd.f32 %v1006, %v1125
        %v1127 = vpop.f32.mrb[0].mxu0
        %v1128 = vadd.f32 %v1002, %v1127
        %v1129 = vpop.f32.mrb[0].mxu0
        %v1130 = vadd.f32 %v1006, %v1129
        %1131 = vmatprep.mubr.bf16.mxu0 0
        %1132 = vmatmul.mubr.bf16.gmra.mrb[0].mxu0 %v978
        %v1133 = vpop.f32.mrb[0].mxu0
        %v1134 = vadd.f32 %v1002, %v1133
        %v1135 = vpop.f32.mrb[0].mxu0
        %v1136 = vadd.f32 %v1006, %v1135
        %v1137 = vpop.f32.mrb[0].mxu0
        %v1138 = vadd.f32 %v1002, %v1137
        %v1139 = vpop.f32.mrb[0].mxu0
        %v1140 = vadd.f32 %v1006, %v1139
        %1141 = vmatprep.mubr.bf16.mxu0 0
        %1142 = vmatmul.mubr.bf16.gmra.mrb[0].mxu0 %v979
        %v1143 = vpop.f32.mrb[0].mxu0
        %v1144 = vadd.f32 %v1002, %v1143
        %v1145 = vpop.f32.mrb[0].mxu0
        %v1146 = vadd.f32 %v1006, %v1145
        %v1147 = vpop.f32.mrb[0].mxu0
        %v1148 = vadd.f32 %v1002, %v1147
        %v1149 = vpop.f32.mrb[0].mxu0
        %v1150 = vadd.f32 %v1006, %v1149
        %1151 = vmatprep.mubr.bf16.mxu0 0
        %1152 = vmatmul.mubr.bf16.gmra.mrb[0].mxu0 %v980
        %v1153 = vpop.f32.mrb[0].mxu0
        %v1154 = vadd.f32 %v1002, %v1153
        %v1155 = vpop.f32.mrb[0].mxu0
        %v1156 = vadd.f32 %v1006, %v1155
        %v1157 = vpop.f32.mrb[0].mxu0
        %v1158 = vadd.f32 %v1002, %v1157
        %v1159 = vpop.f32.mrb[0].mxu0
        %v1160 = vadd.f32 %v1006, %v1159
        %1161 = vdwg.mxu0
        %v1162 = vmax.f32 %v1124, 0.0
        %v1163 = vmax.f32 %v1126, 0.0
        %v1164 = vmax.f32 %v1128, 0.0
        %v1165 = vmax.f32 %v1130, 0.0
        %v1166 = vmax.f32 %v1134, 0.0
        %v1167 = vmax.f32 %v1136, 0.0
        %v1168 = vmax.f32 %v1138, 0.0
        %v1169 = vmax.f32 %v1140, 0.0
        %v1170 = vmax.f32 %v1144, 0.0
        %v1171 = vmax.f32 %v1146, 0.0
        %v1172 = vmax.f32 %v1148, 0.0
        %v1173 = vmax.f32 %v1150, 0.0
        %v1174 = vmax.f32 %v1154, 0.0
        %v1175 = vmax.f32 %v1156, 0.0
        %v1176 = vmax.f32 %v1158, 0.0
        %v1177 = vmax.f32 %v1160, 0.0
        %v1178 = vpack.c.bf16 %v1164, %v1162
        %v1179 = vpack.c.bf16 %v1165, %v1163
        %v1180 = vpack.c.bf16 %v1168, %v1166
        %v1181 = vpack.c.bf16 %v1169, %v1167
        %v1182 = vpack.c.bf16 %v1172, %v1170
        %v1183 = vpack.c.bf16 %v1173, %v1171
        %v1184 = vpack.c.bf16 %v1176, %v1174
        %v1185 = vpack.c.bf16 %v1177, %v1175
        %v1186 = vld [vmem:[#allocation6] sm:$0xff]
        %v1187 = vld [vmem:[#allocation6 + $0x8] sm:$0xff]
        %v1188 = vld [vmem:[#allocation6 + $0x10] sm:$0xff]
        %v1189 = vld [vmem:[#allocation6 + $0x18] sm:$0xff]
        %v1190 = vld [vmem:[#allocation6 + $0x20] sm:$0xff]
        %v1191 = vld [vmem:[#allocation6 + $0x28] sm:$0xff]
        %v1192 = vld [vmem:[#allocation6 + $0x30] sm:$0xff]
        %v1193 = vld [vmem:[#allocation6 + $0x38] sm:$0xff]
        %v1194 = vld [vmem:[#allocation6 + $0x40] sm:$0xff]
        %v1195 = vld [vmem:[#allocation6 + $0x48] sm:$0xff]
        %v1196 = vld [vmem:[#allocation6 + $0x50] sm:$0xff]
        %v1197 = vld [vmem:[#allocation6 + $0x58] sm:$0xff]
        %v1198 = vld [vmem:[#allocation6 + $0x60] sm:$0xff]
        %v1199 = vld [vmem:[#allocation6 + $0x68] sm:$0xff]
        %v1200 = vld [vmem:[#allocation6 + $0x70] sm:$0xff]
        %v1201 = vld [vmem:[#allocation6 + $0x78] sm:$0xff]
        %v1202 = vld [vmem:[#allocation6 + $0x80] sm:$0xff]
        %v1203 = vld [vmem:[#allocation6 + $0x88] sm:$0xff]
        %v1204 = vld [vmem:[#allocation6 + $0x90] sm:$0xff]
        %v1205 = vld [vmem:[#allocation6 + $0x98] sm:$0xff]
        %v1206 = vld [vmem:[#allocation6 + $0xa0] sm:$0xff]
        %v1207 = vld [vmem:[#allocation6 + $0xa8] sm:$0xff]
        %v1208 = vld [vmem:[#allocation6 + $0xb0] sm:$0xff]
        %v1209 = vld [vmem:[#allocation6 + $0xb8] sm:$0xff]
        %v1210 = vld [vmem:[#allocation6 + $0xc0] sm:$0xff]
        %v1211 = vld [vmem:[#allocation6 + $0xc8] sm:$0xff]
        %v1212 = vld [vmem:[#allocation6 + $0xd0] sm:$0xff]
        %v1213 = vld [vmem:[#allocation6 + $0xd8] sm:$0xff]
        %v1214 = vld [vmem:[#allocation6 + $0xe0] sm:$0xff]
        %v1215 = vld [vmem:[#allocation6 + $0xe8] sm:$0xff]
        %v1216 = vld [vmem:[#allocation6 + $0xf0] sm:$0xff]
        %v1217 = vld [vmem:[#allocation6 + $0xf8] sm:$0xff]
        %v1218 = vld [vmem:[#allocation6 + $0x100] sm:$0xff]
        %v1219 = vld [vmem:[#allocation6 + $0x108] sm:$0xff]
        %v1220 = vld [vmem:[#allocation6 + $0x110] sm:$0xff]
        %v1221 = vld [vmem:[#allocation6 + $0x118] sm:$0xff]
        %v1222 = vld [vmem:[#allocation6 + $0x120] sm:$0xff]
        %v1223 = vld [vmem:[#allocation6 + $0x128] sm:$0xff]
        %v1224 = vld [vmem:[#allocation6 + $0x130] sm:$0xff]
        %v1225 = vld [vmem:[#allocation6 + $0x138] sm:$0xff]
        %v1226 = vld [vmem:[#allocation6 + $0x140] sm:$0xff]
        %v1227 = vld [vmem:[#allocation6 + $0x148] sm:$0xff]
        %v1228 = vld [vmem:[#allocation6 + $0x150] sm:$0xff]
        %v1229 = vld [vmem:[#allocation6 + $0x158] sm:$0xff]
        %v1230 = vld [vmem:[#allocation6 + $0x160] sm:$0xff]
        %v1231 = vld [vmem:[#allocation6 + $0x168] sm:$0xff]
        %v1232 = vld [vmem:[#allocation6 + $0x170] sm:$0xff]
        %v1233 = vld [vmem:[#allocation6 + $0x178] sm:$0xff]
        %v1234 = vld [vmem:[#allocation6 + $0x180] sm:$0xff]
        %v1235 = vld [vmem:[#allocation6 + $0x188] sm:$0xff]
        %v1236 = vld [vmem:[#allocation6 + $0x190] sm:$0xff]
        %v1237 = vld [vmem:[#allocation6 + $0x198] sm:$0xff]
        %v1238 = vld [vmem:[#allocation6 + $0x1a0] sm:$0xff]
        %v1239 = vld [vmem:[#allocation6 + $0x1a8] sm:$0xff]
        %v1240 = vld [vmem:[#allocation6 + $0x1b0] sm:$0xff]
        %v1241 = vld [vmem:[#allocation6 + $0x1b8] sm:$0xff]
        %v1242 = vld [vmem:[#allocation6 + $0x1c0] sm:$0xff]
        %v1243 = vld [vmem:[#allocation6 + $0x1c8] sm:$0xff]
        %v1244 = vld [vmem:[#allocation6 + $0x1d0] sm:$0xff]
        %v1245 = vld [vmem:[#allocation6 + $0x1d8] sm:$0xff]
        %v1246 = vld [vmem:[#allocation6 + $0x1e0] sm:$0xff]
        %v1247 = vld [vmem:[#allocation6 + $0x1e8] sm:$0xff]
        %v1248 = vld [vmem:[#allocation6 + $0x1f0] sm:$0xff]
        %v1249 = vld [vmem:[#allocation6 + $0x1f8] sm:$0xff]
        %v1250 = vld [vmem:[%s9] sm:$0xf]
        %v1252 = vlaneseq
        %v1253 = vshrl.u32 %v1252, 7
        %v1254 = vsub.s32 0, %v1253
        %v1255 = vrot.slane %v1250, %v1254
        %v1256 = vlaneseq
        %v1257 = vshrl.u32 %v1256, 7
        %v1258 = vsub.s32 1, %v1257
        %v1259 = vrot.slane %v1250, %v1258
        %v1260 = vlaneseq
        %v1261 = vshrl.u32 %v1260, 7
        %v1262 = vsub.s32 2, %v1261
        %v1263 = vrot.slane %v1250, %v1262
        %v1264 = vlaneseq
        %v1265 = vshrl.u32 %v1264, 7
        %v1266 = vsub.s32 3, %v1265
        %v1267 = vrot.slane %v1250, %v1266
        %v1336 = vunpack.c.l.b16 %v1186
        %v1337 = vunpack.c.h.b16 %v1186
        %v1338 = vunpack.c.l.b16 %v1187
        %v1339 = vunpack.c.h.b16 %v1187
        %v1340 = vunpack.c.l.b16 %v1188
        %v1341 = vunpack.c.h.b16 %v1188
        %v1342 = vunpack.c.l.b16 %v1189
        %v1343 = vunpack.c.h.b16 %v1189
        %v1344 = vunpack.c.l.b16 %v1190
        %v1345 = vunpack.c.h.b16 %v1190
        %v1346 = vunpack.c.l.b16 %v1191
        %v1347 = vunpack.c.h.b16 %v1191
        %v1348 = vunpack.c.l.b16 %v1192
        %v1349 = vunpack.c.h.b16 %v1192
        %v1350 = vunpack.c.l.b16 %v1193
        %v1351 = vunpack.c.h.b16 %v1193
        %v1352 = vunpack.c.l.b16 %v1194
        %v1353 = vunpack.c.h.b16 %v1194
        %v1354 = vunpack.c.l.b16 %v1195
        %v1355 = vunpack.c.h.b16 %v1195
        %v1356 = vunpack.c.l.b16 %v1196
        %v1357 = vunpack.c.h.b16 %v1196
        %v1358 = vunpack.c.l.b16 %v1197
        %v1359 = vunpack.c.h.b16 %v1197
        %v1360 = vunpack.c.l.b16 %v1198
        %v1361 = vunpack.c.h.b16 %v1198
        %v1362 = vunpack.c.l.b16 %v1199
        %v1363 = vunpack.c.h.b16 %v1199
        %v1364 = vunpack.c.l.b16 %v1200
        %v1365 = vunpack.c.h.b16 %v1200
        %v1366 = vunpack.c.l.b16 %v1201
        %v1367 = vunpack.c.h.b16 %v1201
        %v1368 = vunpack.c.l.b16 %v1202
        %v1369 = vunpack.c.h.b16 %v1202
        %v1370 = vunpack.c.l.b16 %v1203
        %v1371 = vunpack.c.h.b16 %v1203
        %v1372 = vunpack.c.l.b16 %v1204
        %v1373 = vunpack.c.h.b16 %v1204
        %v1374 = vunpack.c.l.b16 %v1205
        %v1375 = vunpack.c.h.b16 %v1205
        %v1376 = vunpack.c.l.b16 %v1206
        %v1377 = vunpack.c.h.b16 %v1206
        %v1378 = vunpack.c.l.b16 %v1207
        %v1379 = vunpack.c.h.b16 %v1207
        %v1380 = vunpack.c.l.b16 %v1208
        %v1381 = vunpack.c.h.b16 %v1208
        %v1382 = vunpack.c.l.b16 %v1209
        %v1383 = vunpack.c.h.b16 %v1209
        %v1384 = vunpack.c.l.b16 %v1210
        %v1385 = vunpack.c.h.b16 %v1210
        %v1386 = vunpack.c.l.b16 %v1211
        %v1387 = vunpack.c.h.b16 %v1211
        %v1388 = vunpack.c.l.b16 %v1212
        %v1389 = vunpack.c.h.b16 %v1212
        %v1390 = vunpack.c.l.b16 %v1213
        %v1391 = vunpack.c.h.b16 %v1213
        %v1392 = vunpack.c.l.b16 %v1214
        %v1393 = vunpack.c.h.b16 %v1214
        %v1394 = vunpack.c.l.b16 %v1215
        %v1395 = vunpack.c.h.b16 %v1215
        %v1396 = vunpack.c.l.b16 %v1216
        %v1397 = vunpack.c.h.b16 %v1216
        %v1398 = vunpack.c.l.b16 %v1217
        %v1399 = vunpack.c.h.b16 %v1217
        %v1400 = vunpack.c.l.b16 %v1218
        %v1401 = vunpack.c.h.b16 %v1218
        %v1402 = vunpack.c.l.b16 %v1219
        %v1403 = vunpack.c.h.b16 %v1219
        %v1404 = vunpack.c.l.b16 %v1220
        %v1405 = vunpack.c.h.b16 %v1220
        %v1406 = vunpack.c.l.b16 %v1221
        %v1407 = vunpack.c.h.b16 %v1221
        %v1408 = vunpack.c.l.b16 %v1222
        %v1409 = vunpack.c.h.b16 %v1222
        %v1410 = vunpack.c.l.b16 %v1223
        %v1411 = vunpack.c.h.b16 %v1223
        %v1412 = vunpack.c.l.b16 %v1224
        %v1413 = vunpack.c.h.b16 %v1224
        %v1414 = vunpack.c.l.b16 %v1225
        %v1415 = vunpack.c.h.b16 %v1225
        %v1416 = vunpack.c.l.b16 %v1226
        %v1417 = vunpack.c.h.b16 %v1226
        %v1418 = vunpack.c.l.b16 %v1227
        %v1419 = vunpack.c.h.b16 %v1227
        %v1420 = vunpack.c.l.b16 %v1228
        %v1421 = vunpack.c.h.b16 %v1228
        %v1422 = vunpack.c.l.b16 %v1229
        %v1423 = vunpack.c.h.b16 %v1229
        %v1424 = vunpack.c.l.b16 %v1230
        %v1425 = vunpack.c.h.b16 %v1230
        %v1426 = vunpack.c.l.b16 %v1231
        %v1427 = vunpack.c.h.b16 %v1231
        %v1428 = vunpack.c.l.b16 %v1232
        %v1429 = vunpack.c.h.b16 %v1232
        %v1430 = vunpack.c.l.b16 %v1233
        %v1431 = vunpack.c.h.b16 %v1233
        %v1432 = vunpack.c.l.b16 %v1234
        %v1433 = vunpack.c.h.b16 %v1234
        %v1434 = vunpack.c.l.b16 %v1235
        %v1435 = vunpack.c.h.b16 %v1235
        %v1436 = vunpack.c.l.b16 %v1236
        %v1437 = vunpack.c.h.b16 %v1236
        %v1438 = vunpack.c.l.b16 %v1237
        %v1439 = vunpack.c.h.b16 %v1237
        %v1440 = vunpack.c.l.b16 %v1238
        %v1441 = vunpack.c.h.b16 %v1238
        %v1442 = vunpack.c.l.b16 %v1239
        %v1443 = vunpack.c.h.b16 %v1239
        %v1444 = vunpack.c.l.b16 %v1240
        %v1445 = vunpack.c.h.b16 %v1240
        %v1446 = vunpack.c.l.b16 %v1241
        %v1447 = vunpack.c.h.b16 %v1241
        %v1448 = vunpack.c.l.b16 %v1242
        %v1449 = vunpack.c.h.b16 %v1242
        %v1450 = vunpack.c.l.b16 %v1243
        %v1451 = vunpack.c.h.b16 %v1243
        %v1452 = vunpack.c.l.b16 %v1244
        %v1453 = vunpack.c.h.b16 %v1244
        %v1454 = vunpack.c.l.b16 %v1245
        %v1455 = vunpack.c.h.b16 %v1245
        %v1456 = vunpack.c.l.b16 %v1246
        %v1457 = vunpack.c.h.b16 %v1246
        %v1458 = vunpack.c.l.b16 %v1247
        %v1459 = vunpack.c.h.b16 %v1247
        %v1460 = vunpack.c.l.b16 %v1248
        %v1461 = vunpack.c.h.b16 %v1248
        %v1462 = vunpack.c.l.b16 %v1249
        %v1463 = vunpack.c.h.b16 %v1249
        %v1464 = vpack.c.b16 %v1340, %v1336
        %v1465 = vpack.c.b16 %v1341, %v1337
        %v1466 = vpack.c.b16 %v1342, %v1338
        %v1467 = vpack.c.b16 %v1343, %v1339
        %v1468 = vpack.c.b16 %v1348, %v1344
        %v1469 = vpack.c.b16 %v1349, %v1345
        %v1470 = vpack.c.b16 %v1350, %v1346
        %v1471 = vpack.c.b16 %v1351, %v1347
        %v1472 = vpack.c.b16 %v1356, %v1352
        %v1473 = vpack.c.b16 %v1357, %v1353
        %v1474 = vpack.c.b16 %v1358, %v1354
        %v1475 = vpack.c.b16 %v1359, %v1355
        %v1476 = vpack.c.b16 %v1364, %v1360
        %v1477 = vpack.c.b16 %v1365, %v1361
        %v1478 = vpack.c.b16 %v1366, %v1362
        %v1479 = vpack.c.b16 %v1367, %v1363
        %v1480 = vpack.c.b16 %v1372, %v1368
        %v1481 = vpack.c.b16 %v1373, %v1369
        %v1482 = vpack.c.b16 %v1374, %v1370
        %v1483 = vpack.c.b16 %v1375, %v1371
        %v1484 = vpack.c.b16 %v1380, %v1376
        %v1485 = vpack.c.b16 %v1381, %v1377
        %v1486 = vpack.c.b16 %v1382, %v1378
        %v1487 = vpack.c.b16 %v1383, %v1379
        %v1488 = vpack.c.b16 %v1388, %v1384
        %v1489 = vpack.c.b16 %v1389, %v1385
        %v1490 = vpack.c.b16 %v1390, %v1386
        %v1491 = vpack.c.b16 %v1391, %v1387
        %v1492 = vpack.c.b16 %v1396, %v1392
        %v1493 = vpack.c.b16 %v1397, %v1393
        %v1494 = vpack.c.b16 %v1398, %v1394
        %v1495 = vpack.c.b16 %v1399, %v1395
        %v1496 = vpack.c.b16 %v1404, %v1400
        %v1497 = vpack.c.b16 %v1405, %v1401
        %v1498 = vpack.c.b16 %v1406, %v1402
        %v1499 = vpack.c.b16 %v1407, %v1403
        %v1500 = vpack.c.b16 %v1412, %v1408
        %v1501 = vpack.c.b16 %v1413, %v1409
        %v1502 = vpack.c.b16 %v1414, %v1410
        %v1503 = vpack.c.b16 %v1415, %v1411
        %v1504 = vpack.c.b16 %v1420, %v1416
        %v1505 = vpack.c.b16 %v1421, %v1417
        %v1506 = vpack.c.b16 %v1422, %v1418
        %v1507 = vpack.c.b16 %v1423, %v1419
        %v1508 = vpack.c.b16 %v1428, %v1424
        %v1509 = vpack.c.b16 %v1429, %v1425
        %v1510 = vpack.c.b16 %v1430, %v1426
        %v1511 = vpack.c.b16 %v1431, %v1427
        %v1512 = vpack.c.b16 %v1436, %v1432
        %v1513 = vpack.c.b16 %v1437, %v1433
        %v1514 = vpack.c.b16 %v1438, %v1434
        %v1515 = vpack.c.b16 %v1439, %v1435
        %v1516 = vpack.c.b16 %v1444, %v1440
        %v1517 = vpack.c.b16 %v1445, %v1441
        %v1518 = vpack.c.b16 %v1446, %v1442
        %v1519 = vpack.c.b16 %v1447, %v1443
        %v1520 = vpack.c.b16 %v1452, %v1448
        %v1521 = vpack.c.b16 %v1453, %v1449
        %v1522 = vpack.c.b16 %v1454, %v1450
        %v1523 = vpack.c.b16 %v1455, %v1451
        %v1524 = vpack.c.b16 %v1460, %v1456
        %v1525 = vpack.c.b16 %v1461, %v1457
        %v1526 = vpack.c.b16 %v1462, %v1458
        %v1527 = vpack.c.b16 %v1463, %v1459
        %1592 = vmatprep.subr.bf16.mxu0 %v1465
        %1593 = vmatpush1.bf16.msra.mxu0 %v1464
        %1594 = vmatprep.subr.bf16.mxu0 %v1469
        %1595 = vmatpush1.bf16.msra.mxu0 %v1468
        %1596 = vmatprep.subr.bf16.mxu0 %v1473
        %1597 = vmatpush1.bf16.msra.mxu0 %v1472
        %1598 = vmatprep.subr.bf16.mxu0 %v1477
        %1599 = vmatpush1.bf16.msra.mxu0 %v1476
        %1600 = vmatprep.subr.bf16.mxu0 %v1481
        %1601 = vmatpush1.bf16.msra.mxu0 %v1480
        %1602 = vmatprep.subr.bf16.mxu0 %v1485
        %1603 = vmatpush1.bf16.msra.mxu0 %v1484
        %1604 = vmatprep.subr.bf16.mxu0 %v1489
        %1605 = vmatpush1.bf16.msra.mxu0 %v1488
        %1606 = vmatprep.subr.bf16.mxu0 %v1493
        %1607 = vmatpush1.bf16.msra.mxu0 %v1492
        %1608 = vmatprep.subr.bf16.mxu0 %v1497
        %1609 = vmatpush1.bf16.msra.mxu0 %v1496
        %1610 = vmatprep.subr.bf16.mxu0 %v1501
        %1611 = vmatpush1.bf16.msra.mxu0 %v1500
        %1612 = vmatprep.subr.bf16.mxu0 %v1505
        %1613 = vmatpush1.bf16.msra.mxu0 %v1504
        %1614 = vmatprep.subr.bf16.mxu0 %v1509
        %1615 = vmatpush1.bf16.msra.mxu0 %v1508
        %1616 = vmatprep.subr.bf16.mxu0 %v1513
        %1617 = vmatpush1.bf16.msra.mxu0 %v1512
        %1618 = vmatprep.subr.bf16.mxu0 %v1517
        %1619 = vmatpush1.bf16.msra.mxu0 %v1516
        %1620 = vmatprep.subr.bf16.mxu0 %v1521
        %1621 = vmatpush1.bf16.msra.mxu0 %v1520
        %1622 = vmatprep.subr.bf16.mxu0 %v1525
        %1623 = vmatpush1.bf16.msra.mxu0 %v1524
        %1624 = vmatprep.mubr.bf16.mxu0 %v1179
        %1625 = vmatmul.mubr.bf16.gmra.mrb[0].mxu0 %v1178
        %v1626 = vpop.f32.mrb[0].mxu0
        %v1627 = vadd.f32 %v1255, %v1626
        %v1628 = vpop.f32.mrb[0].mxu0
        %v1629 = vadd.f32 %v1259, %v1628
        %v1630 = vpop.f32.mrb[0].mxu0
        %v1631 = vadd.f32 %v1255, %v1630
        %v1632 = vpop.f32.mrb[0].mxu0
        %v1633 = vadd.f32 %v1259, %v1632
        %1634 = vmatprep.mubr.bf16.mxu0 %v1181
        %1635 = vmatmul.mubr.bf16.gmra.mrb[0].mxu0 %v1180
        %v1636 = vpop.f32.mrb[0].mxu0
        %v1637 = vadd.f32 %v1255, %v1636
        %v1638 = vpop.f32.mrb[0].mxu0
        %v1639 = vadd.f32 %v1259, %v1638
        %v1640 = vpop.f32.mrb[0].mxu0
        %v1641 = vadd.f32 %v1255, %v1640
        %v1642 = vpop.f32.mrb[0].mxu0
        %v1643 = vadd.f32 %v1259, %v1642
        %1644 = vmatprep.mubr.bf16.mxu0 %v1183
        %1645 = vmatmul.mubr.bf16.gmra.mrb[0].mxu0 %v1182
        %v1646 = vpop.f32.mrb[0].mxu0
        %v1647 = vadd.f32 %v1255, %v1646
        %v1648 = vpop.f32.mrb[0].mxu0
        %v1649 = vadd.f32 %v1259, %v1648
        %v1650 = vpop.f32.mrb[0].mxu0
        %v1651 = vadd.f32 %v1255, %v1650
        %v1652 = vpop.f32.mrb[0].mxu0
        %v1653 = vadd.f32 %v1259, %v1652
        %1654 = vmatprep.mubr.bf16.mxu0 %v1185
        %1655 = vmatmul.mubr.bf16.gmra.mrb[0].mxu0 %v1184
        %v1656 = vpop.f32.mrb[0].mxu0
        %v1657 = vadd.f32 %v1255, %v1656
        %v1658 = vpop.f32.mrb[0].mxu0
        %v1659 = vadd.f32 %v1259, %v1658
        %v1660 = vpop.f32.mrb[0].mxu0
        %v1661 = vadd.f32 %v1255, %v1660
        %v1662 = vpop.f32.mrb[0].mxu0
        %v1663 = vadd.f32 %v1259, %v1662
        %1664 = vdwg.mxu0
        %1665 = vmatprep.subr.bf16.mxu0 %v1467
        %1666 = vmatpush1.bf16.msra.mxu0 %v1466
        %1667 = vmatprep.subr.bf16.mxu0 %v1471
        %1668 = vmatpush1.bf16.msra.mxu0 %v1470
        %1669 = vmatprep.subr.bf16.mxu0 %v1475
        %1670 = vmatpush1.bf16.msra.mxu0 %v1474
        %1671 = vmatprep.subr.bf16.mxu0 %v1479
        %1672 = vmatpush1.bf16.msra.mxu0 %v1478
        %1673 = vmatprep.subr.bf16.mxu0 %v1483
        %1674 = vmatpush1.bf16.msra.mxu0 %v1482
        %1675 = vmatprep.subr.bf16.mxu0 %v1487
        %1676 = vmatpush1.bf16.msra.mxu0 %v1486
        %1677 = vmatprep.subr.bf16.mxu0 %v1491
        %1678 = vmatpush1.bf16.msra.mxu0 %v1490
        %1679 = vmatprep.subr.bf16.mxu0 %v1495
        %1680 = vmatpush1.bf16.msra.mxu0 %v1494
        %1681 = vmatprep.subr.bf16.mxu0 %v1499
        %1682 = vmatpush1.bf16.msra.mxu0 %v1498
        %1683 = vmatprep.subr.bf16.mxu0 %v1503
        %1684 = vmatpush1.bf16.msra.mxu0 %v1502
        %1685 = vmatprep.subr.bf16.mxu0 %v1507
        %1686 = vmatpush1.bf16.msra.mxu0 %v1506
        %1687 = vmatprep.subr.bf16.mxu0 %v1511
        %1688 = vmatpush1.bf16.msra.mxu0 %v1510
        %1689 = vmatprep.subr.bf16.mxu0 %v1515
        %1690 = vmatpush1.bf16.msra.mxu0 %v1514
        %1691 = vmatprep.subr.bf16.mxu0 %v1519
        %1692 = vmatpush1.bf16.msra.mxu0 %v1518
        %1693 = vmatprep.subr.bf16.mxu0 %v1523
        %1694 = vmatpush1.bf16.msra.mxu0 %v1522
        %1695 = vmatprep.subr.bf16.mxu0 %v1527
        %1696 = vmatpush1.bf16.msra.mxu0 %v1526
        %1697 = vmatprep.mubr.bf16.mxu0 %v1179
        %1698 = vmatmul.mubr.bf16.gmra.mrb[0].mxu0 %v1178
        %v1699 = vpop.f32.mrb[0].mxu0
        %v1700 = vadd.f32 %v1263, %v1699
        %v1701 = vpop.f32.mrb[0].mxu0
        %v1702 = vadd.f32 %v1267, %v1701
        %v1703 = vpop.f32.mrb[0].mxu0
        %v1704 = vadd.f32 %v1263, %v1703
        %v1705 = vpop.f32.mrb[0].mxu0
        %v1706 = vadd.f32 %v1267, %v1705
        %1707 = vmatprep.mubr.bf16.mxu0 %v1181
        %1708 = vmatmul.mubr.bf16.gmra.mrb[0].mxu0 %v1180
        %v1709 = vpop.f32.mrb[0].mxu0
        %v1710 = vadd.f32 %v1263, %v1709
        %v1711 = vpop.f32.mrb[0].mxu0
        %v1712 = vadd.f32 %v1267, %v1711
        %v1713 = vpop.f32.mrb[0].mxu0
        %v1714 = vadd.f32 %v1263, %v1713
        %v1715 = vpop.f32.mrb[0].mxu0
        %v1716 = vadd.f32 %v1267, %v1715
        %1717 = vmatprep.mubr.bf16.mxu0 %v1183
        %1718 = vmatmul.mubr.bf16.gmra.mrb[0].mxu0 %v1182
        %v1719 = vpop.f32.mrb[0].mxu0
        %v1720 = vadd.f32 %v1263, %v1719
        %v1721 = vpop.f32.mrb[0].mxu0
        %v1722 = vadd.f32 %v1267, %v1721
        %v1723 = vpop.f32.mrb[0].mxu0
        %v1724 = vadd.f32 %v1263, %v1723
        %v1725 = vpop.f32.mrb[0].mxu0
        %v1726 = vadd.f32 %v1267, %v1725
        %1727 = vmatprep.mubr.bf16.mxu0 %v1185
        %1728 = vmatmul.mubr.bf16.gmra.mrb[0].mxu0 %v1184
        %v1729 = vpop.f32.mrb[0].mxu0
        %v1730 = vadd.f32 %v1263, %v1729
        %v1731 = vpop.f32.mrb[0].mxu0
        %v1732 = vadd.f32 %v1267, %v1731
        %v1733 = vpop.f32.mrb[0].mxu0
        %v1734 = vadd.f32 %v1263, %v1733
        %v1735 = vpop.f32.mrb[0].mxu0
        %v1736 = vadd.f32 %v1267, %v1735
        %1737 = vdwg.mxu0
        %v1738 = vmax.f32 %v1627, 0.0
        %v1739 = vmax.f32 %v1629, 0.0
        %v1740 = vmax.f32 %v1700, 0.0
        %v1741 = vmax.f32 %v1702, 0.0
        %v1742 = vmax.f32 %v1631, 0.0
        %v1743 = vmax.f32 %v1633, 0.0
        %v1744 = vmax.f32 %v1704, 0.0
        %v1745 = vmax.f32 %v1706, 0.0
        %v1746 = vmax.f32 %v1637, 0.0
        %v1747 = vmax.f32 %v1639, 0.0
        %v1748 = vmax.f32 %v1710, 0.0
        %v1749 = vmax.f32 %v1712, 0.0
        %v1750 = vmax.f32 %v1641, 0.0
        %v1751 = vmax.f32 %v1643, 0.0
        %v1752 = vmax.f32 %v1714, 0.0
        %v1753 = vmax.f32 %v1716, 0.0
        %v1754 = vmax.f32 %v1647, 0.0
        %v1755 = vmax.f32 %v1649, 0.0
        %v1756 = vmax.f32 %v1720, 0.0
        %v1757 = vmax.f32 %v1722, 0.0
        %v1758 = vmax.f32 %v1651, 0.0
        %v1759 = vmax.f32 %v1653, 0.0
        %v1760 = vmax.f32 %v1724, 0.0
        %v1761 = vmax.f32 %v1726, 0.0
        %v1762 = vmax.f32 %v1657, 0.0
        %v1763 = vmax.f32 %v1659, 0.0
        %v1764 = vmax.f32 %v1730, 0.0
        %v1765 = vmax.f32 %v1732, 0.0
        %v1766 = vmax.f32 %v1661, 0.0
        %v1767 = vmax.f32 %v1663, 0.0
        %v1768 = vmax.f32 %v1734, 0.0
        %v1769 = vmax.f32 %v1736, 0.0
        %v1770 = vld [vmem:[#allocation2] sm:$0xf]
        %v1771 = vmax.f32 %v1738, %v1742
        %v1772 = vmax.f32 %v1771, %v1746
        %v1773 = vmax.f32 %v1772, %v1750
        %v1774 = vmax.f32 %v1773, %v1754
        %v1775 = vmax.f32 %v1774, %v1758
        %v1776 = vmax.f32 %v1775, %v1762
        %v1777 = vmax.f32 %v1776, %v1766
        %v1778 = vrot.slane %v1777, 4
        %v1779 = vmax.f32 %v1777, %v1778
        %v1780 = vrot.slane %v1779, 2
        %v1781 = vmax.f32 %v1779, %v1780
        %v1782 = vrot.slane %v1781, 1
        %v1783 = vmax.f32 %v1781, %v1782
        %v1784 = vmax.f32 %v1739, %v1743
        %v1785 = vmax.f32 %v1784, %v1747
        %v1786 = vmax.f32 %v1785, %v1751
        %v1787 = vmax.f32 %v1786, %v1755
        %v1788 = vmax.f32 %v1787, %v1759
        %v1789 = vmax.f32 %v1788, %v1763
        %v1790 = vmax.f32 %v1789, %v1767
        %v1791 = vrot.slane %v1790, 4
        %v1792 = vmax.f32 %v1790, %v1791
        %v1793 = vrot.slane %v1792, 2
        %v1794 = vmax.f32 %v1792, %v1793
        %v1795 = vrot.slane %v1794, 1
        %v1796 = vmax.f32 %v1794, %v1795
        %v1797 = vmax.f32 %v1740, %v1744
        %v1798 = vmax.f32 %v1797, %v1748
        %v1799 = vmax.f32 %v1798, %v1752
        %v1800 = vmax.f32 %v1799, %v1756
        %v1801 = vmax.f32 %v1800, %v1760
        %v1802 = vmax.f32 %v1801, %v1764
        %v1803 = vmax.f32 %v1802, %v1768
        %v1804 = vrot.slane %v1803, 4
        %v1805 = vmax.f32 %v1803, %v1804
        %v1806 = vrot.slane %v1805, 2
        %v1807 = vmax.f32 %v1805, %v1806
        %v1808 = vrot.slane %v1807, 1
        %v1809 = vmax.f32 %v1807, %v1808
        %v1810 = vmax.f32 %v1741, %v1745
        %v1811 = vmax.f32 %v1810, %v1749
        %v1812 = vmax.f32 %v1811, %v1753
        %v1813 = vmax.f32 %v1812, %v1757
        %v1814 = vmax.f32 %v1813, %v1761
        %v1815 = vmax.f32 %v1814, %v1765
        %v1816 = vmax.f32 %v1815, %v1769
        %v1817 = vrot.slane %v1816, 4
        %v1818 = vmax.f32 %v1816, %v1817
        %v1819 = vrot.slane %v1818, 2
        %v1820 = vmax.f32 %v1818, %v1819
        %v1821 = vrot.slane %v1820, 1
        %v1822 = vmax.f32 %v1820, %v1821
        %v1827 = vcombine.low %v1783, %v1796
        %v1828 = vcombine.low %v1809, %v1822
        %v1830 = vunpack.c.l.s4 1966171168
        %v1831 = vunpack.c.0.s8 %v1830
        %v1832 = vlaneseq
        %v1833 = vshrl.u32 %v1832, 7
        %v1834 = vsub.s32 %v1831, %v1833
        %v1835 = vrot.slane %v1827, %v1834
        %v1837 = vunpack.c.l.s4 1966171168
        %v1838 = vunpack.c.0.s8 %v1837
        %v1839 = vlaneseq
        %v1840 = vshrl.u32 %v1839, 7
        %v1841 = vsub.s32 %v1838, %v1840
        %v1842 = vrot.slane %v1828, %v1841
        %v1843 = vcombine.low %v1835, %v1842
        %v1845 = vunpack.c.l.s4 1966171168
        %v1846 = vunpack.c.0.s8 %v1845
        %v1847 = vlaneseq
        %v1848 = vshrl.u32 %v1847, 7
        %v1849 = vsub.s32 %v1846, %v1848
        %v1850 = vrot.slane %v1843, %v1849
        %v1852 = vmax.f32 %v1770, %v1850
        %v1853 = vlaneseq
        %vm1854 = vcmp.ge.s32.totalorder %v1853, 0
        %vm1855 = vcmp.lt.s32.totalorder %v1853, 512
        %vm1856 = vmand %vm1854, %vm1855
        %1857 = vst.msk [vmem:[#allocation2] sm:$0xf] %vm1856, %v1852
        // Predicated region
        $region113: #{tpu_custom_call.1} parent=87 // pred_check
          %p1858 = pneg %p662
        $region114: #{tpu_custom_call.1} parent=87 // pred_check_branch
          %1860 = sbr.rel (%p1858) target = $region116
        $region115: #{tpu_custom_call.1} parent=87 // pred_region
          %v1861 = vld [vmem:[#allocation2] sm:$0xf]
          %v1862 = vld [vmem:[%s660] sm:$0x1]
          %v1863 = vld [vmem:[#allocation8] sm:$0xff]
          %v1864 = vld [vmem:[#allocation8 + $0x8] sm:$0xff]
          %v1865 = vld [vmem:[#allocation8 + $0x10] sm:$0xff]
          %v1866 = vld [vmem:[#allocation8 + $0x18] sm:$0xff]
          %v1867 = vld [vmem:[#allocation8 + $0x20] sm:$0xff]
          %v1868 = vld [vmem:[#allocation8 + $0x28] sm:$0xff]
          %v1869 = vld [vmem:[#allocation8 + $0x30] sm:$0xff]
          %v1870 = vld [vmem:[#allocation8 + $0x38] sm:$0xff]
          %v1871 = vld [vmem:[#allocation8 + $0x40] sm:$0xff]
          %v1872 = vld [vmem:[#allocation8 + $0x48] sm:$0xff]
          %v1873 = vld [vmem:[#allocation8 + $0x50] sm:$0xff]
          %v1874 = vld [vmem:[#allocation8 + $0x58] sm:$0xff]
          %v1875 = vld [vmem:[#allocation8 + $0x60] sm:$0xff]
          %v1876 = vld [vmem:[#allocation8 + $0x68] sm:$0xff]
          %v1877 = vld [vmem:[#allocation8 + $0x70] sm:$0xff]
          %v1878 = vld [vmem:[#allocation8 + $0x78] sm:$0xff]
          %v1879 = vld [vmem:[#allocation8 + $0x80] sm:$0xff]
          %v1880 = vld [vmem:[#allocation8 + $0x88] sm:$0xff]
          %v1881 = vld [vmem:[#allocation8 + $0x90] sm:$0xff]
          %v1882 = vld [vmem:[#allocation8 + $0x98] sm:$0xff]
          %v1883 = vld [vmem:[#allocation8 + $0xa0] sm:$0xff]
          %v1884 = vld [vmem:[#allocation8 + $0xa8] sm:$0xff]
          %v1885 = vld [vmem:[#allocation8 + $0xb0] sm:$0xff]
          %v1886 = vld [vmem:[#allocation8 + $0xb8] sm:$0xff]
          %v1887 = vld [vmem:[#allocation8 + $0xc0] sm:$0xff]
          %v1888 = vld [vmem:[#allocation8 + $0xc8] sm:$0xff]
          %v1889 = vld [vmem:[#allocation8 + $0xd0] sm:$0xff]
          %v1890 = vld [vmem:[#allocation8 + $0xd8] sm:$0xff]
          %v1891 = vld [vmem:[#allocation8 + $0xe0] sm:$0xff]
          %v1892 = vld [vmem:[#allocation8 + $0xe8] sm:$0xff]
          %v1893 = vld [vmem:[#allocation8 + $0xf0] sm:$0xff]
          %v1894 = vld [vmem:[#allocation8 + $0xf8] sm:$0xff]
          %v1895 = vld [vmem:[#allocation8 + $0x100] sm:$0xff]
          %v1896 = vld [vmem:[#allocation8 + $0x108] sm:$0xff]
          %v1897 = vld [vmem:[#allocation8 + $0x110] sm:$0xff]
          %v1898 = vld [vmem:[#allocation8 + $0x118] sm:$0xff]
          %v1899 = vld [vmem:[#allocation8 + $0x120] sm:$0xff]
          %v1900 = vld [vmem:[#allocation8 + $0x128] sm:$0xff]
          %v1901 = vld [vmem:[#allocation8 + $0x130] sm:$0xff]
          %v1902 = vld [vmem:[#allocation8 + $0x138] sm:$0xff]
          %v1903 = vld [vmem:[#allocation8 + $0x140] sm:$0xff]
          %v1904 = vld [vmem:[#allocation8 + $0x148] sm:$0xff]
          %v1905 = vld [vmem:[#allocation8 + $0x150] sm:$0xff]
          %v1906 = vld [vmem:[#allocation8 + $0x158] sm:$0xff]
          %v1907 = vld [vmem:[#allocation8 + $0x160] sm:$0xff]
          %v1908 = vld [vmem:[#allocation8 + $0x168] sm:$0xff]
          %v1909 = vld [vmem:[#allocation8 + $0x170] sm:$0xff]
          %v1910 = vld [vmem:[#allocation8 + $0x178] sm:$0xff]
          %v1911 = vld [vmem:[#allocation8 + $0x180] sm:$0xff]
          %v1912 = vld [vmem:[#allocation8 + $0x188] sm:$0xff]
          %v1913 = vld [vmem:[#allocation8 + $0x190] sm:$0xff]
          %v1914 = vld [vmem:[#allocation8 + $0x198] sm:$0xff]
          %v1915 = vld [vmem:[#allocation8 + $0x1a0] sm:$0xff]
          %v1916 = vld [vmem:[#allocation8 + $0x1a8] sm:$0xff]
          %v1917 = vld [vmem:[#allocation8 + $0x1b0] sm:$0xff]
          %v1918 = vld [vmem:[#allocation8 + $0x1b8] sm:$0xff]
          %v1919 = vld [vmem:[#allocation8 + $0x1c0] sm:$0xff]
          %v1920 = vld [vmem:[#allocation8 + $0x1c8] sm:$0xff]
          %v1921 = vld [vmem:[#allocation8 + $0x1d0] sm:$0xff]
          %v1922 = vld [vmem:[#allocation8 + $0x1d8] sm:$0xff]
          %v1923 = vld [vmem:[#allocation8 + $0x1e0] sm:$0xff]
          %v1924 = vld [vmem:[#allocation8 + $0x1e8] sm:$0xff]
          %v1925 = vld [vmem:[#allocation8 + $0x1f0] sm:$0xff]
          %v1926 = vld [vmem:[#allocation8 + $0x1f8] sm:$0xff]
          %v1927 = vld [vmem:[#allocation8 + $0x200] sm:$0xff]
          %v1928 = vld [vmem:[#allocation8 + $0x208] sm:$0xff]
          %v1929 = vld [vmem:[#allocation8 + $0x210] sm:$0xff]
          %v1930 = vld [vmem:[#allocation8 + $0x218] sm:$0xff]
          %v1931 = vld [vmem:[#allocation8 + $0x220] sm:$0xff]
          %v1932 = vld [vmem:[#allocation8 + $0x228] sm:$0xff]
          %v1933 = vld [vmem:[#allocation8 + $0x230] sm:$0xff]
          %v1934 = vld [vmem:[#allocation8 + $0x238] sm:$0xff]
          %v1935 = vld [vmem:[#allocation8 + $0x240] sm:$0xff]
          %v1936 = vld [vmem:[#allocation8 + $0x248] sm:$0xff]
          %v1937 = vld [vmem:[#allocation8 + $0x250] sm:$0xff]
          %v1938 = vld [vmem:[#allocation8 + $0x258] sm:$0xff]
          %v1939 = vld [vmem:[#allocation8 + $0x260] sm:$0xff]
          %v1940 = vld [vmem:[#allocation8 + $0x268] sm:$0xff]
          %v1941 = vld [vmem:[#allocation8 + $0x270] sm:$0xff]
          %v1942 = vld [vmem:[#allocation8 + $0x278] sm:$0xff]
          %v1943 = vld [vmem:[#allocation8 + $0x280] sm:$0xff]
          %v1944 = vld [vmem:[#allocation8 + $0x288] sm:$0xff]
          %v1945 = vld [vmem:[#allocation8 + $0x290] sm:$0xff]
          %v1946 = vld [vmem:[#allocation8 + $0x298] sm:$0xff]
          %v1947 = vld [vmem:[#allocation8 + $0x2a0] sm:$0xff]
          %v1948 = vld [vmem:[#allocation8 + $0x2a8] sm:$0xff]
          %v1949 = vld [vmem:[#allocation8 + $0x2b0] sm:$0xff]
          %v1950 = vld [vmem:[#allocation8 + $0x2b8] sm:$0xff]
          %v1951 = vld [vmem:[#allocation8 + $0x2c0] sm:$0xff]
          %v1952 = vld [vmem:[#allocation8 + $0x2c8] sm:$0xff]
          %v1953 = vld [vmem:[#allocation8 + $0x2d0] sm:$0xff]
          %v1954 = vld [vmem:[#allocation8 + $0x2d8] sm:$0xff]
          %v1955 = vld [vmem:[#allocation8 + $0x2e0] sm:$0xff]
          %v1956 = vld [vmem:[#allocation8 + $0x2e8] sm:$0xff]
          %v1957 = vld [vmem:[#allocation8 + $0x2f0] sm:$0xff]
          %v1958 = vld [vmem:[#allocation8 + $0x2f8] sm:$0xff]
          %v1959 = vld [vmem:[#allocation8 + $0x300] sm:$0xff]
          %v1960 = vld [vmem:[#allocation8 + $0x308] sm:$0xff]
          %v1961 = vld [vmem:[#allocation8 + $0x310] sm:$0xff]
          %v1962 = vld [vmem:[#allocation8 + $0x318] sm:$0xff]
          %v1963 = vld [vmem:[#allocation8 + $0x320] sm:$0xff]
          %v1964 = vld [vmem:[#allocation8 + $0x328] sm:$0xff]
          %v1965 = vld [vmem:[#allocation8 + $0x330] sm:$0xff]
          %v1966 = vld [vmem:[#allocation8 + $0x338] sm:$0xff]
          %v1967 = vld [vmem:[#allocation8 + $0x340] sm:$0xff]
          %v1968 = vld [vmem:[#allocation8 + $0x348] sm:$0xff]
          %v1969 = vld [vmem:[#allocation8 + $0x350] sm:$0xff]
          %v1970 = vld [vmem:[#allocation8 + $0x358] sm:$0xff]
          %v1971 = vld [vmem:[#allocation8 + $0x360] sm:$0xff]
          %v1972 = vld [vmem:[#allocation8 + $0x368] sm:$0xff]
          %v1973 = vld [vmem:[#allocation8 + $0x370] sm:$0xff]
          %v1974 = vld [vmem:[#allocation8 + $0x378] sm:$0xff]
          %v1975 = vld [vmem:[#allocation8 + $0x380] sm:$0xff]
          %v1976 = vld [vmem:[#allocation8 + $0x388] sm:$0xff]
          %v1977 = vld [vmem:[#allocation8 + $0x390] sm:$0xff]
          %v1978 = vld [vmem:[#allocation8 + $0x398] sm:$0xff]
          %v1979 = vld [vmem:[#allocation8 + $0x3a0] sm:$0xff]
          %v1980 = vld [vmem:[#allocation8 + $0x3a8] sm:$0xff]
          %v1981 = vld [vmem:[#allocation8 + $0x3b0] sm:$0xff]
          %v1982 = vld [vmem:[#allocation8 + $0x3b8] sm:$0xff]
          %v1983 = vld [vmem:[#allocation8 + $0x3c0] sm:$0xff]
          %v1984 = vld [vmem:[#allocation8 + $0x3c8] sm:$0xff]
          %v1985 = vld [vmem:[#allocation8 + $0x3d0] sm:$0xff]
          %v1986 = vld [vmem:[#allocation8 + $0x3d8] sm:$0xff]
          %v1987 = vld [vmem:[#allocation8 + $0x3e0] sm:$0xff]
          %v1988 = vld [vmem:[#allocation8 + $0x3e8] sm:$0xff]
          %v1989 = vld [vmem:[#allocation8 + $0x3f0] sm:$0xff]
          %v1990 = vld [vmem:[#allocation8 + $0x3f8] sm:$0xff]
          %v1991 = vld [vmem:[#allocation8 + $0x400] sm:$0xff]
          %v1992 = vld [vmem:[#allocation8 + $0x408] sm:$0xff]
          %v1993 = vld [vmem:[#allocation8 + $0x410] sm:$0xff]
          %v1994 = vld [vmem:[#allocation8 + $0x418] sm:$0xff]
          %v1995 = vld [vmem:[#allocation8 + $0x420] sm:$0xff]
          %v1996 = vld [vmem:[#allocation8 + $0x428] sm:$0xff]
          %v1997 = vld [vmem:[#allocation8 + $0x430] sm:$0xff]
          %v1998 = vld [vmem:[#allocation8 + $0x438] sm:$0xff]
          %v1999 = vld [vmem:[#allocation8 + $0x440] sm:$0xff]
          %v2000 = vld [vmem:[#allocation8 + $0x448] sm:$0xff]
          %v2001 = vld [vmem:[#allocation8 + $0x450] sm:$0xff]
          %v2002 = vld [vmem:[#allocation8 + $0x458] sm:$0xff]
          %v2003 = vld [vmem:[#allocation8 + $0x460] sm:$0xff]
          %v2004 = vld [vmem:[#allocation8 + $0x468] sm:$0xff]
          %v2005 = vld [vmem:[#allocation8 + $0x470] sm:$0xff]
          %v2006 = vld [vmem:[#allocation8 + $0x478] sm:$0xff]
          %v2007 = vld [vmem:[#allocation8 + $0x480] sm:$0xff]
          %v2008 = vld [vmem:[#allocation8 + $0x488] sm:$0xff]
          %v2009 = vld [vmem:[#allocation8 + $0x490] sm:$0xff]
          %v2010 = vld [vmem:[#allocation8 + $0x498] sm:$0xff]
          %v2011 = vld [vmem:[#allocation8 + $0x4a0] sm:$0xff]
          %v2012 = vld [vmem:[#allocation8 + $0x4a8] sm:$0xff]
          %v2013 = vld [vmem:[#allocation8 + $0x4b0] sm:$0xff]
          %v2014 = vld [vmem:[#allocation8 + $0x4b8] sm:$0xff]
          %v2015 = vld [vmem:[#allocation8 + $0x4c0] sm:$0xff]
          %v2016 = vld [vmem:[#allocation8 + $0x4c8] sm:$0xff]
          %v2017 = vld [vmem:[#allocation8 + $0x4d0] sm:$0xff]
          %v2018 = vld [vmem:[#allocation8 + $0x4d8] sm:$0xff]
          %v2019 = vld [vmem:[#allocation8 + $0x4e0] sm:$0xff]
          %v2020 = vld [vmem:[#allocation8 + $0x4e8] sm:$0xff]
          %v2021 = vld [vmem:[#allocation8 + $0x4f0] sm:$0xff]
          %v2022 = vld [vmem:[#allocation8 + $0x4f8] sm:$0xff]
          %v2023 = vld [vmem:[#allocation8 + $0x500] sm:$0xff]
          %v2024 = vld [vmem:[#allocation8 + $0x508] sm:$0xff]
          %v2025 = vld [vmem:[#allocation8 + $0x510] sm:$0xff]
          %v2026 = vld [vmem:[#allocation8 + $0x518] sm:$0xff]
          %v2027 = vld [vmem:[#allocation8 + $0x520] sm:$0xff]
          %v2028 = vld [vmem:[#allocation8 + $0x528] sm:$0xff]
          %v2029 = vld [vmem:[#allocation8 + $0x530] sm:$0xff]
          %v2030 = vld [vmem:[#allocation8 + $0x538] sm:$0xff]
          %v2031 = vld [vmem:[#allocation8 + $0x540] sm:$0xff]
          %v2032 = vld [vmem:[#allocation8 + $0x548] sm:$0xff]
          %v2033 = vld [vmem:[#allocation8 + $0x550] sm:$0xff]
          %v2034 = vld [vmem:[#allocation8 + $0x558] sm:$0xff]
          %v2035 = vld [vmem:[#allocation8 + $0x560] sm:$0xff]
          %v2036 = vld [vmem:[#allocation8 + $0x568] sm:$0xff]
          %v2037 = vld [vmem:[#allocation8 + $0x570] sm:$0xff]
          %v2038 = vld [vmem:[#allocation8 + $0x578] sm:$0xff]
          %v2039 = vld [vmem:[#allocation8 + $0x580] sm:$0xff]
          %v2040 = vld [vmem:[#allocation8 + $0x588] sm:$0xff]
          %v2041 = vld [vmem:[#allocation8 + $0x590] sm:$0xff]
          %v2042 = vld [vmem:[#allocation8 + $0x598] sm:$0xff]
          %v2043 = vld [vmem:[#allocation8 + $0x5a0] sm:$0xff]
          %v2044 = vld [vmem:[#allocation8 + $0x5a8] sm:$0xff]
          %v2045 = vld [vmem:[#allocation8 + $0x5b0] sm:$0xff]
          %v2046 = vld [vmem:[#allocation8 + $0x5b8] sm:$0xff]
          %v2047 = vld [vmem:[#allocation8 + $0x5c0] sm:$0xff]
          %v2048 = vld [vmem:[#allocation8 + $0x5c8] sm:$0xff]
          %v2049 = vld [vmem:[#allocation8 + $0x5d0] sm:$0xff]
          %v2050 = vld [vmem:[#allocation8 + $0x5d8] sm:$0xff]
          %v2051 = vld [vmem:[#allocation8 + $0x5e0] sm:$0xff]
          %v2052 = vld [vmem:[#allocation8 + $0x5e8] sm:$0xff]
          %v2053 = vld [vmem:[#allocation8 + $0x5f0] sm:$0xff]
          %v2054 = vld [vmem:[#allocation8 + $0x5f8] sm:$0xff]
          %v2055 = vld [vmem:[#allocation8 + $0x600] sm:$0xff]
          %v2056 = vld [vmem:[#allocation8 + $0x608] sm:$0xff]
          %v2057 = vld [vmem:[#allocation8 + $0x610] sm:$0xff]
          %v2058 = vld [vmem:[#allocation8 + $0x618] sm:$0xff]
          %v2059 = vld [vmem:[#allocation8 + $0x620] sm:$0xff]
          %v2060 = vld [vmem:[#allocation8 + $0x628] sm:$0xff]
          %v2061 = vld [vmem:[#allocation8 + $0x630] sm:$0xff]
          %v2062 = vld [vmem:[#allocation8 + $0x638] sm:$0xff]
          %v2063 = vld [vmem:[#allocation8 + $0x640] sm:$0xff]
          %v2064 = vld [vmem:[#allocation8 + $0x648] sm:$0xff]
          %v2065 = vld [vmem:[#allocation8 + $0x650] sm:$0xff]
          %v2066 = vld [vmem:[#allocation8 + $0x658] sm:$0xff]
          %v2067 = vld [vmem:[#allocation8 + $0x660] sm:$0xff]
          %v2068 = vld [vmem:[#allocation8 + $0x668] sm:$0xff]
          %v2069 = vld [vmem:[#allocation8 + $0x670] sm:$0xff]
          %v2070 = vld [vmem:[#allocation8 + $0x678] sm:$0xff]
          %v2071 = vld [vmem:[#allocation8 + $0x680] sm:$0xff]
          %v2072 = vld [vmem:[#allocation8 + $0x688] sm:$0xff]
          %v2073 = vld [vmem:[#allocation8 + $0x690] sm:$0xff]
          %v2074 = vld [vmem:[#allocation8 + $0x698] sm:$0xff]
          %v2075 = vld [vmem:[#allocation8 + $0x6a0] sm:$0xff]
          %v2076 = vld [vmem:[#allocation8 + $0x6a8] sm:$0xff]
          %v2077 = vld [vmem:[#allocation8 + $0x6b0] sm:$0xff]
          %v2078 = vld [vmem:[#allocation8 + $0x6b8] sm:$0xff]
          %v2079 = vld [vmem:[#allocation8 + $0x6c0] sm:$0xff]
          %v2080 = vld [vmem:[#allocation8 + $0x6c8] sm:$0xff]
          %v2081 = vld [vmem:[#allocation8 + $0x6d0] sm:$0xff]
          %v2082 = vld [vmem:[#allocation8 + $0x6d8] sm:$0xff]
          %v2083 = vld [vmem:[#allocation8 + $0x6e0] sm:$0xff]
          %v2084 = vld [vmem:[#allocation8 + $0x6e8] sm:$0xff]
          %v2085 = vld [vmem:[#allocation8 + $0x6f0] sm:$0xff]
          %v2086 = vld [vmem:[#allocation8 + $0x6f8] sm:$0xff]
          %v2087 = vld [vmem:[#allocation8 + $0x700] sm:$0xff]
          %v2088 = vld [vmem:[#allocation8 + $0x708] sm:$0xff]
          %v2089 = vld [vmem:[#allocation8 + $0x710] sm:$0xff]
          %v2090 = vld [vmem:[#allocation8 + $0x718] sm:$0xff]
          %v2091 = vld [vmem:[#allocation8 + $0x720] sm:$0xff]
          %v2092 = vld [vmem:[#allocation8 + $0x728] sm:$0xff]
          %v2093 = vld [vmem:[#allocation8 + $0x730] sm:$0xff]
          %v2094 = vld [vmem:[#allocation8 + $0x738] sm:$0xff]
          %v2095 = vld [vmem:[#allocation8 + $0x740] sm:$0xff]
          %v2096 = vld [vmem:[#allocation8 + $0x748] sm:$0xff]
          %v2097 = vld [vmem:[#allocation8 + $0x750] sm:$0xff]
          %v2098 = vld [vmem:[#allocation8 + $0x758] sm:$0xff]
          %v2099 = vld [vmem:[#allocation8 + $0x760] sm:$0xff]
          %v2100 = vld [vmem:[#allocation8 + $0x768] sm:$0xff]
          %v2101 = vld [vmem:[#allocation8 + $0x770] sm:$0xff]
          %v2102 = vld [vmem:[#allocation8 + $0x778] sm:$0xff]
          %v2103 = vld [vmem:[#allocation8 + $0x780] sm:$0xff]
          %v2104 = vld [vmem:[#allocation8 + $0x788] sm:$0xff]
          %v2105 = vld [vmem:[#allocation8 + $0x790] sm:$0xff]
          %v2106 = vld [vmem:[#allocation8 + $0x798] sm:$0xff]
          %v2107 = vld [vmem:[#allocation8 + $0x7a0] sm:$0xff]
          %v2108 = vld [vmem:[#allocation8 + $0x7a8] sm:$0xff]
          %v2109 = vld [vmem:[#allocation8 + $0x7b0] sm:$0xff]
          %v2110 = vld [vmem:[#allocation8 + $0x7b8] sm:$0xff]
          %v2111 = vld [vmem:[#allocation8 + $0x7c0] sm:$0xff]
          %v2112 = vld [vmem:[#allocation8 + $0x7c8] sm:$0xff]
          %v2113 = vld [vmem:[#allocation8 + $0x7d0] sm:$0xff]
          %v2114 = vld [vmem:[#allocation8 + $0x7d8] sm:$0xff]
          %v2115 = vld [vmem:[#allocation8 + $0x7e0] sm:$0xff]
          %v2116 = vld [vmem:[#allocation8 + $0x7e8] sm:$0xff]
          %v2117 = vld [vmem:[#allocation8 + $0x7f0] sm:$0xff]
          %v2118 = vld [vmem:[#allocation8 + $0x7f8] sm:$0xff]
          %v2119 = vld [vmem:[%s11] sm:$0xff]
          %v2121 = vcombine.high %v2119, %v2119
          %v2123 = vunpack.c.l.s4 1983009808
          %v2124 = vunpack.c.0.s8 %v2123
          %v2125 = vlaneseq
          %v2126 = vshrl.u32 %v2125, 7
          %v2127 = vsub.s32 %v2124, %v2126
          %v2128 = vrot.slane %v2119, %v2127
          %v2130 = vunpack.c.l.s4 1983009808
          %v2131 = vunpack.c.0.s8 %v2130
          %v2132 = vlaneseq
          %v2133 = vshrl.u32 %v2132, 7
          %v2134 = vsub.s32 %v2131, %v2133
          %v2135 = vrot.slane %v2121, %v2134
          %v2136 = vcombine.high %v2128, %v2128
          %v2137 = vcombine.high %v2135, %v2135
          %vm2138 = vcmask 15360
          %v2140 = vsel %vm2138, %v1862, 0
          %vm2142 = vcmask 1041408
          %v2143 = vsel %vm2142, %v2128, 0
          %v2145 = vsel %vm2142, %v2136, 0
          %v2147 = vsel %vm2142, %v2135, 0
          %v2149 = vsel %vm2142, %v2137, 0
          %2151 = vmatprep.subr.mxu0 %v2145
          %2152 = vmatpush1.msra.mxu0 %v2143
          %2153 = vmatprep.subr.mxu0 0.0
          %2154 = vmatpush1.msra.mxu0 0.0
          %2155 = vmatprep.subr.mxu0 0.0
          %2156 = vmatpush1.msra.mxu0 0.0
          %2157 = vmatprep.subr.mxu0 0.0
          %2158 = vmatpush1.msra.mxu0 0.0
          %2159 = vmatprep.subr.mxu0 0.0
          %2160 = vmatpush1.msra.mxu0 0.0
          %2161 = vmatprep.subr.mxu0 0.0
          %2162 = vmatpush1.msra.mxu0 0.0
          %2163 = vmatprep.subr.mxu0 0.0
          %2164 = vmatpush1.msra.mxu0 0.0
          %2165 = vmatprep.subr.mxu0 0.0
          %2166 = vmatpush1.msra.mxu0 0.0
          %2167 = vmatprep.subr.mxu0 0.0
          %2168 = vmatpush1.msra.mxu0 0.0
          %2169 = vmatprep.subr.mxu0 0.0
          %2170 = vmatpush1.msra.mxu0 0.0
          %2171 = vmatprep.subr.mxu0 0.0
          %2172 = vmatpush1.msra.mxu0 0.0
          %2173 = vmatprep.subr.mxu0 0.0
          %2174 = vmatpush1.msra.mxu0 0.0
          %2175 = vmatprep.subr.mxu0 0.0
          %2176 = vmatpush1.msra.mxu0 0.0
          %2177 = vmatprep.subr.mxu0 0.0
          %2178 = vmatpush1.msra.mxu0 0.0
          %2179 = vmatprep.subr.mxu0 0.0
          %2180 = vmatpush1.msra.mxu0 0.0
          %2181 = vmatprep.subr.mxu0 0.0
          %2182 = vmatpush1.msra.mxu0 0.0
          %2183 = vmatprep.subr.mxu0 0.0
          %2184 = vmatpush1.msra.mxu0 0.0
          %2185 = vmatprep.subr.mxu0 0.0
          %2186 = vmatpush1.msra.mxu0 0.0
          %2187 = vmatprep.subr.mxu0 0.0
          %2188 = vmatpush1.msra.mxu0 0.0
          %2189 = vmatprep.subr.mxu0 0.0
          %2190 = vmatpush1.msra.mxu0 0.0
          %2191 = vmatprep.subr.mxu0 0.0
          %2192 = vmatpush1.msra.mxu0 0.0
          %2193 = vmatprep.subr.mxu0 0.0
          %2194 = vmatpush1.msra.mxu0 0.0
          %2195 = vmatprep.subr.mxu0 0.0
          %2196 = vmatpush1.msra.mxu0 0.0
          %2197 = vmatprep.subr.mxu0 0.0
          %2198 = vmatpush1.msra.mxu0 0.0
          %2199 = vmatprep.subr.mxu0 0.0
          %2200 = vmatpush1.msra.mxu0 0.0
          %2201 = vmatprep.subr.mxu0 0.0
          %2202 = vmatpush1.msra.mxu0 0.0
          %2203 = vmatprep.subr.mxu0 0.0
          %2204 = vmatpush1.msra.mxu0 0.0
          %2205 = vmatprep.subr.mxu0 0.0
          %2206 = vmatpush1.msra.mxu0 0.0
          %2207 = vmatprep.subr.mxu0 0.0
          %2208 = vmatpush1.msra.mxu0 0.0
          %2209 = vmatprep.subr.mxu0 0.0
          %2210 = vmatpush1.msra.mxu0 0.0
          %2211 = vmatprep.subr.mxu0 0.0
          %2212 = vmatpush1.msra.mxu0 0.0
          %2213 = vmatprep.subr.mxu0 0.0
          %2214 = vmatpush1.msra.mxu0 0.0
          %2215 = vmatprep.mubr.f32.mxu0 0.0
          %2216 = vmatmul.mubr.f32.gmra.mrb[0].mxu0 %v2140
          %v2217 = vpop.f32.mrb[0].mxu0
          %v2218 = vadd.f32 0.0, %v2217
          %v2219 = vpop.f32.mrb[0].mxu0
          %v2220 = vadd.f32 0.0, %v2219
          %2221 = vdwg.mxu0
          %2222 = vmatprep.subr.mxu0 %v2149
          %2223 = vmatpush1.msra.mxu0 %v2147
          %2224 = vmatprep.subr.mxu0 0.0
          %2225 = vmatpush1.msra.mxu0 0.0
          %2226 = vmatprep.subr.mxu0 0.0
          %2227 = vmatpush1.msra.mxu0 0.0
          %2228 = vmatprep.subr.mxu0 0.0
          %2229 = vmatpush1.msra.mxu0 0.0
          %2230 = vmatprep.subr.mxu0 0.0
          %2231 = vmatpush1.msra.mxu0 0.0
          %2232 = vmatprep.subr.mxu0 0.0
          %2233 = vmatpush1.msra.mxu0 0.0
          %2234 = vmatprep.subr.mxu0 0.0
          %2235 = vmatpush1.msra.mxu0 0.0
          %2236 = vmatprep.subr.mxu0 0.0
          %2237 = vmatpush1.msra.mxu0 0.0
          %2238 = vmatprep.subr.mxu0 0.0
          %2239 = vmatpush1.msra.mxu0 0.0
          %2240 = vmatprep.subr.mxu0 0.0
          %2241 = vmatpush1.msra.mxu0 0.0
          %2242 = vmatprep.subr.mxu0 0.0
          %2243 = vmatpush1.msra.mxu0 0.0
          %2244 = vmatprep.subr.mxu0 0.0
          %2245 = vmatpush1.msra.mxu0 0.0
          %2246 = vmatprep.subr.mxu0 0.0
          %2247 = vmatpush1.msra.mxu0 0.0
          %2248 = vmatprep.subr.mxu0 0.0
          %2249 = vmatpush1.msra.mxu0 0.0
          %2250 = vmatprep.subr.mxu0 0.0
          %2251 = vmatpush1.msra.mxu0 0.0
          %2252 = vmatprep.subr.mxu0 0.0
          %2253 = vmatpush1.msra.mxu0 0.0
          %2254 = vmatprep.subr.mxu0 0.0
          %2255 = vmatpush1.msra.mxu0 0.0
          %2256 = vmatprep.subr.mxu0 0.0
          %2257 = vmatpush1.msra.mxu0 0.0
          %2258 = vmatprep.subr.mxu0 0.0
          %2259 = vmatpush1.msra.mxu0 0.0
          %2260 = vmatprep.subr.mxu0 0.0
          %2261 = vmatpush1.msra.mxu0 0.0
          %2262 = vmatprep.subr.mxu0 0.0
          %2263 = vmatpush1.msra.mxu0 0.0
          %2264 = vmatprep.subr.mxu0 0.0
          %2265 = vmatpush1.msra.mxu0 0.0
          %2266 = vmatprep.subr.mxu0 0.0
          %2267 = vmatpush1.msra.mxu0 0.0
          %2268 = vmatprep.subr.mxu0 0.0
          %2269 = vmatpush1.msra.mxu0 0.0
          %2270 = vmatprep.subr.mxu0 0.0
          %2271 = vmatpush1.msra.mxu0 0.0
          %2272 = vmatprep.subr.mxu0 0.0
          %2273 = vmatpush1.msra.mxu0 0.0
          %2274 = vmatprep.subr.mxu0 0.0
          %2275 = vmatpush1.msra.mxu0 0.0
          %2276 = vmatprep.subr.mxu0 0.0
          %2277 = vmatpush1.msra.mxu0 0.0
          %2278 = vmatprep.subr.mxu0 0.0
          %2279 = vmatpush1.msra.mxu0 0.0
          %2280 = vmatprep.subr.mxu0 0.0
          %2281 = vmatpush1.msra.mxu0 0.0
          %2282 = vmatprep.subr.mxu0 0.0
          %2283 = vmatpush1.msra.mxu0 0.0
          %2284 = vmatprep.subr.mxu0 0.0
          %2285 = vmatpush1.msra.mxu0 0.0
          %2286 = vmatprep.mubr.f32.mxu0 0.0
          %2287 = vmatmul.mubr.f32.gmra.mrb[0].mxu0 %v2140
          %v2288 = vpop.f32.mrb[0].mxu0
          %v2289 = vadd.f32 0.0, %v2288
          %v2290 = vpop.f32.mrb[0].mxu0
          %v2291 = vadd.f32 0.0, %v2290
          %2292 = vdwg.mxu0
          %v2294 = vlaneseq
          %v2295 = vshrl.u32 %v2294, 7
          %v2296 = vsub.s32 0, %v2295
          %v2297 = vrot.slane %v1861, %v2296
          %v2298 = vlaneseq
          %v2299 = vshrl.u32 %v2298, 7
          %v2300 = vsub.s32 1, %v2299
          %v2301 = vrot.slane %v1861, %v2300
          %v2302 = vlaneseq
          %v2303 = vshrl.u32 %v2302, 7
          %v2304 = vsub.s32 2, %v2303
          %v2305 = vrot.slane %v1861, %v2304
          %v2306 = vlaneseq
          %v2307 = vshrl.u32 %v2306, 7
          %v2308 = vsub.s32 3, %v2307
          %v2309 = vrot.slane %v1861, %v2308
          %2314 = vmatprep.subr.mxu0 %v1864
          %2315 = vmatpush1.msra.mxu0 %v1863
          %2316 = vmatprep.subr.mxu0 %v1868
          %2317 = vmatpush1.msra.mxu0 %v1867
          %2318 = vmatprep.subr.mxu0 %v1872
          %2319 = vmatpush1.msra.mxu0 %v1871
          %2320 = vmatprep.subr.mxu0 %v1876
          %2321 = vmatpush1.msra.mxu0 %v1875
          %2322 = vmatprep.subr.mxu0 %v1880
          %2323 = vmatpush1.msra.mxu0 %v1879
          %2324 = vmatprep.subr.mxu0 %v1884
          %2325 = vmatpush1.msra.mxu0 %v1883
          %2326 = vmatprep.subr.mxu0 %v1888
          %2327 = vmatpush1.msra.mxu0 %v1887
          %2328 = vmatprep.subr.mxu0 %v1892
          %2329 = vmatpush1.msra.mxu0 %v1891
          %2330 = vmatprep.subr.mxu0 %v1896
          %2331 = vmatpush1.msra.mxu0 %v1895
          %2332 = vmatprep.subr.mxu0 %v1900
          %2333 = vmatpush1.msra.mxu0 %v1899
          %2334 = vmatprep.subr.mxu0 %v1904
          %2335 = vmatpush1.msra.mxu0 %v1903
          %2336 = vmatprep.subr.mxu0 %v1908
          %2337 = vmatpush1.msra.mxu0 %v1907
          %2338 = vmatprep.subr.mxu0 %v1912
          %2339 = vmatpush1.msra.mxu0 %v1911
          %2340 = vmatprep.subr.mxu0 %v1916
          %2341 = vmatpush1.msra.mxu0 %v1915
          %2342 = vmatprep.subr.mxu0 %v1920
          %2343 = vmatpush1.msra.mxu0 %v1919
          %2344 = vmatprep.subr.mxu0 %v1924
          %2345 = vmatpush1.msra.mxu0 %v1923
          %2346 = vmatprep.subr.mxu0 %v1928
          %2347 = vmatpush1.msra.mxu0 %v1927
          %2348 = vmatprep.subr.mxu0 %v1932
          %2349 = vmatpush1.msra.mxu0 %v1931
          %2350 = vmatprep.subr.mxu0 %v1936
          %2351 = vmatpush1.msra.mxu0 %v1935
          %2352 = vmatprep.subr.mxu0 %v1940
          %2353 = vmatpush1.msra.mxu0 %v1939
          %2354 = vmatprep.subr.mxu0 %v1944
          %2355 = vmatpush1.msra.mxu0 %v1943
          %2356 = vmatprep.subr.mxu0 %v1948
          %2357 = vmatpush1.msra.mxu0 %v1947
          %2358 = vmatprep.subr.mxu0 %v1952
          %2359 = vmatpush1.msra.mxu0 %v1951
          %2360 = vmatprep.subr.mxu0 %v1956
          %2361 = vmatpush1.msra.mxu0 %v1955
          %2362 = vmatprep.subr.mxu0 %v1960
          %2363 = vmatpush1.msra.mxu0 %v1959
          %2364 = vmatprep.subr.mxu0 %v1964
          %2365 = vmatpush1.msra.mxu0 %v1963
          %2366 = vmatprep.subr.mxu0 %v1968
          %2367 = vmatpush1.msra.mxu0 %v1967
          %2368 = vmatprep.subr.mxu0 %v1972
          %2369 = vmatpush1.msra.mxu0 %v1971
          %2370 = vmatprep.subr.mxu0 %v1976
          %2371 = vmatpush1.msra.mxu0 %v1975
          %2372 = vmatprep.subr.mxu0 %v1980
          %2373 = vmatpush1.msra.mxu0 %v1979
          %2374 = vmatprep.subr.mxu0 %v1984
          %2375 = vmatpush1.msra.mxu0 %v1983
          %2376 = vmatprep.subr.mxu0 %v1988
          %2377 = vmatpush1.msra.mxu0 %v1987
          %2378 = vmatprep.mubr.f32.mxu0 %v2301
          %2379 = vmatmul.mubr.f32.gmra.mrb[0].mxu0 %v2297
          %v2380 = vpop.f32.mrb[0].mxu0
          %v2381 = vadd.f32 %v2218, %v2380
          %v2382 = vpop.f32.mrb[0].mxu0
          %v2383 = vadd.f32 %v2220, %v2382
          %2384 = vdwg.mxu0
          %2385 = vmatprep.subr.mxu0 %v1992
          %2386 = vmatpush1.msra.mxu0 %v1991
          %2387 = vmatprep.subr.mxu0 %v1996
          %2388 = vmatpush1.msra.mxu0 %v1995
          %2389 = vmatprep.subr.mxu0 %v2000
          %2390 = vmatpush1.msra.mxu0 %v1999
          %2391 = vmatprep.subr.mxu0 %v2004
          %2392 = vmatpush1.msra.mxu0 %v2003
          %2393 = vmatprep.subr.mxu0 %v2008
          %2394 = vmatpush1.msra.mxu0 %v2007
          %2395 = vmatprep.subr.mxu0 %v2012
          %2396 = vmatpush1.msra.mxu0 %v2011
          %2397 = vmatprep.subr.mxu0 %v2016
          %2398 = vmatpush1.msra.mxu0 %v2015
          %2399 = vmatprep.subr.mxu0 %v2020
          %2400 = vmatpush1.msra.mxu0 %v2019
          %2401 = vmatprep.subr.mxu0 %v2024
          %2402 = vmatpush1.msra.mxu0 %v2023
          %2403 = vmatprep.subr.mxu0 %v2028
          %2404 = vmatpush1.msra.mxu0 %v2027
          %2405 = vmatprep.subr.mxu0 %v2032
          %2406 = vmatpush1.msra.mxu0 %v2031
          %2407 = vmatprep.subr.mxu0 %v2036
          %2408 = vmatpush1.msra.mxu0 %v2035
          %2409 = vmatprep.subr.mxu0 %v2040
          %2410 = vmatpush1.msra.mxu0 %v2039
          %2411 = vmatprep.subr.mxu0 %v2044
          %2412 = vmatpush1.msra.mxu0 %v2043
          %2413 = vmatprep.subr.mxu0 %v2048
          %2414 = vmatpush1.msra.mxu0 %v2047
          %2415 = vmatprep.subr.mxu0 %v2052
          %2416 = vmatpush1.msra.mxu0 %v2051
          %2417 = vmatprep.subr.mxu0 %v2056
          %2418 = vmatpush1.msra.mxu0 %v2055
          %2419 = vmatprep.subr.mxu0 %v2060
          %2420 = vmatpush1.msra.mxu0 %v2059
          %2421 = vmatprep.subr.mxu0 %v2064
          %2422 = vmatpush1.msra.mxu0 %v2063
          %2423 = vmatprep.subr.mxu0 %v2068
          %2424 = vmatpush1.msra.mxu0 %v2067
          %2425 = vmatprep.subr.mxu0 %v2072
          %2426 = vmatpush1.msra.mxu0 %v2071
          %2427 = vmatprep.subr.mxu0 %v2076
          %2428 = vmatpush1.msra.mxu0 %v2075
          %2429 = vmatprep.subr.mxu0 %v2080
          %2430 = vmatpush1.msra.mxu0 %v2079
          %2431 = vmatprep.subr.mxu0 %v2084
          %2432 = vmatpush1.msra.mxu0 %v2083
          %2433 = vmatprep.subr.mxu0 %v2088
          %2434 = vmatpush1.msra.mxu0 %v2087
          %2435 = vmatprep.subr.mxu0 %v2092
          %2436 = vmatpush1.msra.mxu0 %v2091
          %2437 = vmatprep.subr.mxu0 %v2096
          %2438 = vmatpush1.msra.mxu0 %v2095
          %2439 = vmatprep.subr.mxu0 %v2100
          %2440 = vmatpush1.msra.mxu0 %v2099
          %2441 = vmatprep.subr.mxu0 %v2104
          %2442 = vmatpush1.msra.mxu0 %v2103
          %2443 = vmatprep.subr.mxu0 %v2108
          %2444 = vmatpush1.msra.mxu0 %v2107
          %2445 = vmatprep.subr.mxu0 %v2112
          %2446 = vmatpush1.msra.mxu0 %v2111
          %2447 = vmatprep.subr.mxu0 %v2116
          %2448 = vmatpush1.msra.mxu0 %v2115
          %2449 = vmatprep.mubr.f32.mxu0 %v2309
          %2450 = vmatmul.mubr.f32.gmra.mrb[0].mxu0 %v2305
          %v2451 = vpop.f32.mrb[0].mxu0
          %v2452 = vadd.f32 %v2381, %v2451
          %v2453 = vpop.f32.mrb[0].mxu0
          %v2454 = vadd.f32 %v2383, %v2453
          %2455 = vdwg.mxu0
          %2456 = vmatprep.subr.mxu0 %v1866
          %2457 = vmatpush1.msra.mxu0 %v1865
          %2458 = vmatprep.subr.mxu0 %v1870
          %2459 = vmatpush1.msra.mxu0 %v1869
          %2460 = vmatprep.subr.mxu0 %v1874
          %2461 = vmatpush1.msra.mxu0 %v1873
          %2462 = vmatprep.subr.mxu0 %v1878
          %2463 = vmatpush1.msra.mxu0 %v1877
          %2464 = vmatprep.subr.mxu0 %v1882
          %2465 = vmatpush1.msra.mxu0 %v1881
          %2466 = vmatprep.subr.mxu0 %v1886
          %2467 = vmatpush1.msra.mxu0 %v1885
          %2468 = vmatprep.subr.mxu0 %v1890
          %2469 = vmatpush1.msra.mxu0 %v1889
          %2470 = vmatprep.subr.mxu0 %v1894
          %2471 = vmatpush1.msra.mxu0 %v1893
          %2472 = vmatprep.subr.mxu0 %v1898
          %2473 = vmatpush1.msra.mxu0 %v1897
          %2474 = vmatprep.subr.mxu0 %v1902
          %2475 = vmatpush1.msra.mxu0 %v1901
          %2476 = vmatprep.subr.mxu0 %v1906
          %2477 = vmatpush1.msra.mxu0 %v1905
          %2478 = vmatprep.subr.mxu0 %v1910
          %2479 = vmatpush1.msra.mxu0 %v1909
          %2480 = vmatprep.subr.mxu0 %v1914
          %2481 = vmatpush1.msra.mxu0 %v1913
          %2482 = vmatprep.subr.mxu0 %v1918
          %2483 = vmatpush1.msra.mxu0 %v1917
          %2484 = vmatprep.subr.mxu0 %v1922
          %2485 = vmatpush1.msra.mxu0 %v1921
          %2486 = vmatprep.subr.mxu0 %v1926
          %2487 = vmatpush1.msra.mxu0 %v1925
          %2488 = vmatprep.subr.mxu0 %v1930
          %2489 = vmatpush1.msra.mxu0 %v1929
          %2490 = vmatprep.subr.mxu0 %v1934
          %2491 = vmatpush1.msra.mxu0 %v1933
          %2492 = vmatprep.subr.mxu0 %v1938
          %2493 = vmatpush1.msra.mxu0 %v1937
          %2494 = vmatprep.subr.mxu0 %v1942
          %2495 = vmatpush1.msra.mxu0 %v1941
          %2496 = vmatprep.subr.mxu0 %v1946
          %2497 = vmatpush1.msra.mxu0 %v1945
          %2498 = vmatprep.subr.mxu0 %v1950
          %2499 = vmatpush1.msra.mxu0 %v1949
          %2500 = vmatprep.subr.mxu0 %v1954
          %2501 = vmatpush1.msra.mxu0 %v1953
          %2502 = vmatprep.subr.mxu0 %v1958
          %2503 = vmatpush1.msra.mxu0 %v1957
          %2504 = vmatprep.subr.mxu0 %v1962
          %2505 = vmatpush1.msra.mxu0 %v1961
          %2506 = vmatprep.subr.mxu0 %v1966
          %2507 = vmatpush1.msra.mxu0 %v1965
          %2508 = vmatprep.subr.mxu0 %v1970
          %2509 = vmatpush1.msra.mxu0 %v1969
          %2510 = vmatprep.subr.mxu0 %v1974
          %2511 = vmatpush1.msra.mxu0 %v1973
          %2512 = vmatprep.subr.mxu0 %v1978
          %2513 = vmatpush1.msra.mxu0 %v1977
          %2514 = vmatprep.subr.mxu0 %v1982
          %2515 = vmatpush1.msra.mxu0 %v1981
          %2516 = vmatprep.subr.mxu0 %v1986
          %2517 = vmatpush1.msra.mxu0 %v1985
          %2518 = vmatprep.subr.mxu0 %v1990
          %2519 = vmatpush1.msra.mxu0 %v1989
          %2520 = vmatprep.mubr.f32.mxu0 %v2301
          %2521 = vmatmul.mubr.f32.gmra.mrb[0].mxu0 %v2297
          %v2522 = vpop.f32.mrb[0].mxu0
          %v2523 = vadd.f32 %v2289, %v2522
          %v2524 = vpop.f32.mrb[0].mxu0
          %v2525 = vadd.f32 %v2291, %v2524
          %2526 = vdwg.mxu0
          %2527 = vmatprep.subr.mxu0 %v1994
          %2528 = vmatpush1.msra.mxu0 %v1993
          %2529 = vmatprep.subr.mxu0 %v1998
          %2530 = vmatpush1.msra.mxu0 %v1997
          %2531 = vmatprep.subr.mxu0 %v2002
          %2532 = vmatpush1.msra.mxu0 %v2001
          %2533 = vmatprep.subr.mxu0 %v2006
          %2534 = vmatpush1.msra.mxu0 %v2005
          %2535 = vmatprep.subr.mxu0 %v2010
          %2536 = vmatpush1.msra.mxu0 %v2009
          %2537 = vmatprep.subr.mxu0 %v2014
          %2538 = vmatpush1.msra.mxu0 %v2013
          %2539 = vmatprep.subr.mxu0 %v2018
          %2540 = vmatpush1.msra.mxu0 %v2017
          %2541 = vmatprep.subr.mxu0 %v2022
          %2542 = vmatpush1.msra.mxu0 %v2021
          %2543 = vmatprep.subr.mxu0 %v2026
          %2544 = vmatpush1.msra.mxu0 %v2025
          %2545 = vmatprep.subr.mxu0 %v2030
          %2546 = vmatpush1.msra.mxu0 %v2029
          %2547 = vmatprep.subr.mxu0 %v2034
          %2548 = vmatpush1.msra.mxu0 %v2033
          %2549 = vmatprep.subr.mxu0 %v2038
          %2550 = vmatpush1.msra.mxu0 %v2037
          %2551 = vmatprep.subr.mxu0 %v2042
          %2552 = vmatpush1.msra.mxu0 %v2041
          %2553 = vmatprep.subr.mxu0 %v2046
          %2554 = vmatpush1.msra.mxu0 %v2045
          %2555 = vmatprep.subr.mxu0 %v2050
          %2556 = vmatpush1.msra.mxu0 %v2049
          %2557 = vmatprep.subr.mxu0 %v2054
          %2558 = vmatpush1.msra.mxu0 %v2053
          %2559 = vmatprep.subr.mxu0 %v2058
          %2560 = vmatpush1.msra.mxu0 %v2057
          %2561 = vmatprep.subr.mxu0 %v2062
          %2562 = vmatpush1.msra.mxu0 %v2061
          %2563 = vmatprep.subr.mxu0 %v2066
          %2564 = vmatpush1.msra.mxu0 %v2065
          %2565 = vmatprep.subr.mxu0 %v2070
          %2566 = vmatpush1.msra.mxu0 %v2069
          %2567 = vmatprep.subr.mxu0 %v2074
          %2568 = vmatpush1.msra.mxu0 %v2073
          %2569 = vmatprep.subr.mxu0 %v2078
          %2570 = vmatpush1.msra.mxu0 %v2077
          %2571 = vmatprep.subr.mxu0 %v2082
          %2572 = vmatpush1.msra.mxu0 %v2081
          %2573 = vmatprep.subr.mxu0 %v2086
          %2574 = vmatpush1.msra.mxu0 %v2085
          %2575 = vmatprep.subr.mxu0 %v2090
          %2576 = vmatpush1.msra.mxu0 %v2089
          %2577 = vmatprep.subr.mxu0 %v2094
          %2578 = vmatpush1.msra.mxu0 %v2093
          %2579 = vmatprep.subr.mxu0 %v2098
          %2580 = vmatpush1.msra.mxu0 %v2097
          %2581 = vmatprep.subr.mxu0 %v2102
          %2582 = vmatpush1.msra.mxu0 %v2101
          %2583 = vmatprep.subr.mxu0 %v2106
          %2584 = vmatpush1.msra.mxu0 %v2105
          %2585 = vmatprep.subr.mxu0 %v2110
          %2586 = vmatpush1.msra.mxu0 %v2109
          %2587 = vmatprep.subr.mxu0 %v2114
          %2588 = vmatpush1.msra.mxu0 %v2113
          %2589 = vmatprep.subr.mxu0 %v2118
          %2590 = vmatpush1.msra.mxu0 %v2117
          %2591 = vmatprep.mubr.f32.mxu0 %v2309
          %2592 = vmatmul.mubr.f32.gmra.mrb[0].mxu0 %v2305
          %v2593 = vpop.f32.mrb[0].mxu0
          %v2594 = vadd.f32 %v2523, %v2593
          %v2595 = vpop.f32.mrb[0].mxu0
          %v2596 = vadd.f32 %v2525, %v2595
          %2597 = vdwg.mxu0
          %v2598 = vld [vmem:[%s12] sm:$0xf]
          %v2600 = vlaneseq
          %v2601 = vshrl.u32 %v2600, 7
          %v2602 = vsub.s32 0, %v2601
          %v2603 = vrot.slane %v2598, %v2602
          %v2604 = vlaneseq
          %v2605 = vshrl.u32 %v2604, 7
          %v2606 = vsub.s32 1, %v2605
          %v2607 = vrot.slane %v2598, %v2606
          %v2608 = vlaneseq
          %v2609 = vshrl.u32 %v2608, 7
          %v2610 = vsub.s32 2, %v2609
          %v2611 = vrot.slane %v2598, %v2610
          %v2612 = vlaneseq
          %v2613 = vshrl.u32 %v2612, 7
          %v2614 = vsub.s32 3, %v2613
          %v2615 = vrot.slane %v2598, %v2614
          %v2620 = vadd.f32 %v2452, %v2603
          %v2621 = vadd.f32 %v2454, %v2607
          %v2622 = vadd.f32 %v2594, %v2611
          %v2623 = vadd.f32 %v2596, %v2615
          %v2624 = vmax.f32 %v2620, 0.0
          %v2625 = vmax.f32 %v2621, 0.0
          %v2626 = vmax.f32 %v2622, 0.0
          %v2627 = vmax.f32 %v2623, 0.0
          %v2628 = vld [vmem:[#allocation9] sm:$0xff]
          %v2629 = vld [vmem:[#allocation9 + $0x8] sm:$0xff]
          %v2630 = vld [vmem:[#allocation9 + $0x10] sm:$0xff]
          %v2631 = vld [vmem:[#allocation9 + $0x18] sm:$0xff]
          %v2632 = vld [vmem:[#allocation9 + $0x20] sm:$0xff]
          %v2633 = vld [vmem:[#allocation9 + $0x28] sm:$0xff]
          %v2634 = vld [vmem:[#allocation9 + $0x30] sm:$0xff]
          %v2635 = vld [vmem:[#allocation9 + $0x38] sm:$0xff]
          %v2636 = vld [vmem:[#allocation9 + $0x40] sm:$0xff]
          %v2637 = vld [vmem:[#allocation9 + $0x48] sm:$0xff]
          %v2638 = vld [vmem:[#allocation9 + $0x50] sm:$0xff]
          %v2639 = vld [vmem:[#allocation9 + $0x58] sm:$0xff]
          %v2640 = vld [vmem:[#allocation9 + $0x60] sm:$0xff]
          %v2641 = vld [vmem:[#allocation9 + $0x68] sm:$0xff]
          %v2642 = vld [vmem:[#allocation9 + $0x70] sm:$0xff]
          %v2643 = vld [vmem:[#allocation9 + $0x78] sm:$0xff]
          %v2644 = vld [vmem:[#allocation9 + $0x80] sm:$0xff]
          %v2645 = vld [vmem:[#allocation9 + $0x88] sm:$0xff]
          %v2646 = vld [vmem:[#allocation9 + $0x90] sm:$0xff]
          %v2647 = vld [vmem:[#allocation9 + $0x98] sm:$0xff]
          %v2648 = vld [vmem:[#allocation9 + $0xa0] sm:$0xff]
          %v2649 = vld [vmem:[#allocation9 + $0xa8] sm:$0xff]
          %v2650 = vld [vmem:[#allocation9 + $0xb0] sm:$0xff]
          %v2651 = vld [vmem:[#allocation9 + $0xb8] sm:$0xff]
          %v2652 = vld [vmem:[#allocation9 + $0xc0] sm:$0xff]
          %v2653 = vld [vmem:[#allocation9 + $0xc8] sm:$0xff]
          %v2654 = vld [vmem:[#allocation9 + $0xd0] sm:$0xff]
          %v2655 = vld [vmem:[#allocation9 + $0xd8] sm:$0xff]
          %v2656 = vld [vmem:[#allocation9 + $0xe0] sm:$0xff]
          %v2657 = vld [vmem:[#allocation9 + $0xe8] sm:$0xff]
          %v2658 = vld [vmem:[#allocation9 + $0xf0] sm:$0xff]
          %v2659 = vld [vmem:[#allocation9 + $0xf8] sm:$0xff]
          %v2660 = vld [vmem:[#allocation9 + $0x100] sm:$0xff]
          %v2661 = vld [vmem:[#allocation9 + $0x108] sm:$0xff]
          %v2662 = vld [vmem:[#allocation9 + $0x110] sm:$0xff]
          %v2663 = vld [vmem:[#allocation9 + $0x118] sm:$0xff]
          %v2664 = vld [vmem:[#allocation9 + $0x120] sm:$0xff]
          %v2665 = vld [vmem:[#allocation9 + $0x128] sm:$0xff]
          %v2666 = vld [vmem:[#allocation9 + $0x130] sm:$0xff]
          %v2667 = vld [vmem:[#allocation9 + $0x138] sm:$0xff]
          %v2668 = vld [vmem:[#allocation9 + $0x140] sm:$0xff]
          %v2669 = vld [vmem:[#allocation9 + $0x148] sm:$0xff]
          %v2670 = vld [vmem:[#allocation9 + $0x150] sm:$0xff]
          %v2671 = vld [vmem:[#allocation9 + $0x158] sm:$0xff]
          %v2672 = vld [vmem:[#allocation9 + $0x160] sm:$0xff]
          %v2673 = vld [vmem:[#allocation9 + $0x168] sm:$0xff]
          %v2674 = vld [vmem:[#allocation9 + $0x170] sm:$0xff]
          %v2675 = vld [vmem:[#allocation9 + $0x178] sm:$0xff]
          %v2676 = vld [vmem:[#allocation9 + $0x180] sm:$0xff]
          %v2677 = vld [vmem:[#allocation9 + $0x188] sm:$0xff]
          %v2678 = vld [vmem:[#allocation9 + $0x190] sm:$0xff]
          %v2679 = vld [vmem:[#allocation9 + $0x198] sm:$0xff]
          %v2680 = vld [vmem:[#allocation9 + $0x1a0] sm:$0xff]
          %v2681 = vld [vmem:[#allocation9 + $0x1a8] sm:$0xff]
          %v2682 = vld [vmem:[#allocation9 + $0x1b0] sm:$0xff]
          %v2683 = vld [vmem:[#allocation9 + $0x1b8] sm:$0xff]
          %v2684 = vld [vmem:[#allocation9 + $0x1c0] sm:$0xff]
          %v2685 = vld [vmem:[#allocation9 + $0x1c8] sm:$0xff]
          %v2686 = vld [vmem:[#allocation9 + $0x1d0] sm:$0xff]
          %v2687 = vld [vmem:[#allocation9 + $0x1d8] sm:$0xff]
          %v2688 = vld [vmem:[#allocation9 + $0x1e0] sm:$0xff]
          %v2689 = vld [vmem:[#allocation9 + $0x1e8] sm:$0xff]
          %v2690 = vld [vmem:[#allocation9 + $0x1f0] sm:$0xff]
          %v2691 = vld [vmem:[#allocation9 + $0x1f8] sm:$0xff]
          %v2692 = vld [vmem:[#allocation9 + $0x200] sm:$0xff]
          %v2693 = vld [vmem:[#allocation9 + $0x208] sm:$0xff]
          %v2694 = vld [vmem:[#allocation9 + $0x210] sm:$0xff]
          %v2695 = vld [vmem:[#allocation9 + $0x218] sm:$0xff]
          %v2696 = vld [vmem:[#allocation9 + $0x220] sm:$0xff]
          %v2697 = vld [vmem:[#allocation9 + $0x228] sm:$0xff]
          %v2698 = vld [vmem:[#allocation9 + $0x230] sm:$0xff]
          %v2699 = vld [vmem:[#allocation9 + $0x238] sm:$0xff]
          %v2700 = vld [vmem:[#allocation9 + $0x240] sm:$0xff]
          %v2701 = vld [vmem:[#allocation9 + $0x248] sm:$0xff]
          %v2702 = vld [vmem:[#allocation9 + $0x250] sm:$0xff]
          %v2703 = vld [vmem:[#allocation9 + $0x258] sm:$0xff]
          %v2704 = vld [vmem:[#allocation9 + $0x260] sm:$0xff]
          %v2705 = vld [vmem:[#allocation9 + $0x268] sm:$0xff]
          %v2706 = vld [vmem:[#allocation9 + $0x270] sm:$0xff]
          %v2707 = vld [vmem:[#allocation9 + $0x278] sm:$0xff]
          %v2708 = vld [vmem:[#allocation9 + $0x280] sm:$0xff]
          %v2709 = vld [vmem:[#allocation9 + $0x288] sm:$0xff]
          %v2710 = vld [vmem:[#allocation9 + $0x290] sm:$0xff]
          %v2711 = vld [vmem:[#allocation9 + $0x298] sm:$0xff]
          %v2712 = vld [vmem:[#allocation9 + $0x2a0] sm:$0xff]
          %v2713 = vld [vmem:[#allocation9 + $0x2a8] sm:$0xff]
          %v2714 = vld [vmem:[#allocation9 + $0x2b0] sm:$0xff]
          %v2715 = vld [vmem:[#allocation9 + $0x2b8] sm:$0xff]
          %v2716 = vld [vmem:[#allocation9 + $0x2c0] sm:$0xff]
          %v2717 = vld [vmem:[#allocation9 + $0x2c8] sm:$0xff]
          %v2718 = vld [vmem:[#allocation9 + $0x2d0] sm:$0xff]
          %v2719 = vld [vmem:[#allocation9 + $0x2d8] sm:$0xff]
          %v2720 = vld [vmem:[#allocation9 + $0x2e0] sm:$0xff]
          %v2721 = vld [vmem:[#allocation9 + $0x2e8] sm:$0xff]
          %v2722 = vld [vmem:[#allocation9 + $0x2f0] sm:$0xff]
          %v2723 = vld [vmem:[#allocation9 + $0x2f8] sm:$0xff]
          %v2724 = vld [vmem:[#allocation9 + $0x300] sm:$0xff]
          %v2725 = vld [vmem:[#allocation9 + $0x308] sm:$0xff]
          %v2726 = vld [vmem:[#allocation9 + $0x310] sm:$0xff]
          %v2727 = vld [vmem:[#allocation9 + $0x318] sm:$0xff]
          %v2728 = vld [vmem:[#allocation9 + $0x320] sm:$0xff]
          %v2729 = vld [vmem:[#allocation9 + $0x328] sm:$0xff]
          %v2730 = vld [vmem:[#allocation9 + $0x330] sm:$0xff]
          %v2731 = vld [vmem:[#allocation9 + $0x338] sm:$0xff]
          %v2732 = vld [vmem:[#allocation9 + $0x340] sm:$0xff]
          %v2733 = vld [vmem:[#allocation9 + $0x348] sm:$0xff]
          %v2734 = vld [vmem:[#allocation9 + $0x350] sm:$0xff]
          %v2735 = vld [vmem:[#allocation9 + $0x358] sm:$0xff]
          %v2736 = vld [vmem:[#allocation9 + $0x360] sm:$0xff]
          %v2737 = vld [vmem:[#allocation9 + $0x368] sm:$0xff]
          %v2738 = vld [vmem:[#allocation9 + $0x370] sm:$0xff]
          %v2739 = vld [vmem:[#allocation9 + $0x378] sm:$0xff]
          %v2740 = vld [vmem:[#allocation9 + $0x380] sm:$0xff]
          %v2741 = vld [vmem:[#allocation9 + $0x388] sm:$0xff]
          %v2742 = vld [vmem:[#allocation9 + $0x390] sm:$0xff]
          %v2743 = vld [vmem:[#allocation9 + $0x398] sm:$0xff]
          %v2744 = vld [vmem:[#allocation9 + $0x3a0] sm:$0xff]
          %v2745 = vld [vmem:[#allocation9 + $0x3a8] sm:$0xff]
          %v2746 = vld [vmem:[#allocation9 + $0x3b0] sm:$0xff]
          %v2747 = vld [vmem:[#allocation9 + $0x3b8] sm:$0xff]
          %v2748 = vld [vmem:[#allocation9 + $0x3c0] sm:$0xff]
          %v2749 = vld [vmem:[#allocation9 + $0x3c8] sm:$0xff]
          %v2750 = vld [vmem:[#allocation9 + $0x3d0] sm:$0xff]
          %v2751 = vld [vmem:[#allocation9 + $0x3d8] sm:$0xff]
          %v2752 = vld [vmem:[#allocation9 + $0x3e0] sm:$0xff]
          %v2753 = vld [vmem:[#allocation9 + $0x3e8] sm:$0xff]
          %v2754 = vld [vmem:[#allocation9 + $0x3f0] sm:$0xff]
          %v2755 = vld [vmem:[#allocation9 + $0x3f8] sm:$0xff]
          %v2756 = vld [vmem:[%s14] sm:$0x3]
          %v2758 = vlaneseq
          %v2759 = vshrl.u32 %v2758, 7
          %v2760 = vsub.s32 0, %v2759
          %v2761 = vrot.slane %v2756, %v2760
          %v2762 = vlaneseq
          %v2763 = vshrl.u32 %v2762, 7
          %v2764 = vsub.s32 1, %v2763
          %v2765 = vrot.slane %v2756, %v2764
          %2768 = vmatprep.subr.mxu0 %v2629
          %2769 = vmatpush1.msra.mxu0 %v2628
          %2770 = vmatprep.subr.mxu0 %v2631
          %2771 = vmatpush1.msra.mxu0 %v2630
          %2772 = vmatprep.subr.mxu0 %v2633
          %2773 = vmatpush1.msra.mxu0 %v2632
          %2774 = vmatprep.subr.mxu0 %v2635
          %2775 = vmatpush1.msra.mxu0 %v2634
          %2776 = vmatprep.subr.mxu0 %v2637
          %2777 = vmatpush1.msra.mxu0 %v2636
          %2778 = vmatprep.subr.mxu0 %v2639
          %2779 = vmatpush1.msra.mxu0 %v2638
          %2780 = vmatprep.subr.mxu0 %v2641
          %2781 = vmatpush1.msra.mxu0 %v2640
          %2782 = vmatprep.subr.mxu0 %v2643
          %2783 = vmatpush1.msra.mxu0 %v2642
          %2784 = vmatprep.subr.mxu0 %v2645
          %2785 = vmatpush1.msra.mxu0 %v2644
          %2786 = vmatprep.subr.mxu0 %v2647
          %2787 = vmatpush1.msra.mxu0 %v2646
          %2788 = vmatprep.subr.mxu0 %v2649
          %2789 = vmatpush1.msra.mxu0 %v2648
          %2790 = vmatprep.subr.mxu0 %v2651
          %2791 = vmatpush1.msra.mxu0 %v2650
          %2792 = vmatprep.subr.mxu0 %v2653
          %2793 = vmatpush1.msra.mxu0 %v2652
          %2794 = vmatprep.subr.mxu0 %v2655
          %2795 = vmatpush1.msra.mxu0 %v2654
          %2796 = vmatprep.subr.mxu0 %v2657
          %2797 = vmatpush1.msra.mxu0 %v2656
          %2798 = vmatprep.subr.mxu0 %v2659
          %2799 = vmatpush1.msra.mxu0 %v2658
          %2800 = vmatprep.subr.mxu0 %v2661
          %2801 = vmatpush1.msra.mxu0 %v2660
          %2802 = vmatprep.subr.mxu0 %v2663
          %2803 = vmatpush1.msra.mxu0 %v2662
          %2804 = vmatprep.subr.mxu0 %v2665
          %2805 = vmatpush1.msra.mxu0 %v2664
          %2806 = vmatprep.subr.mxu0 %v2667
          %2807 = vmatpush1.msra.mxu0 %v2666
          %2808 = vmatprep.subr.mxu0 %v2669
          %2809 = vmatpush1.msra.mxu0 %v2668
          %2810 = vmatprep.subr.mxu0 %v2671
          %2811 = vmatpush1.msra.mxu0 %v2670
          %2812 = vmatprep.subr.mxu0 %v2673
          %2813 = vmatpush1.msra.mxu0 %v2672
          %2814 = vmatprep.subr.mxu0 %v2675
          %2815 = vmatpush1.msra.mxu0 %v2674
          %2816 = vmatprep.subr.mxu0 %v2677
          %2817 = vmatpush1.msra.mxu0 %v2676
          %2818 = vmatprep.subr.mxu0 %v2679
          %2819 = vmatpush1.msra.mxu0 %v2678
          %2820 = vmatprep.subr.mxu0 %v2681
          %2821 = vmatpush1.msra.mxu0 %v2680
          %2822 = vmatprep.subr.mxu0 %v2683
          %2823 = vmatpush1.msra.mxu0 %v2682
          %2824 = vmatprep.subr.mxu0 %v2685
          %2825 = vmatpush1.msra.mxu0 %v2684
          %2826 = vmatprep.subr.mxu0 %v2687
          %2827 = vmatpush1.msra.mxu0 %v2686
          %2828 = vmatprep.subr.mxu0 %v2689
          %2829 = vmatpush1.msra.mxu0 %v2688
          %2830 = vmatprep.subr.mxu0 %v2691
          %2831 = vmatpush1.msra.mxu0 %v2690
          %2832 = vmatprep.mubr.f32.mxu0 %v2625
          %2833 = vmatmul.mubr.f32.gmra.mrb[0].mxu0 %v2624
          %v2834 = vpop.f32.mrb[0].mxu0
          %v2835 = vadd.f32 %v2761, %v2834
          %v2836 = vpop.f32.mrb[0].mxu0
          %v2837 = vadd.f32 %v2765, %v2836
          %2838 = vdwg.mxu0
          %2839 = vmatprep.subr.mxu0 %v2693
          %2840 = vmatpush1.msra.mxu0 %v2692
          %2841 = vmatprep.subr.mxu0 %v2695
          %2842 = vmatpush1.msra.mxu0 %v2694
          %2843 = vmatprep.subr.mxu0 %v2697
          %2844 = vmatpush1.msra.mxu0 %v2696
          %2845 = vmatprep.subr.mxu0 %v2699
          %2846 = vmatpush1.msra.mxu0 %v2698
          %2847 = vmatprep.subr.mxu0 %v2701
          %2848 = vmatpush1.msra.mxu0 %v2700
          %2849 = vmatprep.subr.mxu0 %v2703
          %2850 = vmatpush1.msra.mxu0 %v2702
          %2851 = vmatprep.subr.mxu0 %v2705
          %2852 = vmatpush1.msra.mxu0 %v2704
          %2853 = vmatprep.subr.mxu0 %v2707
          %2854 = vmatpush1.msra.mxu0 %v2706
          %2855 = vmatprep.subr.mxu0 %v2709
          %2856 = vmatpush1.msra.mxu0 %v2708
          %2857 = vmatprep.subr.mxu0 %v2711
          %2858 = vmatpush1.msra.mxu0 %v2710
          %2859 = vmatprep.subr.mxu0 %v2713
          %2860 = vmatpush1.msra.mxu0 %v2712
          %2861 = vmatprep.subr.mxu0 %v2715
          %2862 = vmatpush1.msra.mxu0 %v2714
          %2863 = vmatprep.subr.mxu0 %v2717
          %2864 = vmatpush1.msra.mxu0 %v2716
          %2865 = vmatprep.subr.mxu0 %v2719
          %2866 = vmatpush1.msra.mxu0 %v2718
          %2867 = vmatprep.subr.mxu0 %v2721
          %2868 = vmatpush1.msra.mxu0 %v2720
          %2869 = vmatprep.subr.mxu0 %v2723
          %2870 = vmatpush1.msra.mxu0 %v2722
          %2871 = vmatprep.subr.mxu0 %v2725
          %2872 = vmatpush1.msra.mxu0 %v2724
          %2873 = vmatprep.subr.mxu0 %v2727
          %2874 = vmatpush1.msra.mxu0 %v2726
          %2875 = vmatprep.subr.mxu0 %v2729
          %2876 = vmatpush1.msra.mxu0 %v2728
          %2877 = vmatprep.subr.mxu0 %v2731
          %2878 = vmatpush1.msra.mxu0 %v2730
          %2879 = vmatprep.subr.mxu0 %v2733
          %2880 = vmatpush1.msra.mxu0 %v2732
          %2881 = vmatprep.subr.mxu0 %v2735
          %2882 = vmatpush1.msra.mxu0 %v2734
          %2883 = vmatprep.subr.mxu0 %v2737
          %2884 = vmatpush1.msra.mxu0 %v2736
          %2885 = vmatprep.subr.mxu0 %v2739
          %2886 = vmatpush1.msra.mxu0 %v2738
          %2887 = vmatprep.subr.mxu0 %v2741
          %2888 = vmatpush1.msra.mxu0 %v2740
          %2889 = vmatprep.subr.mxu0 %v2743
          %2890 = vmatpush1.msra.mxu0 %v2742
          %2891 = vmatprep.subr.mxu0 %v2745
          %2892 = vmatpush1.msra.mxu0 %v2744
          %2893 = vmatprep.subr.mxu0 %v2747
          %2894 = vmatpush1.msra.mxu0 %v2746
          %2895 = vmatprep.subr.mxu0 %v2749
          %2896 = vmatpush1.msra.mxu0 %v2748
          %2897 = vmatprep.subr.mxu0 %v2751
          %2898 = vmatpush1.msra.mxu0 %v2750
          %2899 = vmatprep.subr.mxu0 %v2753
          %2900 = vmatpush1.msra.mxu0 %v2752
          %2901 = vmatprep.subr.mxu0 %v2755
          %2902 = vmatpush1.msra.mxu0 %v2754
          %2903 = vmatprep.mubr.f32.mxu0 %v2627
          %2904 = vmatmul.mubr.f32.gmra.mrb[0].mxu0 %v2626
          %v2905 = vpop.f32.mrb[0].mxu0
          %v2906 = vadd.f32 %v2835, %v2905
          %v2907 = vpop.f32.mrb[0].mxu0
          %v2908 = vadd.f32 %v2837, %v2907
          %2909 = vdwg.mxu0
          %v2910 = vmax.f32 %v2906, 0.0
          %v2911 = vmax.f32 %v2908, 0.0
          %v2912 = vld [vmem:[#allocation11] sm:$0xff]
          %v2913 = vld [vmem:[#allocation11 + $0x8] sm:$0xff]
          %v2914 = vld [vmem:[#allocation11 + $0x10] sm:$0xff]
          %v2915 = vld [vmem:[#allocation11 + $0x18] sm:$0xff]
          %v2916 = vld [vmem:[#allocation11 + $0x20] sm:$0xff]
          %v2917 = vld [vmem:[#allocation11 + $0x28] sm:$0xff]
          %v2918 = vld [vmem:[#allocation11 + $0x30] sm:$0xff]
          %v2919 = vld [vmem:[#allocation11 + $0x38] sm:$0xff]
          %v2920 = vld [vmem:[#allocation11 + $0x40] sm:$0xff]
          %v2921 = vld [vmem:[#allocation11 + $0x48] sm:$0xff]
          %v2922 = vld [vmem:[#allocation11 + $0x50] sm:$0xff]
          %v2923 = vld [vmem:[#allocation11 + $0x58] sm:$0xff]
          %v2924 = vld [vmem:[#allocation11 + $0x60] sm:$0xff]
          %v2925 = vld [vmem:[#allocation11 + $0x68] sm:$0xff]
          %v2926 = vld [vmem:[#allocation11 + $0x70] sm:$0xff]
          %v2927 = vld [vmem:[#allocation11 + $0x78] sm:$0xff]
          %v2928 = vld [vmem:[#allocation11 + $0x80] sm:$0xff]
          %v2929 = vld [vmem:[#allocation11 + $0x88] sm:$0xff]
          %v2930 = vld [vmem:[#allocation11 + $0x90] sm:$0xff]
          %v2931 = vld [vmem:[#allocation11 + $0x98] sm:$0xff]
          %v2932 = vld [vmem:[#allocation11 + $0xa0] sm:$0xff]
          %v2933 = vld [vmem:[#allocation11 + $0xa8] sm:$0xff]
          %v2934 = vld [vmem:[#allocation11 + $0xb0] sm:$0xff]
          %v2935 = vld [vmem:[#allocation11 + $0xb8] sm:$0xff]
          %v2936 = vld [vmem:[#allocation11 + $0xc0] sm:$0xff]
          %v2937 = vld [vmem:[#allocation11 + $0xc8] sm:$0xff]
          %v2938 = vld [vmem:[#allocation11 + $0xd0] sm:$0xff]
          %v2939 = vld [vmem:[#allocation11 + $0xd8] sm:$0xff]
          %v2940 = vld [vmem:[#allocation11 + $0xe0] sm:$0xff]
          %v2941 = vld [vmem:[#allocation11 + $0xe8] sm:$0xff]
          %v2942 = vld [vmem:[#allocation11 + $0xf0] sm:$0xff]
          %v2943 = vld [vmem:[#allocation11 + $0xf8] sm:$0xff]
          %v2944 = vld [vmem:[%s16] sm:$0x1]
          %2945 = vmatprep.subr.mxu0 0.0
          %2946 = vmatpush1.msra.mxu0 %v2912
          %2947 = vmatprep.subr.mxu0 0.0
          %2948 = vmatpush1.msra.mxu0 %v2913
          %2949 = vmatprep.subr.mxu0 0.0
          %2950 = vmatpush1.msra.mxu0 %v2914
          %2951 = vmatprep.subr.mxu0 0.0
          %2952 = vmatpush1.msra.mxu0 %v2915
          %2953 = vmatprep.subr.mxu0 0.0
          %2954 = vmatpush1.msra.mxu0 %v2916
          %2955 = vmatprep.subr.mxu0 0.0
          %2956 = vmatpush1.msra.mxu0 %v2917
          %2957 = vmatprep.subr.mxu0 0.0
          %2958 = vmatpush1.msra.mxu0 %v2918
          %2959 = vmatprep.subr.mxu0 0.0
          %2960 = vmatpush1.msra.mxu0 %v2919
          %2961 = vmatprep.subr.mxu0 0.0
          %2962 = vmatpush1.msra.mxu0 %v2920
          %2963 = vmatprep.subr.mxu0 0.0
          %2964 = vmatpush1.msra.mxu0 %v2921
          %2965 = vmatprep.subr.mxu0 0.0
          %2966 = vmatpush1.msra.mxu0 %v2922
          %2967 = vmatprep.subr.mxu0 0.0
          %2968 = vmatpush1.msra.mxu0 %v2923
          %2969 = vmatprep.subr.mxu0 0.0
          %2970 = vmatpush1.msra.mxu0 %v2924
          %2971 = vmatprep.subr.mxu0 0.0
          %2972 = vmatpush1.msra.mxu0 %v2925
          %2973 = vmatprep.subr.mxu0 0.0
          %2974 = vmatpush1.msra.mxu0 %v2926
          %2975 = vmatprep.subr.mxu0 0.0
          %2976 = vmatpush1.msra.mxu0 %v2927
          %2977 = vmatprep.subr.mxu0 0.0
          %2978 = vmatpush1.msra.mxu0 %v2928
          %2979 = vmatprep.subr.mxu0 0.0
          %2980 = vmatpush1.msra.mxu0 %v2929
          %2981 = vmatprep.subr.mxu0 0.0
          %2982 = vmatpush1.msra.mxu0 %v2930
          %2983 = vmatprep.subr.mxu0 0.0
          %2984 = vmatpush1.msra.mxu0 %v2931
          %2985 = vmatprep.subr.mxu0 0.0
          %2986 = vmatpush1.msra.mxu0 %v2932
          %2987 = vmatprep.subr.mxu0 0.0
          %2988 = vmatpush1.msra.mxu0 %v2933
          %2989 = vmatprep.subr.mxu0 0.0
          %2990 = vmatpush1.msra.mxu0 %v2934
          %2991 = vmatprep.subr.mxu0 0.0
          %2992 = vmatpush1.msra.mxu0 %v2935
          %2993 = vmatprep.subr.mxu0 0.0
          %2994 = vmatpush1.msra.mxu0 %v2936
          %2995 = vmatprep.subr.mxu0 0.0
          %2996 = vmatpush1.msra.mxu0 %v2937
          %2997 = vmatprep.subr.mxu0 0.0
          %2998 = vmatpush1.msra.mxu0 %v2938
          %2999 = vmatprep.subr.mxu0 0.0
          %3000 = vmatpush1.msra.mxu0 %v2939
          %3001 = vmatprep.subr.mxu0 0.0
          %3002 = vmatpush1.msra.mxu0 %v2940
          %3003 = vmatprep.subr.mxu0 0.0
          %3004 = vmatpush1.msra.mxu0 %v2941
          %3005 = vmatprep.subr.mxu0 0.0
          %3006 = vmatpush1.msra.mxu0 %v2942
          %3007 = vmatprep.subr.mxu0 0.0
          %3008 = vmatpush1.msra.mxu0 %v2943
          %3009 = vmatprep.mubr.f32.mxu0 %v2911
          %3010 = vmatmul.mubr.f32.gmra.mrb[0].mxu0 %v2910
          %v3011 = vpop.f32.mrb[0].mxu0
          %v3012 = vadd.f32 %v2944, %v3011
          %v3013 = vpop.f32.mrb[0].mxu0
          %3014 = vdwg.mxu0
          %3015 = vst [vmem:[%s647] sm:$0x1] %v3012
        $region116: #{tpu_custom_call.1} parent=87 // pred_fallthru
          _
        %s3016 = sand.u32 %s423, 1
        %s3017 = scalar_lea.sflag [#allocation5], %s3016
        %s3018 = sand.u32 %s423, 1
        %s3019 = scalar_lea.vmem [#allocation12], %s3018
        // Predicated region
        $region117: #{tpu_custom_call.1} parent=87 // pred_check
          %p3020 = pneg %p433
        $region118: #{tpu_custom_call.1} parent=87 // pred_check_branch
          %3022 = sbr.rel (%p3020) target = $region120
        $region119: #{tpu_custom_call.1} parent=87 // pred_region
          %s3024 = ssub.s32 16, 16
          %3025 = vsyncadd %s3017, %s3024
          %s3026 = smul.addr %s38, 16
          %s3027 = scalar_lea.hbm %s17, %s3026
          %s3029 = sshll.u32 %s3019, 4
          %s3030 = int_to_ptr.vmem [resolvable:$true] %s3029
          %3032 = dma.vmem_to_hbm [thread:$0]  %s3030, 16, %s3027, %s3017
        $region120: #{tpu_custom_call.1} parent=87 // pred_fallthru
          _
      $region88: #{tpu_custom_call.1} parent=5 // pred_fallthru
        _
      %p3033 = scmp.le.s32.totalorder 2, %s29
      // Predicated region
      $region121: #{tpu_custom_call.1} parent=5 // pred_check
        %p3034 = pneg %p3033
      $region122: #{tpu_custom_call.1} parent=5 // pred_check_branch
        %3036 = sbr.rel (%p3034) target = $region124
      $region123: #{tpu_custom_call.1} parent=5 // pred_region
        %s3037 = ssub.s32 %s29, 2
        // Predicated region
        $region125: #{tpu_custom_call.1} parent=123 // pred_check
          %p3038 = pneg %p439
        $region126: #{tpu_custom_call.1} parent=123 // pred_check_branch
          %3040 = sbr.rel (%p3038) target = $region128
        $region127: #{tpu_custom_call.1} parent=123 // pred_region
          %s3041 = sand.u32 %s424, 1
          %s3042 = scalar_lea.sflag [#allocation5], %s3041
          %s3043 = sand.u32 %s424, 1
          %s3044 = scalar_lea.vmem [#allocation12], %s3043
          %3045 = dma.done %s3042, 16
        $region128: #{tpu_custom_call.1} parent=123 // pred_fallthru
          _
      $region124: #{tpu_custom_call.1} parent=5 // pred_fallthru
        _
    $region6: #{tpu_custom_call.1} parent=1 // loop_footer
      %s33 = sadd.s32 1, %s29
    $region7: #{tpu_custom_call.1} parent=1 // loop_footer_branch
      %28 = sbr.rel target = $region3
    $region8: #{tpu_custom_call.1} parent=1 // loop_exit
      _
    %3046 = vsyncpa [#allocation4], 1
    %s3047 = scalar_lea.sflag [#allocation4], 1
    %3048 = vsyncpa %s3047, 1
    %3049 = vsyncpa [#allocation7], 1
    %3050 = vsyncpa [#allocation10], 1
    %3051 = vsyncpa [#allocation5], 1
    %s3052 = scalar_lea.sflag [#allocation5], 1
    %3053 = vsyncpa %s3052, 1

</llo_original>
